<compile_context>
chip_gen: v6e
topology: v6e:2x2x1
jax: 0.10.0
libtpu: 0.0.40
codegen_flags: <defaults>
</compile_context>

<pallas_src>
import jax
import jax.numpy as jnp
from jax import lax
from jax.experimental import pallas as pl
from jax.experimental.pallas import tpu as pltpu


def gru_utility_kernel(ids_ref, lens_ref, emb_ref,
                       wir_f_ref, wiz_f_ref, win_f_ref,
                       br_f_ref, bz_f_ref, bin_f_ref, bhn_f_ref,
                       wir_b_ref, wiz_b_ref, win_b_ref,
                       whr_b_ref, whz_b_ref, whn_b_ref,
                       br_b_ref, bz_b_ref, bin_b_ref, bhn_b_ref,
                       w1_ref, b1_ref, w2_ref, b2_ref,
                       out_ref):
    TB = ids_ref.shape[0]          # T * B (time-major flattened)
    B = lens_ref.shape[0]
    T = TB // B
    V = emb_ref.shape[0]           # vocab (128)
    H = whr_b_ref.shape[0]
    f32 = jnp.float32

    # ---- fused embedding gather: one-hot @ table (MXU is idle at these shapes) ------
    ids = ids_ref[...]                                                    # (T*B, 1) int32
    onehot = (ids == lax.broadcasted_iota(jnp.int32, (TB, V), 1)).astype(f32)
    X = jnp.dot(onehot, emb_ref[...], preferred_element_type=f32)         # (T*B, E)

    # ---- hoisted per-gate input projections for the backward recurrence -------------
    # (biases for r/z already include b_ih + b_hh; b_in stays separate from b_hn)
    gi_r = (jnp.dot(X, wir_b_ref[...], preferred_element_type=f32)
            + br_b_ref[...]).reshape(T, B, H)
    gi_z = (jnp.dot(X, wiz_b_ref[...], preferred_element_type=f32)
            + bz_b_ref[...]).reshape(T, B, H)
    gi_n = (jnp.dot(X, win_b_ref[...], preferred_element_type=f32)
            + bin_b_ref[...]).reshape(T, B, H)

    # ---- forward-direction output at t=0 : one GRU step from h = 0 on token 0 -------
    x0 = X[0:B, :]                                                        # rows of t=0
    r_f = jax.nn.sigmoid(jnp.dot(x0, wir_f_ref[...], preferred_element_type=f32)
                         + br_f_ref[...])
    z_f = jax.nn.sigmoid(jnp.dot(x0, wiz_f_ref[...], preferred_element_type=f32)
                         + bz_f_ref[...])
    n_f = jnp.tanh(jnp.dot(x0, win_f_ref[...], preferred_element_type=f32)
                   + bin_f_ref[...] + r_f * bhn_f_ref[...])
    h_f = (1.0 - z_f) * n_f                                               # h0 = 0

    # ---- backward-direction output at t=0 : masked recurrence, t = T-1 .. 0 ---------
    lens_col = lens_ref[...]                                              # (B, 1) int32
    whr = whr_b_ref[...]
    whz = whz_b_ref[...]
    whn = whn_b_ref[...]
    bhn = bhn_b_ref[...]
    h = jnp.zeros((B, H), f32)
    for t in range(T - 1, -1, -1):          # fully unrolled: T is static and small
        gh_r = jnp.dot(h, whr, preferred_element_type=f32)
        gh_z = jnp.dot(h, whz, preferred_element_type=f32)
        gh_n = jnp.dot(h, whn, preferred_element_type=f32) + bhn
        r = jax.nn.sigmoid(gi_r[t] + gh_r)
        z = jax.nn.sigmoid(gi_z[t] + gh_z)
        n = jnp.tanh(gi_n[t] + r * gh_n)
        h_new = (1.0 - z) * n + z * h
        # hidden state only advances where t < len (pack_padded_sequence semantics)
        h = jnp.where(lens_col > t, h_new, h)

    # ---- h_n[0] = concat(fwd@t0, bwd@t0);  L2-normalize;  utility_readout -----------
    emb = jnp.concatenate([h_f, h], axis=1)                               # (B, 2H)
    emb = emb * lax.rsqrt(jnp.sum(emb * emb, axis=1, keepdims=True))      # no eps (= ref)

    hid = jnp.maximum(
        jnp.dot(emb, w1_ref[...], preferred_element_type=f32) + b1_ref[...], 0.0)
    out_ref[...] = jnp.dot(hid, w2_ref[...], preferred_element_type=f32) + b2_ref[...]


def _split_gates(w):
    """PyTorch packed (3H, In) [r, z, n] -> three (In, H) matrices."""
    H = w.shape[0] // 3
    return w[0:H].T, w[H:2 * H].T, w[2 * H:3 * H].T


def prepare_kernel_params(p):
    """One-time repack: PyTorch-layout params -> per-gate, (in, out), combined-bias layout."""
    H = p["weight_hh_l0"].shape[1]

    def direction(sfx):
        wir, wiz, win = _split_gates(p["weight_ih_l0" + sfx])
        whr, whz, whn = _split_gates(p["weight_hh_l0" + sfx])
        bih, bhh = p["bias_ih_l0" + sfx], p["bias_hh_l0" + sfx]
        return dict(
            wir=wir, wiz=wiz, win=win, whr=whr, whz=whz, whn=whn,
            br=(bih[0:H] + bhh[0:H]).reshape(1, H),           # r: b_ih + b_hh combined
            bz=(bih[H:2 * H] + bhh[H:2 * H]).reshape(1, H),   # z: b_ih + b_hh combined
            bin=bih[2 * H:3 * H].reshape(1, H),               # n: kept separate (r * (.+b_hn))
            bhn=bhh[2 * H:3 * H].reshape(1, H),
        )

    f, b = direction(""), direction("_reverse")
    return dict(
        embedding=p["embedding"],
        wir_f=f["wir"], wiz_f=f["wiz"], win_f=f["win"],
        br_f=f["br"], bz_f=f["bz"], bin_f=f["bin"], bhn_f=f["bhn"],
        wir_b=b["wir"], wiz_b=b["wiz"], win_b=b["win"],
        whr_b=b["whr"], whz_b=b["whz"], whn_b=b["whn"],
        br_b=b["br"], bz_b=b["bz"], bin_b=b["bin"], bhn_b=b["bhn"],
        w1=p["w1"].T, b1=p["b1"].reshape(1, -1),
        w2=p["w2"].T, b2=p["b2"].reshape(1, 1),
    )


@jax.jit
def gru_utility_forward(token_ids, lens, kp):
    """token_ids: (B, T) int32 char ids in [0, 128); lens: (B,) valid lengths (= len(s)+2)."""
    B, T = token_ids.shape
    # Only trivial int32 reshapes happen outside the kernel; the embedding gather,
    # mask, GRU and readout are all fused inside the single pallas_call.
    ids_tm = jnp.transpose(token_ids).reshape(T * B, 1).astype(jnp.int32)  # time-major flat
    lens_col = lens.reshape(B, 1).astype(jnp.int32)

    args = (ids_tm, lens_col, kp["embedding"],
            kp["wir_f"], kp["wiz_f"], kp["win_f"],
            kp["br_f"], kp["bz_f"], kp["bin_f"], kp["bhn_f"],
            kp["wir_b"], kp["wiz_b"], kp["win_b"],
            kp["whr_b"], kp["whz_b"], kp["whn_b"],
            kp["br_b"], kp["bz_b"], kp["bin_b"], kp["bhn_b"],
            kp["w1"], kp["b1"], kp["w2"], kp["b2"])

    vmem = pl.BlockSpec(memory_space=pltpu.MemorySpace.VMEM)
    out = pl.pallas_call(
        gru_utility_kernel,
        out_shape=jax.ShapeDtypeStruct((B, 1), jnp.float32),
        in_specs=[vmem] * len(args),
        out_specs=vmem,
    )(*args)
    return out[:, 0]                                           # .squeeze(-1)


def init_params(key, embedding_size=32, hidden_size=32, vocab=128):
    """Random params in PyTorch's native layout (gate order [r, z, n])."""
    E, H = embedding_size, hidden_size
    ks = jax.random.split(key, 13)
    bound = 1.0 / jnp.sqrt(jnp.float32(H))

    def u(k, shape):
        return jax.random.uniform(k, shape, jnp.float32, -bound, bound)

    return dict(
        embedding=jax.random.normal(ks[0], (vocab, E), jnp.float32),
        # nn.GRU(E, H, bidirectional=True, num_layers=1)
        weight_ih_l0=u(ks[1], (3 * H, E)), weight_hh_l0=u(ks[2], (3 * H, H)),
        bias_ih_l0=u(ks[3], (3 * H,)), bias_hh_l0=u(ks[4], (3 * H,)),
        weight_ih_l0_reverse=u(ks[5], (3 * H, E)), weight_hh_l0_reverse=u(ks[6], (3 * H, H)),
        bias_ih_l0_reverse=u(ks[7], (3 * H,)), bias_hh_l0_reverse=u(ks[8], (3 * H,)),
        # utility_readout: Linear(2H, H) -> ReLU -> Linear(H, 1), PyTorch (out, in) layout
        w1=u(ks[9], (H, 2 * H)), b1=u(ks[10], (H,)),
        w2=u(ks[11], (1, H)), b2=u(ks[12], (1,)),
    )


if __name__ == "__main__":
    key = jax.random.PRNGKey(0)
    pkey, tkey, lkey = jax.random.split(key, 3)

    E, H = 32, 32          # config.gru.embedding_size, config.gru.hidden_size
    B, T = 8, 16           # batch of strings, max (truncated) sequence length

    params = init_params(pkey, embedding_size=E, hidden_size=H)
    kparams = prepare_kernel_params(params)        # one-time weight repack (outside jit)

    # Simulated encode_batch output (char ids in [0, 128), bos/eos included in lens)
    token_ids = jax.random.randint(tkey, (B, T), 0, 128, jnp.int32)
    lens = jax.random.randint(lkey, (B,), 4, T + 1, jnp.int32)   # = len(s) + 2

    out = gru_utility_forward(token_ids, lens, kparams)
    jax.block_until_ready(out)
    assert out.shape == (B,) and out.dtype == jnp.float32
    assert bool(jnp.all(jnp.isfinite(out)))
    print("KERNEL_OK")
</pallas_src>

<mosaic_0001>
module attributes {stable_mosaic.version = 11 : i64} {
  func.func @gru_utility_kernel(%arg0: memref<128x1xi32, #tpu.memory_space<vmem>>, %arg1: memref<8x1xi32, #tpu.memory_space<vmem>>, %arg2: memref<128x32xf32, #tpu.memory_space<vmem>>, %arg3: memref<32x32xf32, #tpu.memory_space<vmem>>, %arg4: memref<32x32xf32, #tpu.memory_space<vmem>>, %arg5: memref<32x32xf32, #tpu.memory_space<vmem>>, %arg6: memref<1x32xf32, #tpu.memory_space<vmem>>, %arg7: memref<1x32xf32, #tpu.memory_space<vmem>>, %arg8: memref<1x32xf32, #tpu.memory_space<vmem>>, %arg9: memref<1x32xf32, #tpu.memory_space<vmem>>, %arg10: memref<32x32xf32, #tpu.memory_space<vmem>>, %arg11: memref<32x32xf32, #tpu.memory_space<vmem>>, %arg12: memref<32x32xf32, #tpu.memory_space<vmem>>, %arg13: memref<32x32xf32, #tpu.memory_space<vmem>>, %arg14: memref<32x32xf32, #tpu.memory_space<vmem>>, %arg15: memref<32x32xf32, #tpu.memory_space<vmem>>, %arg16: memref<1x32xf32, #tpu.memory_space<vmem>>, %arg17: memref<1x32xf32, #tpu.memory_space<vmem>>, %arg18: memref<1x32xf32, #tpu.memory_space<vmem>>, %arg19: memref<1x32xf32, #tpu.memory_space<vmem>>, %arg20: memref<64x32xf32, #tpu.memory_space<vmem>>, %arg21: memref<1x32xf32, #tpu.memory_space<vmem>>, %arg22: memref<32x1xf32, #tpu.memory_space<vmem>>, %arg23: memref<1x1xf32, #tpu.memory_space<vmem>>, %arg24: memref<8x1xf32, #tpu.memory_space<vmem>>) attributes {dimension_semantics = [], scalar_prefetch = 0 : i64, scratch_operands = 0 : i64, tpu.core_type = #tpu.core_type<tc>} {
    %c0 = arith.constant 0 : index
    %c0_0 = arith.constant 0 : index
    %0 = vector.load %arg0[%c0, %c0_0] : memref<128x1xi32, #tpu.memory_space<vmem>>, vector<128x1xi32>
    %1 = tpu.iota {dimensions = array<i32: 1>} : vector<128x128xi32>
    %2 = vector.broadcast %0 : vector<128x1xi32> to vector<128x128xi32>
    %3 = arith.cmpi eq, %2, %1 : vector<128x128xi32>
    %4 = arith.extui %3 : vector<128x128xi1> to vector<128x128xi32>
    %5 = arith.sitofp %4 : vector<128x128xi32> to vector<128x128xf32>
    %c0_1 = arith.constant 0 : index
    %c0_2 = arith.constant 0 : index
    %6 = vector.load %arg2[%c0_1, %c0_2] : memref<128x32xf32, #tpu.memory_space<vmem>>, vector<128x32xf32>
    %cst = arith.constant dense<0.000000e+00> : vector<128x32xf32>
    %7 = tpu.matmul %5, %6, %cst {dimension_numbers = #tpu.dot_dimension_numbers<[1], [0], [0], [1], [0, 0, 1, 1], [], []>} : vector<128x128xf32>, vector<128x32xf32>, vector<128x32xf32> -> vector<128x32xf32>
    %c0_3 = arith.constant 0 : index
    %c0_4 = arith.constant 0 : index
    %8 = vector.load %arg10[%c0_3, %c0_4] : memref<32x32xf32, #tpu.memory_space<vmem>>, vector<32x32xf32>
    %cst_5 = arith.constant dense<0.000000e+00> : vector<128x32xf32>
    %9 = tpu.matmul %7, %8, %cst_5 {dimension_numbers = #tpu.dot_dimension_numbers<[1], [0], [0], [1], [0, 0, 1, 1], [], []>} : vector<128x32xf32>, vector<32x32xf32>, vector<128x32xf32> -> vector<128x32xf32>
    %c0_6 = arith.constant 0 : index
    %c0_7 = arith.constant 0 : index
    %10 = vector.load %arg16[%c0_6, %c0_7] : memref<1x32xf32, #tpu.memory_space<vmem>>, vector<1x32xf32>
    %11 = vector.broadcast %10 : vector<1x32xf32> to vector<128x32xf32>
    %12 = arith.addf %9, %11 : vector<128x32xf32>
    %13 = vector.shape_cast %12 : vector<128x32xf32> to vector<16x8x32xf32>
    %c0_8 = arith.constant 0 : index
    %c0_9 = arith.constant 0 : index
    %14 = vector.load %arg11[%c0_8, %c0_9] : memref<32x32xf32, #tpu.memory_space<vmem>>, vector<32x32xf32>
    %cst_10 = arith.constant dense<0.000000e+00> : vector<128x32xf32>
    %15 = tpu.matmul %7, %14, %cst_10 {dimension_numbers = #tpu.dot_dimension_numbers<[1], [0], [0], [1], [0, 0, 1, 1], [], []>} : vector<128x32xf32>, vector<32x32xf32>, vector<128x32xf32> -> vector<128x32xf32>
    %c0_11 = arith.constant 0 : index
    %c0_12 = arith.constant 0 : index
    %16 = vector.load %arg17[%c0_11, %c0_12] : memref<1x32xf32, #tpu.memory_space<vmem>>, vector<1x32xf32>
    %17 = vector.broadcast %16 : vector<1x32xf32> to vector<128x32xf32>
    %18 = arith.addf %15, %17 : vector<128x32xf32>
    %19 = vector.shape_cast %18 : vector<128x32xf32> to vector<16x8x32xf32>
    %c0_13 = arith.constant 0 : index
    %c0_14 = arith.constant 0 : index
    %20 = vector.load %arg12[%c0_13, %c0_14] : memref<32x32xf32, #tpu.memory_space<vmem>>, vector<32x32xf32>
    %cst_15 = arith.constant dense<0.000000e+00> : vector<128x32xf32>
    %21 = tpu.matmul %7, %20, %cst_15 {dimension_numbers = #tpu.dot_dimension_numbers<[1], [0], [0], [1], [0, 0, 1, 1], [], []>} : vector<128x32xf32>, vector<32x32xf32>, vector<128x32xf32> -> vector<128x32xf32>
    %c0_16 = arith.constant 0 : index
    %c0_17 = arith.constant 0 : index
    %22 = vector.load %arg18[%c0_16, %c0_17] : memref<1x32xf32, #tpu.memory_space<vmem>>, vector<1x32xf32>
    %23 = vector.broadcast %22 : vector<1x32xf32> to vector<128x32xf32>
    %24 = arith.addf %21, %23 : vector<128x32xf32>
    %25 = vector.shape_cast %24 : vector<128x32xf32> to vector<16x8x32xf32>
    %26 = vector.extract_strided_slice %7 {offsets = [0, 0], sizes = [8, 32], strides = [1, 1]} : vector<128x32xf32> to vector<8x32xf32>
    %c0_18 = arith.constant 0 : index
    %c0_19 = arith.constant 0 : index
    %27 = vector.load %arg3[%c0_18, %c0_19] : memref<32x32xf32, #tpu.memory_space<vmem>>, vector<32x32xf32>
    %cst_20 = arith.constant dense<0.000000e+00> : vector<8x32xf32>
    %28 = tpu.matmul %26, %27, %cst_20 {dimension_numbers = #tpu.dot_dimension_numbers<[1], [0], [0], [1], [0, 0, 1, 1], [], []>} : vector<8x32xf32>, vector<32x32xf32>, vector<8x32xf32> -> vector<8x32xf32>
    %c0_21 = arith.constant 0 : index
    %c0_22 = arith.constant 0 : index
    %29 = vector.load %arg6[%c0_21, %c0_22] : memref<1x32xf32, #tpu.memory_space<vmem>>, vector<1x32xf32>
    %30 = vector.broadcast %29 : vector<1x32xf32> to vector<8x32xf32>
    %31 = arith.addf %28, %30 : vector<8x32xf32>
    %32 = arith.negf %31 : vector<8x32xf32>
    %33 = math.exp %32 : vector<8x32xf32>
    %cst_23 = arith.constant 1.000000e+00 : f32
    %34 = vector.broadcast %cst_23 : f32 to vector<8x32xf32>
    %35 = arith.addf %34, %33 : vector<8x32xf32>
    %36 = arith.divf %34, %35 : vector<8x32xf32>
    %c0_24 = arith.constant 0 : index
    %c0_25 = arith.constant 0 : index
    %37 = vector.load %arg4[%c0_24, %c0_25] : memref<32x32xf32, #tpu.memory_space<vmem>>, vector<32x32xf32>
    %cst_26 = arith.constant dense<0.000000e+00> : vector<8x32xf32>
    %38 = tpu.matmul %26, %37, %cst_26 {dimension_numbers = #tpu.dot_dimension_numbers<[1], [0], [0], [1], [0, 0, 1, 1], [], []>} : vector<8x32xf32>, vector<32x32xf32>, vector<8x32xf32> -> vector<8x32xf32>
    %c0_27 = arith.constant 0 : index
    %c0_28 = arith.constant 0 : index
    %39 = vector.load %arg7[%c0_27, %c0_28] : memref<1x32xf32, #tpu.memory_space<vmem>>, vector<1x32xf32>
    %40 = vector.broadcast %39 : vector<1x32xf32> to vector<8x32xf32>
    %41 = arith.addf %38, %40 : vector<8x32xf32>
    %42 = arith.negf %41 : vector<8x32xf32>
    %43 = math.exp %42 : vector<8x32xf32>
    %cst_29 = arith.constant 1.000000e+00 : f32
    %44 = vector.broadcast %cst_29 : f32 to vector<8x32xf32>
    %45 = arith.addf %44, %43 : vector<8x32xf32>
    %46 = arith.divf %44, %45 : vector<8x32xf32>
    %c0_30 = arith.constant 0 : index
    %c0_31 = arith.constant 0 : index
    %47 = vector.load %arg5[%c0_30, %c0_31] : memref<32x32xf32, #tpu.memory_space<vmem>>, vector<32x32xf32>
    %cst_32 = arith.constant dense<0.000000e+00> : vector<8x32xf32>
    %48 = tpu.matmul %26, %47, %cst_32 {dimension_numbers = #tpu.dot_dimension_numbers<[1], [0], [0], [1], [0, 0, 1, 1], [], []>} : vector<8x32xf32>, vector<32x32xf32>, vector<8x32xf32> -> vector<8x32xf32>
    %c0_33 = arith.constant 0 : index
    %c0_34 = arith.constant 0 : index
    %49 = vector.load %arg8[%c0_33, %c0_34] : memref<1x32xf32, #tpu.memory_space<vmem>>, vector<1x32xf32>
    %50 = vector.broadcast %49 : vector<1x32xf32> to vector<8x32xf32>
    %51 = arith.addf %48, %50 : vector<8x32xf32>
    %c0_35 = arith.constant 0 : index
    %c0_36 = arith.constant 0 : index
    %52 = vector.load %arg9[%c0_35, %c0_36] : memref<1x32xf32, #tpu.memory_space<vmem>>, vector<1x32xf32>
    %53 = vector.broadcast %52 : vector<1x32xf32> to vector<8x32xf32>
    %54 = arith.mulf %36, %53 : vector<8x32xf32>
    %55 = arith.addf %51, %54 : vector<8x32xf32>
    %56 = math.tanh %55 : vector<8x32xf32>
    %cst_37 = arith.constant 1.000000e+00 : f32
    %57 = vector.broadcast %cst_37 : f32 to vector<8x32xf32>
    %58 = arith.subf %57, %46 : vector<8x32xf32>
    %59 = arith.mulf %58, %56 : vector<8x32xf32>
    %c0_38 = arith.constant 0 : index
    %c0_39 = arith.constant 0 : index
    %60 = vector.load %arg1[%c0_38, %c0_39] : memref<8x1xi32, #tpu.memory_space<vmem>>, vector<8x1xi32>
    %c0_40 = arith.constant 0 : index
    %c0_41 = arith.constant 0 : index
    %61 = vector.load %arg13[%c0_40, %c0_41] : memref<32x32xf32, #tpu.memory_space<vmem>>, vector<32x32xf32>
    %c0_42 = arith.constant 0 : index
    %c0_43 = arith.constant 0 : index
    %62 = vector.load %arg14[%c0_42, %c0_43] : memref<32x32xf32, #tpu.memory_space<vmem>>, vector<32x32xf32>
    %c0_44 = arith.constant 0 : index
    %c0_45 = arith.constant 0 : index
    %63 = vector.load %arg15[%c0_44, %c0_45] : memref<32x32xf32, #tpu.memory_space<vmem>>, vector<32x32xf32>
    %c0_46 = arith.constant 0 : index
    %c0_47 = arith.constant 0 : index
    %64 = vector.load %arg19[%c0_46, %c0_47] : memref<1x32xf32, #tpu.memory_space<vmem>>, vector<1x32xf32>
    %cst_48 = arith.constant 0.000000e+00 : f32
    %65 = vector.broadcast %cst_48 : f32 to vector<8x32xf32>
    %cst_49 = arith.constant dense<0.000000e+00> : vector<8x32xf32>
    %66 = tpu.matmul %65, %61, %cst_49 {dimension_numbers = #tpu.dot_dimension_numbers<[1], [0], [0], [1], [0, 0, 1, 1], [], []>} : vector<8x32xf32>, vector<32x32xf32>, vector<8x32xf32> -> vector<8x32xf32>
    %cst_50 = arith.constant dense<0.000000e+00> : vector<8x32xf32>
    %67 = tpu.matmul %65, %62, %cst_50 {dimension_numbers = #tpu.dot_dimension_numbers<[1], [0], [0], [1], [0, 0, 1, 1], [], []>} : vector<8x32xf32>, vector<32x32xf32>, vector<8x32xf32> -> vector<8x32xf32>
    %cst_51 = arith.constant dense<0.000000e+00> : vector<8x32xf32>
    %68 = tpu.matmul %65, %63, %cst_51 {dimension_numbers = #tpu.dot_dimension_numbers<[1], [0], [0], [1], [0, 0, 1, 1], [], []>} : vector<8x32xf32>, vector<32x32xf32>, vector<8x32xf32> -> vector<8x32xf32>
    %69 = vector.broadcast %64 : vector<1x32xf32> to vector<8x32xf32>
    %70 = arith.addf %68, %69 : vector<8x32xf32>
    %71 = vector.extract_strided_slice %13 {offsets = [15, 0, 0], sizes = [1, 8, 32], strides = [1, 1, 1]} : vector<16x8x32xf32> to vector<1x8x32xf32>
    %72 = vector.shape_cast %71 : vector<1x8x32xf32> to vector<8x32xf32>
    %73 = arith.addf %72, %66 : vector<8x32xf32>
    %74 = arith.negf %73 : vector<8x32xf32>
    %75 = math.exp %74 : vector<8x32xf32>
    %cst_52 = arith.constant 1.000000e+00 : f32
    %76 = vector.broadcast %cst_52 : f32 to vector<8x32xf32>
    %77 = arith.addf %76, %75 : vector<8x32xf32>
    %78 = arith.divf %76, %77 : vector<8x32xf32>
    %79 = vector.extract_strided_slice %19 {offsets = [15, 0, 0], sizes = [1, 8, 32], strides = [1, 1, 1]} : vector<16x8x32xf32> to vector<1x8x32xf32>
    %80 = vector.shape_cast %79 : vector<1x8x32xf32> to vector<8x32xf32>
    %81 = arith.addf %80, %67 : vector<8x32xf32>
    %82 = arith.negf %81 : vector<8x32xf32>
    %83 = math.exp %82 : vector<8x32xf32>
    %cst_53 = arith.constant 1.000000e+00 : f32
    %84 = vector.broadcast %cst_53 : f32 to vector<8x32xf32>
    %85 = arith.addf %84, %83 : vector<8x32xf32>
    %86 = arith.divf %84, %85 : vector<8x32xf32>
    %87 = vector.extract_strided_slice %25 {offsets = [15, 0, 0], sizes = [1, 8, 32], strides = [1, 1, 1]} : vector<16x8x32xf32> to vector<1x8x32xf32>
    %88 = vector.shape_cast %87 : vector<1x8x32xf32> to vector<8x32xf32>
    %89 = arith.mulf %78, %70 : vector<8x32xf32>
    %90 = arith.addf %88, %89 : vector<8x32xf32>
    %91 = math.tanh %90 : vector<8x32xf32>
    %cst_54 = arith.constant 1.000000e+00 : f32
    %92 = vector.broadcast %cst_54 : f32 to vector<8x32xf32>
    %93 = arith.subf %92, %86 : vector<8x32xf32>
    %94 = arith.mulf %93, %91 : vector<8x32xf32>
    %95 = arith.mulf %86, %65 : vector<8x32xf32>
    %96 = arith.addf %94, %95 : vector<8x32xf32>
    %c15_i32 = arith.constant 15 : i32
    %97 = vector.broadcast %c15_i32 : i32 to vector<8x1xi32>
    %98 = arith.cmpi sgt, %60, %97 : vector<8x1xi32>
    %99 = vector.shape_cast %98 : vector<8x1xi1> to vector<8x1xi1>
    %100 = vector.broadcast %99 : vector<8x1xi1> to vector<8x32xi1>
    %101 = arith.select %100, %96, %65 : vector<8x32xi1>, vector<8x32xf32>
    %cst_55 = arith.constant dense<0.000000e+00> : vector<8x32xf32>
    %102 = tpu.matmul %101, %61, %cst_55 {dimension_numbers = #tpu.dot_dimension_numbers<[1], [0], [0], [1], [0, 0, 1, 1], [], []>} : vector<8x32xf32>, vector<32x32xf32>, vector<8x32xf32> -> vector<8x32xf32>
    %cst_56 = arith.constant dense<0.000000e+00> : vector<8x32xf32>
    %103 = tpu.matmul %101, %62, %cst_56 {dimension_numbers = #tpu.dot_dimension_numbers<[1], [0], [0], [1], [0, 0, 1, 1], [], []>} : vector<8x32xf32>, vector<32x32xf32>, vector<8x32xf32> -> vector<8x32xf32>
    %cst_57 = arith.constant dense<0.000000e+00> : vector<8x32xf32>
    %104 = tpu.matmul %101, %63, %cst_57 {dimension_numbers = #tpu.dot_dimension_numbers<[1], [0], [0], [1], [0, 0, 1, 1], [], []>} : vector<8x32xf32>, vector<32x32xf32>, vector<8x32xf32> -> vector<8x32xf32>
    %105 = vector.broadcast %64 : vector<1x32xf32> to vector<8x32xf32>
    %106 = arith.addf %104, %105 : vector<8x32xf32>
    %107 = vector.extract_strided_slice %13 {offsets = [14, 0, 0], sizes = [1, 8, 32], strides = [1, 1, 1]} : vector<16x8x32xf32> to vector<1x8x32xf32>
    %108 = vector.shape_cast %107 : vector<1x8x32xf32> to vector<8x32xf32>
    %109 = arith.addf %108, %102 : vector<8x32xf32>
    %110 = arith.negf %109 : vector<8x32xf32>
    %111 = math.exp %110 : vector<8x32xf32>
    %cst_58 = arith.constant 1.000000e+00 : f32
    %112 = vector.broadcast %cst_58 : f32 to vector<8x32xf32>
    %113 = arith.addf %112, %111 : vector<8x32xf32>
    %114 = arith.divf %112, %113 : vector<8x32xf32>
    %115 = vector.extract_strided_slice %19 {offsets = [14, 0, 0], sizes = [1, 8, 32], strides = [1, 1, 1]} : vector<16x8x32xf32> to vector<1x8x32xf32>
    %116 = vector.shape_cast %115 : vector<1x8x32xf32> to vector<8x32xf32>
    %117 = arith.addf %116, %103 : vector<8x32xf32>
    %118 = arith.negf %117 : vector<8x32xf32>
    %119 = math.exp %118 : vector<8x32xf32>
    %cst_59 = arith.constant 1.000000e+00 : f32
    %120 = vector.broadcast %cst_59 : f32 to vector<8x32xf32>
    %121 = arith.addf %120, %119 : vector<8x32xf32>
    %122 = arith.divf %120, %121 : vector<8x32xf32>
    %123 = vector.extract_strided_slice %25 {offsets = [14, 0, 0], sizes = [1, 8, 32], strides = [1, 1, 1]} : vector<16x8x32xf32> to vector<1x8x32xf32>
    %124 = vector.shape_cast %123 : vector<1x8x32xf32> to vector<8x32xf32>
    %125 = arith.mulf %114, %106 : vector<8x32xf32>
    %126 = arith.addf %124, %125 : vector<8x32xf32>
    %127 = math.tanh %126 : vector<8x32xf32>
    %cst_60 = arith.constant 1.000000e+00 : f32
    %128 = vector.broadcast %cst_60 : f32 to vector<8x32xf32>
    %129 = arith.subf %128, %122 : vector<8x32xf32>
    %130 = arith.mulf %129, %127 : vector<8x32xf32>
    %131 = arith.mulf %122, %101 : vector<8x32xf32>
    %132 = arith.addf %130, %131 : vector<8x32xf32>
    %c14_i32 = arith.constant 14 : i32
    %133 = vector.broadcast %c14_i32 : i32 to vector<8x1xi32>
    %134 = arith.cmpi sgt, %60, %133 : vector<8x1xi32>
    %135 = vector.shape_cast %134 : vector<8x1xi1> to vector<8x1xi1>
    %136 = vector.broadcast %135 : vector<8x1xi1> to vector<8x32xi1>
    %137 = arith.select %136, %132, %101 : vector<8x32xi1>, vector<8x32xf32>
    %cst_61 = arith.constant dense<0.000000e+00> : vector<8x32xf32>
    %138 = tpu.matmul %137, %61, %cst_61 {dimension_numbers = #tpu.dot_dimension_numbers<[1], [0], [0], [1], [0, 0, 1, 1], [], []>} : vector<8x32xf32>, vector<32x32xf32>, vector<8x32xf32> -> vector<8x32xf32>
    %cst_62 = arith.constant dense<0.000000e+00> : vector<8x32xf32>
    %139 = tpu.matmul %137, %62, %cst_62 {dimension_numbers = #tpu.dot_dimension_numbers<[1], [0], [0], [1], [0, 0, 1, 1], [], []>} : vector<8x32xf32>, vector<32x32xf32>, vector<8x32xf32> -> vector<8x32xf32>
    %cst_63 = arith.constant dense<0.000000e+00> : vector<8x32xf32>
    %140 = tpu.matmul %137, %63, %cst_63 {dimension_numbers = #tpu.dot_dimension_numbers<[1], [0], [0], [1], [0, 0, 1, 1], [], []>} : vector<8x32xf32>, vector<32x32xf32>, vector<8x32xf32> -> vector<8x32xf32>
    %141 = vector.broadcast %64 : vector<1x32xf32> to vector<8x32xf32>
    %142 = arith.addf %140, %141 : vector<8x32xf32>
    %143 = vector.extract_strided_slice %13 {offsets = [13, 0, 0], sizes = [1, 8, 32], strides = [1, 1, 1]} : vector<16x8x32xf32> to vector<1x8x32xf32>
    %144 = vector.shape_cast %143 : vector<1x8x32xf32> to vector<8x32xf32>
    %145 = arith.addf %144, %138 : vector<8x32xf32>
    %146 = arith.negf %145 : vector<8x32xf32>
    %147 = math.exp %146 : vector<8x32xf32>
    %cst_64 = arith.constant 1.000000e+00 : f32
    %148 = vector.broadcast %cst_64 : f32 to vector<8x32xf32>
    %149 = arith.addf %148, %147 : vector<8x32xf32>
    %150 = arith.divf %148, %149 : vector<8x32xf32>
    %151 = vector.extract_strided_slice %19 {offsets = [13, 0, 0], sizes = [1, 8, 32], strides = [1, 1, 1]} : vector<16x8x32xf32> to vector<1x8x32xf32>
    %152 = vector.shape_cast %151 : vector<1x8x32xf32> to vector<8x32xf32>
    %153 = arith.addf %152, %139 : vector<8x32xf32>
    %154 = arith.negf %153 : vector<8x32xf32>
    %155 = math.exp %154 : vector<8x32xf32>
    %cst_65 = arith.constant 1.000000e+00 : f32
    %156 = vector.broadcast %cst_65 : f32 to vector<8x32xf32>
    %157 = arith.addf %156, %155 : vector<8x32xf32>
    %158 = arith.divf %156, %157 : vector<8x32xf32>
    %159 = vector.extract_strided_slice %25 {offsets = [13, 0, 0], sizes = [1, 8, 32], strides = [1, 1, 1]} : vector<16x8x32xf32> to vector<1x8x32xf32>
    %160 = vector.shape_cast %159 : vector<1x8x32xf32> to vector<8x32xf32>
    %161 = arith.mulf %150, %142 : vector<8x32xf32>
    %162 = arith.addf %160, %161 : vector<8x32xf32>
    %163 = math.tanh %162 : vector<8x32xf32>
    %cst_66 = arith.constant 1.000000e+00 : f32
    %164 = vector.broadcast %cst_66 : f32 to vector<8x32xf32>
    %165 = arith.subf %164, %158 : vector<8x32xf32>
    %166 = arith.mulf %165, %163 : vector<8x32xf32>
    %167 = arith.mulf %158, %137 : vector<8x32xf32>
    %168 = arith.addf %166, %167 : vector<8x32xf32>
    %c13_i32 = arith.constant 13 : i32
    %169 = vector.broadcast %c13_i32 : i32 to vector<8x1xi32>
    %170 = arith.cmpi sgt, %60, %169 : vector<8x1xi32>
    %171 = vector.shape_cast %170 : vector<8x1xi1> to vector<8x1xi1>
    %172 = vector.broadcast %171 : vector<8x1xi1> to vector<8x32xi1>
    %173 = arith.select %172, %168, %137 : vector<8x32xi1>, vector<8x32xf32>
    %cst_67 = arith.constant dense<0.000000e+00> : vector<8x32xf32>
    %174 = tpu.matmul %173, %61, %cst_67 {dimension_numbers = #tpu.dot_dimension_numbers<[1], [0], [0], [1], [0, 0, 1, 1], [], []>} : vector<8x32xf32>, vector<32x32xf32>, vector<8x32xf32> -> vector<8x32xf32>
    %cst_68 = arith.constant dense<0.000000e+00> : vector<8x32xf32>
    %175 = tpu.matmul %173, %62, %cst_68 {dimension_numbers = #tpu.dot_dimension_numbers<[1], [0], [0], [1], [0, 0, 1, 1], [], []>} : vector<8x32xf32>, vector<32x32xf32>, vector<8x32xf32> -> vector<8x32xf32>
    %cst_69 = arith.constant dense<0.000000e+00> : vector<8x32xf32>
    %176 = tpu.matmul %173, %63, %cst_69 {dimension_numbers = #tpu.dot_dimension_numbers<[1], [0], [0], [1], [0, 0, 1, 1], [], []>} : vector<8x32xf32>, vector<32x32xf32>, vector<8x32xf32> -> vector<8x32xf32>
    %177 = vector.broadcast %64 : vector<1x32xf32> to vector<8x32xf32>
    %178 = arith.addf %176, %177 : vector<8x32xf32>
    %179 = vector.extract_strided_slice %13 {offsets = [12, 0, 0], sizes = [1, 8, 32], strides = [1, 1, 1]} : vector<16x8x32xf32> to vector<1x8x32xf32>
    %180 = vector.shape_cast %179 : vector<1x8x32xf32> to vector<8x32xf32>
    %181 = arith.addf %180, %174 : vector<8x32xf32>
    %182 = arith.negf %181 : vector<8x32xf32>
    %183 = math.exp %182 : vector<8x32xf32>
    %cst_70 = arith.constant 1.000000e+00 : f32
    %184 = vector.broadcast %cst_70 : f32 to vector<8x32xf32>
    %185 = arith.addf %184, %183 : vector<8x32xf32>
    %186 = arith.divf %184, %185 : vector<8x32xf32>
    %187 = vector.extract_strided_slice %19 {offsets = [12, 0, 0], sizes = [1, 8, 32], strides = [1, 1, 1]} : vector<16x8x32xf32> to vector<1x8x32xf32>
    %188 = vector.shape_cast %187 : vector<1x8x32xf32> to vector<8x32xf32>
    %189 = arith.addf %188, %175 : vector<8x32xf32>
    %190 = arith.negf %189 : vector<8x32xf32>
    %191 = math.exp %190 : vector<8x32xf32>
    %cst_71 = arith.constant 1.000000e+00 : f32
    %192 = vector.broadcast %cst_71 : f32 to vector<8x32xf32>
    %193 = arith.addf %192, %191 : vector<8x32xf32>
    %194 = arith.divf %192, %193 : vector<8x32xf32>
    %195 = vector.extract_strided_slice %25 {offsets = [12, 0, 0], sizes = [1, 8, 32], strides = [1, 1, 1]} : vector<16x8x32xf32> to vector<1x8x32xf32>
    %196 = vector.shape_cast %195 : vector<1x8x32xf32> to vector<8x32xf32>
    %197 = arith.mulf %186, %178 : vector<8x32xf32>
    %198 = arith.addf %196, %197 : vector<8x32xf32>
    %199 = math.tanh %198 : vector<8x32xf32>
    %cst_72 = arith.constant 1.000000e+00 : f32
    %200 = vector.broadcast %cst_72 : f32 to vector<8x32xf32>
    %201 = arith.subf %200, %194 : vector<8x32xf32>
    %202 = arith.mulf %201, %199 : vector<8x32xf32>
    %203 = arith.mulf %194, %173 : vector<8x32xf32>
    %204 = arith.addf %202, %203 : vector<8x32xf32>
    %c12_i32 = arith.constant 12 : i32
    %205 = vector.broadcast %c12_i32 : i32 to vector<8x1xi32>
    %206 = arith.cmpi sgt, %60, %205 : vector<8x1xi32>
    %207 = vector.shape_cast %206 : vector<8x1xi1> to vector<8x1xi1>
    %208 = vector.broadcast %207 : vector<8x1xi1> to vector<8x32xi1>
    %209 = arith.select %208, %204, %173 : vector<8x32xi1>, vector<8x32xf32>
    %cst_73 = arith.constant dense<0.000000e+00> : vector<8x32xf32>
    %210 = tpu.matmul %209, %61, %cst_73 {dimension_numbers = #tpu.dot_dimension_numbers<[1], [0], [0], [1], [0, 0, 1, 1], [], []>} : vector<8x32xf32>, vector<32x32xf32>, vector<8x32xf32> -> vector<8x32xf32>
    %cst_74 = arith.constant dense<0.000000e+00> : vector<8x32xf32>
    %211 = tpu.matmul %209, %62, %cst_74 {dimension_numbers = #tpu.dot_dimension_numbers<[1], [0], [0], [1], [0, 0, 1, 1], [], []>} : vector<8x32xf32>, vector<32x32xf32>, vector<8x32xf32> -> vector<8x32xf32>
    %cst_75 = arith.constant dense<0.000000e+00> : vector<8x32xf32>
    %212 = tpu.matmul %209, %63, %cst_75 {dimension_numbers = #tpu.dot_dimension_numbers<[1], [0], [0], [1], [0, 0, 1, 1], [], []>} : vector<8x32xf32>, vector<32x32xf32>, vector<8x32xf32> -> vector<8x32xf32>
    %213 = vector.broadcast %64 : vector<1x32xf32> to vector<8x32xf32>
    %214 = arith.addf %212, %213 : vector<8x32xf32>
    %215 = vector.extract_strided_slice %13 {offsets = [11, 0, 0], sizes = [1, 8, 32], strides = [1, 1, 1]} : vector<16x8x32xf32> to vector<1x8x32xf32>
    %216 = vector.shape_cast %215 : vector<1x8x32xf32> to vector<8x32xf32>
    %217 = arith.addf %216, %210 : vector<8x32xf32>
    %218 = arith.negf %217 : vector<8x32xf32>
    %219 = math.exp %218 : vector<8x32xf32>
    %cst_76 = arith.constant 1.000000e+00 : f32
    %220 = vector.broadcast %cst_76 : f32 to vector<8x32xf32>
    %221 = arith.addf %220, %219 : vector<8x32xf32>
    %222 = arith.divf %220, %221 : vector<8x32xf32>
    %223 = vector.extract_strided_slice %19 {offsets = [11, 0, 0], sizes = [1, 8, 32], strides = [1, 1, 1]} : vector<16x8x32xf32> to vector<1x8x32xf32>
    %224 = vector.shape_cast %223 : vector<1x8x32xf32> to vector<8x32xf32>
    %225 = arith.addf %224, %211 : vector<8x32xf32>
    %226 = arith.negf %225 : vector<8x32xf32>
    %227 = math.exp %226 : vector<8x32xf32>
    %cst_77 = arith.constant 1.000000e+00 : f32
    %228 = vector.broadcast %cst_77 : f32 to vector<8x32xf32>
    %229 = arith.addf %228, %227 : vector<8x32xf32>
    %230 = arith.divf %228, %229 : vector<8x32xf32>
    %231 = vector.extract_strided_slice %25 {offsets = [11, 0, 0], sizes = [1, 8, 32], strides = [1, 1, 1]} : vector<16x8x32xf32> to vector<1x8x32xf32>
    %232 = vector.shape_cast %231 : vector<1x8x32xf32> to vector<8x32xf32>
    %233 = arith.mulf %222, %214 : vector<8x32xf32>
    %234 = arith.addf %232, %233 : vector<8x32xf32>
    %235 = math.tanh %234 : vector<8x32xf32>
    %cst_78 = arith.constant 1.000000e+00 : f32
    %236 = vector.broadcast %cst_78 : f32 to vector<8x32xf32>
    %237 = arith.subf %236, %230 : vector<8x32xf32>
    %238 = arith.mulf %237, %235 : vector<8x32xf32>
    %239 = arith.mulf %230, %209 : vector<8x32xf32>
    %240 = arith.addf %238, %239 : vector<8x32xf32>
    %c11_i32 = arith.constant 11 : i32
    %241 = vector.broadcast %c11_i32 : i32 to vector<8x1xi32>
    %242 = arith.cmpi sgt, %60, %241 : vector<8x1xi32>
    %243 = vector.shape_cast %242 : vector<8x1xi1> to vector<8x1xi1>
    %244 = vector.broadcast %243 : vector<8x1xi1> to vector<8x32xi1>
    %245 = arith.select %244, %240, %209 : vector<8x32xi1>, vector<8x32xf32>
    %cst_79 = arith.constant dense<0.000000e+00> : vector<8x32xf32>
    %246 = tpu.matmul %245, %61, %cst_79 {dimension_numbers = #tpu.dot_dimension_numbers<[1], [0], [0], [1], [0, 0, 1, 1], [], []>} : vector<8x32xf32>, vector<32x32xf32>, vector<8x32xf32> -> vector<8x32xf32>
    %cst_80 = arith.constant dense<0.000000e+00> : vector<8x32xf32>
    %247 = tpu.matmul %245, %62, %cst_80 {dimension_numbers = #tpu.dot_dimension_numbers<[1], [0], [0], [1], [0, 0, 1, 1], [], []>} : vector<8x32xf32>, vector<32x32xf32>, vector<8x32xf32> -> vector<8x32xf32>
    %cst_81 = arith.constant dense<0.000000e+00> : vector<8x32xf32>
    %248 = tpu.matmul %245, %63, %cst_81 {dimension_numbers = #tpu.dot_dimension_numbers<[1], [0], [0], [1], [0, 0, 1, 1], [], []>} : vector<8x32xf32>, vector<32x32xf32>, vector<8x32xf32> -> vector<8x32xf32>
    %249 = vector.broadcast %64 : vector<1x32xf32> to vector<8x32xf32>
    %250 = arith.addf %248, %249 : vector<8x32xf32>
    %251 = vector.extract_strided_slice %13 {offsets = [10, 0, 0], sizes = [1, 8, 32], strides = [1, 1, 1]} : vector<16x8x32xf32> to vector<1x8x32xf32>
    %252 = vector.shape_cast %251 : vector<1x8x32xf32> to vector<8x32xf32>
    %253 = arith.addf %252, %246 : vector<8x32xf32>
    %254 = arith.negf %253 : vector<8x32xf32>
    %255 = math.exp %254 : vector<8x32xf32>
    %cst_82 = arith.constant 1.000000e+00 : f32
    %256 = vector.broadcast %cst_82 : f32 to vector<8x32xf32>
    %257 = arith.addf %256, %255 : vector<8x32xf32>
    %258 = arith.divf %256, %257 : vector<8x32xf32>
    %259 = vector.extract_strided_slice %19 {offsets = [10, 0, 0], sizes = [1, 8, 32], strides = [1, 1, 1]} : vector<16x8x32xf32> to vector<1x8x32xf32>
    %260 = vector.shape_cast %259 : vector<1x8x32xf32> to vector<8x32xf32>
    %261 = arith.addf %260, %247 : vector<8x32xf32>
    %262 = arith.negf %261 : vector<8x32xf32>
    %263 = math.exp %262 : vector<8x32xf32>
    %cst_83 = arith.constant 1.000000e+00 : f32
    %264 = vector.broadcast %cst_83 : f32 to vector<8x32xf32>
    %265 = arith.addf %264, %263 : vector<8x32xf32>
    %266 = arith.divf %264, %265 : vector<8x32xf32>
    %267 = vector.extract_strided_slice %25 {offsets = [10, 0, 0], sizes = [1, 8, 32], strides = [1, 1, 1]} : vector<16x8x32xf32> to vector<1x8x32xf32>
    %268 = vector.shape_cast %267 : vector<1x8x32xf32> to vector<8x32xf32>
    %269 = arith.mulf %258, %250 : vector<8x32xf32>
    %270 = arith.addf %268, %269 : vector<8x32xf32>
    %271 = math.tanh %270 : vector<8x32xf32>
    %cst_84 = arith.constant 1.000000e+00 : f32
    %272 = vector.broadcast %cst_84 : f32 to vector<8x32xf32>
    %273 = arith.subf %272, %266 : vector<8x32xf32>
    %274 = arith.mulf %273, %271 : vector<8x32xf32>
    %275 = arith.mulf %266, %245 : vector<8x32xf32>
    %276 = arith.addf %274, %275 : vector<8x32xf32>
    %c10_i32 = arith.constant 10 : i32
    %277 = vector.broadcast %c10_i32 : i32 to vector<8x1xi32>
    %278 = arith.cmpi sgt, %60, %277 : vector<8x1xi32>
    %279 = vector.shape_cast %278 : vector<8x1xi1> to vector<8x1xi1>
    %280 = vector.broadcast %279 : vector<8x1xi1> to vector<8x32xi1>
    %281 = arith.select %280, %276, %245 : vector<8x32xi1>, vector<8x32xf32>
    %cst_85 = arith.constant dense<0.000000e+00> : vector<8x32xf32>
    %282 = tpu.matmul %281, %61, %cst_85 {dimension_numbers = #tpu.dot_dimension_numbers<[1], [0], [0], [1], [0, 0, 1, 1], [], []>} : vector<8x32xf32>, vector<32x32xf32>, vector<8x32xf32> -> vector<8x32xf32>
    %cst_86 = arith.constant dense<0.000000e+00> : vector<8x32xf32>
    %283 = tpu.matmul %281, %62, %cst_86 {dimension_numbers = #tpu.dot_dimension_numbers<[1], [0], [0], [1], [0, 0, 1, 1], [], []>} : vector<8x32xf32>, vector<32x32xf32>, vector<8x32xf32> -> vector<8x32xf32>
    %cst_87 = arith.constant dense<0.000000e+00> : vector<8x32xf32>
    %284 = tpu.matmul %281, %63, %cst_87 {dimension_numbers = #tpu.dot_dimension_numbers<[1], [0], [0], [1], [0, 0, 1, 1], [], []>} : vector<8x32xf32>, vector<32x32xf32>, vector<8x32xf32> -> vector<8x32xf32>
    %285 = vector.broadcast %64 : vector<1x32xf32> to vector<8x32xf32>
    %286 = arith.addf %284, %285 : vector<8x32xf32>
    %287 = vector.extract_strided_slice %13 {offsets = [9, 0, 0], sizes = [1, 8, 32], strides = [1, 1, 1]} : vector<16x8x32xf32> to vector<1x8x32xf32>
    %288 = vector.shape_cast %287 : vector<1x8x32xf32> to vector<8x32xf32>
    %289 = arith.addf %288, %282 : vector<8x32xf32>
    %290 = arith.negf %289 : vector<8x32xf32>
    %291 = math.exp %290 : vector<8x32xf32>
    %cst_88 = arith.constant 1.000000e+00 : f32
    %292 = vector.broadcast %cst_88 : f32 to vector<8x32xf32>
    %293 = arith.addf %292, %291 : vector<8x32xf32>
    %294 = arith.divf %292, %293 : vector<8x32xf32>
    %295 = vector.extract_strided_slice %19 {offsets = [9, 0, 0], sizes = [1, 8, 32], strides = [1, 1, 1]} : vector<16x8x32xf32> to vector<1x8x32xf32>
    %296 = vector.shape_cast %295 : vector<1x8x32xf32> to vector<8x32xf32>
    %297 = arith.addf %296, %283 : vector<8x32xf32>
    %298 = arith.negf %297 : vector<8x32xf32>
    %299 = math.exp %298 : vector<8x32xf32>
    %cst_89 = arith.constant 1.000000e+00 : f32
    %300 = vector.broadcast %cst_89 : f32 to vector<8x32xf32>
    %301 = arith.addf %300, %299 : vector<8x32xf32>
    %302 = arith.divf %300, %301 : vector<8x32xf32>
    %303 = vector.extract_strided_slice %25 {offsets = [9, 0, 0], sizes = [1, 8, 32], strides = [1, 1, 1]} : vector<16x8x32xf32> to vector<1x8x32xf32>
    %304 = vector.shape_cast %303 : vector<1x8x32xf32> to vector<8x32xf32>
    %305 = arith.mulf %294, %286 : vector<8x32xf32>
    %306 = arith.addf %304, %305 : vector<8x32xf32>
    %307 = math.tanh %306 : vector<8x32xf32>
    %cst_90 = arith.constant 1.000000e+00 : f32
    %308 = vector.broadcast %cst_90 : f32 to vector<8x32xf32>
    %309 = arith.subf %308, %302 : vector<8x32xf32>
    %310 = arith.mulf %309, %307 : vector<8x32xf32>
    %311 = arith.mulf %302, %281 : vector<8x32xf32>
    %312 = arith.addf %310, %311 : vector<8x32xf32>
    %c9_i32 = arith.constant 9 : i32
    %313 = vector.broadcast %c9_i32 : i32 to vector<8x1xi32>
    %314 = arith.cmpi sgt, %60, %313 : vector<8x1xi32>
    %315 = vector.shape_cast %314 : vector<8x1xi1> to vector<8x1xi1>
    %316 = vector.broadcast %315 : vector<8x1xi1> to vector<8x32xi1>
    %317 = arith.select %316, %312, %281 : vector<8x32xi1>, vector<8x32xf32>
    %cst_91 = arith.constant dense<0.000000e+00> : vector<8x32xf32>
    %318 = tpu.matmul %317, %61, %cst_91 {dimension_numbers = #tpu.dot_dimension_numbers<[1], [0], [0], [1], [0, 0, 1, 1], [], []>} : vector<8x32xf32>, vector<32x32xf32>, vector<8x32xf32> -> vector<8x32xf32>
    %cst_92 = arith.constant dense<0.000000e+00> : vector<8x32xf32>
    %319 = tpu.matmul %317, %62, %cst_92 {dimension_numbers = #tpu.dot_dimension_numbers<[1], [0], [0], [1], [0, 0, 1, 1], [], []>} : vector<8x32xf32>, vector<32x32xf32>, vector<8x32xf32> -> vector<8x32xf32>
    %cst_93 = arith.constant dense<0.000000e+00> : vector<8x32xf32>
    %320 = tpu.matmul %317, %63, %cst_93 {dimension_numbers = #tpu.dot_dimension_numbers<[1], [0], [0], [1], [0, 0, 1, 1], [], []>} : vector<8x32xf32>, vector<32x32xf32>, vector<8x32xf32> -> vector<8x32xf32>
    %321 = vector.broadcast %64 : vector<1x32xf32> to vector<8x32xf32>
    %322 = arith.addf %320, %321 : vector<8x32xf32>
    %323 = vector.extract_strided_slice %13 {offsets = [8, 0, 0], sizes = [1, 8, 32], strides = [1, 1, 1]} : vector<16x8x32xf32> to vector<1x8x32xf32>
    %324 = vector.shape_cast %323 : vector<1x8x32xf32> to vector<8x32xf32>
    %325 = arith.addf %324, %318 : vector<8x32xf32>
    %326 = arith.negf %325 : vector<8x32xf32>
    %327 = math.exp %326 : vector<8x32xf32>
    %cst_94 = arith.constant 1.000000e+00 : f32
    %328 = vector.broadcast %cst_94 : f32 to vector<8x32xf32>
    %329 = arith.addf %328, %327 : vector<8x32xf32>
    %330 = arith.divf %328, %329 : vector<8x32xf32>
    %331 = vector.extract_strided_slice %19 {offsets = [8, 0, 0], sizes = [1, 8, 32], strides = [1, 1, 1]} : vector<16x8x32xf32> to vector<1x8x32xf32>
    %332 = vector.shape_cast %331 : vector<1x8x32xf32> to vector<8x32xf32>
    %333 = arith.addf %332, %319 : vector<8x32xf32>
    %334 = arith.negf %333 : vector<8x32xf32>
    %335 = math.exp %334 : vector<8x32xf32>
    %cst_95 = arith.constant 1.000000e+00 : f32
    %336 = vector.broadcast %cst_95 : f32 to vector<8x32xf32>
    %337 = arith.addf %336, %335 : vector<8x32xf32>
    %338 = arith.divf %336, %337 : vector<8x32xf32>
    %339 = vector.extract_strided_slice %25 {offsets = [8, 0, 0], sizes = [1, 8, 32], strides = [1, 1, 1]} : vector<16x8x32xf32> to vector<1x8x32xf32>
    %340 = vector.shape_cast %339 : vector<1x8x32xf32> to vector<8x32xf32>
    %341 = arith.mulf %330, %322 : vector<8x32xf32>
    %342 = arith.addf %340, %341 : vector<8x32xf32>
    %343 = math.tanh %342 : vector<8x32xf32>
    %cst_96 = arith.constant 1.000000e+00 : f32
    %344 = vector.broadcast %cst_96 : f32 to vector<8x32xf32>
    %345 = arith.subf %344, %338 : vector<8x32xf32>
    %346 = arith.mulf %345, %343 : vector<8x32xf32>
    %347 = arith.mulf %338, %317 : vector<8x32xf32>
    %348 = arith.addf %346, %347 : vector<8x32xf32>
    %c8_i32 = arith.constant 8 : i32
    %349 = vector.broadcast %c8_i32 : i32 to vector<8x1xi32>
    %350 = arith.cmpi sgt, %60, %349 : vector<8x1xi32>
    %351 = vector.shape_cast %350 : vector<8x1xi1> to vector<8x1xi1>
    %352 = vector.broadcast %351 : vector<8x1xi1> to vector<8x32xi1>
    %353 = arith.select %352, %348, %317 : vector<8x32xi1>, vector<8x32xf32>
    %cst_97 = arith.constant dense<0.000000e+00> : vector<8x32xf32>
    %354 = tpu.matmul %353, %61, %cst_97 {dimension_numbers = #tpu.dot_dimension_numbers<[1], [0], [0], [1], [0, 0, 1, 1], [], []>} : vector<8x32xf32>, vector<32x32xf32>, vector<8x32xf32> -> vector<8x32xf32>
    %cst_98 = arith.constant dense<0.000000e+00> : vector<8x32xf32>
    %355 = tpu.matmul %353, %62, %cst_98 {dimension_numbers = #tpu.dot_dimension_numbers<[1], [0], [0], [1], [0, 0, 1, 1], [], []>} : vector<8x32xf32>, vector<32x32xf32>, vector<8x32xf32> -> vector<8x32xf32>
    %cst_99 = arith.constant dense<0.000000e+00> : vector<8x32xf32>
    %356 = tpu.matmul %353, %63, %cst_99 {dimension_numbers = #tpu.dot_dimension_numbers<[1], [0], [0], [1], [0, 0, 1, 1], [], []>} : vector<8x32xf32>, vector<32x32xf32>, vector<8x32xf32> -> vector<8x32xf32>
    %357 = vector.broadcast %64 : vector<1x32xf32> to vector<8x32xf32>
    %358 = arith.addf %356, %357 : vector<8x32xf32>
    %359 = vector.extract_strided_slice %13 {offsets = [7, 0, 0], sizes = [1, 8, 32], strides = [1, 1, 1]} : vector<16x8x32xf32> to vector<1x8x32xf32>
    %360 = vector.shape_cast %359 : vector<1x8x32xf32> to vector<8x32xf32>
    %361 = arith.addf %360, %354 : vector<8x32xf32>
    %362 = arith.negf %361 : vector<8x32xf32>
    %363 = math.exp %362 : vector<8x32xf32>
    %cst_100 = arith.constant 1.000000e+00 : f32
    %364 = vector.broadcast %cst_100 : f32 to vector<8x32xf32>
    %365 = arith.addf %364, %363 : vector<8x32xf32>
    %366 = arith.divf %364, %365 : vector<8x32xf32>
    %367 = vector.extract_strided_slice %19 {offsets = [7, 0, 0], sizes = [1, 8, 32], strides = [1, 1, 1]} : vector<16x8x32xf32> to vector<1x8x32xf32>
    %368 = vector.shape_cast %367 : vector<1x8x32xf32> to vector<8x32xf32>
    %369 = arith.addf %368, %355 : vector<8x32xf32>
    %370 = arith.negf %369 : vector<8x32xf32>
    %371 = math.exp %370 : vector<8x32xf32>
    %cst_101 = arith.constant 1.000000e+00 : f32
    %372 = vector.broadcast %cst_101 : f32 to vector<8x32xf32>
    %373 = arith.addf %372, %371 : vector<8x32xf32>
    %374 = arith.divf %372, %373 : vector<8x32xf32>
    %375 = vector.extract_strided_slice %25 {offsets = [7, 0, 0], sizes = [1, 8, 32], strides = [1, 1, 1]} : vector<16x8x32xf32> to vector<1x8x32xf32>
    %376 = vector.shape_cast %375 : vector<1x8x32xf32> to vector<8x32xf32>
    %377 = arith.mulf %366, %358 : vector<8x32xf32>
    %378 = arith.addf %376, %377 : vector<8x32xf32>
    %379 = math.tanh %378 : vector<8x32xf32>
    %cst_102 = arith.constant 1.000000e+00 : f32
    %380 = vector.broadcast %cst_102 : f32 to vector<8x32xf32>
    %381 = arith.subf %380, %374 : vector<8x32xf32>
    %382 = arith.mulf %381, %379 : vector<8x32xf32>
    %383 = arith.mulf %374, %353 : vector<8x32xf32>
    %384 = arith.addf %382, %383 : vector<8x32xf32>
    %c7_i32 = arith.constant 7 : i32
    %385 = vector.broadcast %c7_i32 : i32 to vector<8x1xi32>
    %386 = arith.cmpi sgt, %60, %385 : vector<8x1xi32>
    %387 = vector.shape_cast %386 : vector<8x1xi1> to vector<8x1xi1>
    %388 = vector.broadcast %387 : vector<8x1xi1> to vector<8x32xi1>
    %389 = arith.select %388, %384, %353 : vector<8x32xi1>, vector<8x32xf32>
    %cst_103 = arith.constant dense<0.000000e+00> : vector<8x32xf32>
    %390 = tpu.matmul %389, %61, %cst_103 {dimension_numbers = #tpu.dot_dimension_numbers<[1], [0], [0], [1], [0, 0, 1, 1], [], []>} : vector<8x32xf32>, vector<32x32xf32>, vector<8x32xf32> -> vector<8x32xf32>
    %cst_104 = arith.constant dense<0.000000e+00> : vector<8x32xf32>
    %391 = tpu.matmul %389, %62, %cst_104 {dimension_numbers = #tpu.dot_dimension_numbers<[1], [0], [0], [1], [0, 0, 1, 1], [], []>} : vector<8x32xf32>, vector<32x32xf32>, vector<8x32xf32> -> vector<8x32xf32>
    %cst_105 = arith.constant dense<0.000000e+00> : vector<8x32xf32>
    %392 = tpu.matmul %389, %63, %cst_105 {dimension_numbers = #tpu.dot_dimension_numbers<[1], [0], [0], [1], [0, 0, 1, 1], [], []>} : vector<8x32xf32>, vector<32x32xf32>, vector<8x32xf32> -> vector<8x32xf32>
    %393 = vector.broadcast %64 : vector<1x32xf32> to vector<8x32xf32>
    %394 = arith.addf %392, %393 : vector<8x32xf32>
    %395 = vector.extract_strided_slice %13 {offsets = [6, 0, 0], sizes = [1, 8, 32], strides = [1, 1, 1]} : vector<16x8x32xf32> to vector<1x8x32xf32>
    %396 = vector.shape_cast %395 : vector<1x8x32xf32> to vector<8x32xf32>
    %397 = arith.addf %396, %390 : vector<8x32xf32>
    %398 = arith.negf %397 : vector<8x32xf32>
    %399 = math.exp %398 : vector<8x32xf32>
    %cst_106 = arith.constant 1.000000e+00 : f32
    %400 = vector.broadcast %cst_106 : f32 to vector<8x32xf32>
    %401 = arith.addf %400, %399 : vector<8x32xf32>
    %402 = arith.divf %400, %401 : vector<8x32xf32>
    %403 = vector.extract_strided_slice %19 {offsets = [6, 0, 0], sizes = [1, 8, 32], strides = [1, 1, 1]} : vector<16x8x32xf32> to vector<1x8x32xf32>
    %404 = vector.shape_cast %403 : vector<1x8x32xf32> to vector<8x32xf32>
    %405 = arith.addf %404, %391 : vector<8x32xf32>
    %406 = arith.negf %405 : vector<8x32xf32>
    %407 = math.exp %406 : vector<8x32xf32>
    %cst_107 = arith.constant 1.000000e+00 : f32
    %408 = vector.broadcast %cst_107 : f32 to vector<8x32xf32>
    %409 = arith.addf %408, %407 : vector<8x32xf32>
    %410 = arith.divf %408, %409 : vector<8x32xf32>
    %411 = vector.extract_strided_slice %25 {offsets = [6, 0, 0], sizes = [1, 8, 32], strides = [1, 1, 1]} : vector<16x8x32xf32> to vector<1x8x32xf32>
    %412 = vector.shape_cast %411 : vector<1x8x32xf32> to vector<8x32xf32>
    %413 = arith.mulf %402, %394 : vector<8x32xf32>
    %414 = arith.addf %412, %413 : vector<8x32xf32>
    %415 = math.tanh %414 : vector<8x32xf32>
    %cst_108 = arith.constant 1.000000e+00 : f32
    %416 = vector.broadcast %cst_108 : f32 to vector<8x32xf32>
    %417 = arith.subf %416, %410 : vector<8x32xf32>
    %418 = arith.mulf %417, %415 : vector<8x32xf32>
    %419 = arith.mulf %410, %389 : vector<8x32xf32>
    %420 = arith.addf %418, %419 : vector<8x32xf32>
    %c6_i32 = arith.constant 6 : i32
    %421 = vector.broadcast %c6_i32 : i32 to vector<8x1xi32>
    %422 = arith.cmpi sgt, %60, %421 : vector<8x1xi32>
    %423 = vector.shape_cast %422 : vector<8x1xi1> to vector<8x1xi1>
    %424 = vector.broadcast %423 : vector<8x1xi1> to vector<8x32xi1>
    %425 = arith.select %424, %420, %389 : vector<8x32xi1>, vector<8x32xf32>
    %cst_109 = arith.constant dense<0.000000e+00> : vector<8x32xf32>
    %426 = tpu.matmul %425, %61, %cst_109 {dimension_numbers = #tpu.dot_dimension_numbers<[1], [0], [0], [1], [0, 0, 1, 1], [], []>} : vector<8x32xf32>, vector<32x32xf32>, vector<8x32xf32> -> vector<8x32xf32>
    %cst_110 = arith.constant dense<0.000000e+00> : vector<8x32xf32>
    %427 = tpu.matmul %425, %62, %cst_110 {dimension_numbers = #tpu.dot_dimension_numbers<[1], [0], [0], [1], [0, 0, 1, 1], [], []>} : vector<8x32xf32>, vector<32x32xf32>, vector<8x32xf32> -> vector<8x32xf32>
    %cst_111 = arith.constant dense<0.000000e+00> : vector<8x32xf32>
    %428 = tpu.matmul %425, %63, %cst_111 {dimension_numbers = #tpu.dot_dimension_numbers<[1], [0], [0], [1], [0, 0, 1, 1], [], []>} : vector<8x32xf32>, vector<32x32xf32>, vector<8x32xf32> -> vector<8x32xf32>
    %429 = vector.broadcast %64 : vector<1x32xf32> to vector<8x32xf32>
    %430 = arith.addf %428, %429 : vector<8x32xf32>
    %431 = vector.extract_strided_slice %13 {offsets = [5, 0, 0], sizes = [1, 8, 32], strides = [1, 1, 1]} : vector<16x8x32xf32> to vector<1x8x32xf32>
    %432 = vector.shape_cast %431 : vector<1x8x32xf32> to vector<8x32xf32>
    %433 = arith.addf %432, %426 : vector<8x32xf32>
    %434 = arith.negf %433 : vector<8x32xf32>
    %435 = math.exp %434 : vector<8x32xf32>
    %cst_112 = arith.constant 1.000000e+00 : f32
    %436 = vector.broadcast %cst_112 : f32 to vector<8x32xf32>
    %437 = arith.addf %436, %435 : vector<8x32xf32>
    %438 = arith.divf %436, %437 : vector<8x32xf32>
    %439 = vector.extract_strided_slice %19 {offsets = [5, 0, 0], sizes = [1, 8, 32], strides = [1, 1, 1]} : vector<16x8x32xf32> to vector<1x8x32xf32>
    %440 = vector.shape_cast %439 : vector<1x8x32xf32> to vector<8x32xf32>
    %441 = arith.addf %440, %427 : vector<8x32xf32>
    %442 = arith.negf %441 : vector<8x32xf32>
    %443 = math.exp %442 : vector<8x32xf32>
    %cst_113 = arith.constant 1.000000e+00 : f32
    %444 = vector.broadcast %cst_113 : f32 to vector<8x32xf32>
    %445 = arith.addf %444, %443 : vector<8x32xf32>
    %446 = arith.divf %444, %445 : vector<8x32xf32>
    %447 = vector.extract_strided_slice %25 {offsets = [5, 0, 0], sizes = [1, 8, 32], strides = [1, 1, 1]} : vector<16x8x32xf32> to vector<1x8x32xf32>
    %448 = vector.shape_cast %447 : vector<1x8x32xf32> to vector<8x32xf32>
    %449 = arith.mulf %438, %430 : vector<8x32xf32>
    %450 = arith.addf %448, %449 : vector<8x32xf32>
    %451 = math.tanh %450 : vector<8x32xf32>
    %cst_114 = arith.constant 1.000000e+00 : f32
    %452 = vector.broadcast %cst_114 : f32 to vector<8x32xf32>
    %453 = arith.subf %452, %446 : vector<8x32xf32>
    %454 = arith.mulf %453, %451 : vector<8x32xf32>
    %455 = arith.mulf %446, %425 : vector<8x32xf32>
    %456 = arith.addf %454, %455 : vector<8x32xf32>
    %c5_i32 = arith.constant 5 : i32
    %457 = vector.broadcast %c5_i32 : i32 to vector<8x1xi32>
    %458 = arith.cmpi sgt, %60, %457 : vector<8x1xi32>
    %459 = vector.shape_cast %458 : vector<8x1xi1> to vector<8x1xi1>
    %460 = vector.broadcast %459 : vector<8x1xi1> to vector<8x32xi1>
    %461 = arith.select %460, %456, %425 : vector<8x32xi1>, vector<8x32xf32>
    %cst_115 = arith.constant dense<0.000000e+00> : vector<8x32xf32>
    %462 = tpu.matmul %461, %61, %cst_115 {dimension_numbers = #tpu.dot_dimension_numbers<[1], [0], [0], [1], [0, 0, 1, 1], [], []>} : vector<8x32xf32>, vector<32x32xf32>, vector<8x32xf32> -> vector<8x32xf32>
    %cst_116 = arith.constant dense<0.000000e+00> : vector<8x32xf32>
    %463 = tpu.matmul %461, %62, %cst_116 {dimension_numbers = #tpu.dot_dimension_numbers<[1], [0], [0], [1], [0, 0, 1, 1], [], []>} : vector<8x32xf32>, vector<32x32xf32>, vector<8x32xf32> -> vector<8x32xf32>
    %cst_117 = arith.constant dense<0.000000e+00> : vector<8x32xf32>
    %464 = tpu.matmul %461, %63, %cst_117 {dimension_numbers = #tpu.dot_dimension_numbers<[1], [0], [0], [1], [0, 0, 1, 1], [], []>} : vector<8x32xf32>, vector<32x32xf32>, vector<8x32xf32> -> vector<8x32xf32>
    %465 = vector.broadcast %64 : vector<1x32xf32> to vector<8x32xf32>
    %466 = arith.addf %464, %465 : vector<8x32xf32>
    %467 = vector.extract_strided_slice %13 {offsets = [4, 0, 0], sizes = [1, 8, 32], strides = [1, 1, 1]} : vector<16x8x32xf32> to vector<1x8x32xf32>
    %468 = vector.shape_cast %467 : vector<1x8x32xf32> to vector<8x32xf32>
    %469 = arith.addf %468, %462 : vector<8x32xf32>
    %470 = arith.negf %469 : vector<8x32xf32>
    %471 = math.exp %470 : vector<8x32xf32>
    %cst_118 = arith.constant 1.000000e+00 : f32
    %472 = vector.broadcast %cst_118 : f32 to vector<8x32xf32>
    %473 = arith.addf %472, %471 : vector<8x32xf32>
    %474 = arith.divf %472, %473 : vector<8x32xf32>
    %475 = vector.extract_strided_slice %19 {offsets = [4, 0, 0], sizes = [1, 8, 32], strides = [1, 1, 1]} : vector<16x8x32xf32> to vector<1x8x32xf32>
    %476 = vector.shape_cast %475 : vector<1x8x32xf32> to vector<8x32xf32>
    %477 = arith.addf %476, %463 : vector<8x32xf32>
    %478 = arith.negf %477 : vector<8x32xf32>
    %479 = math.exp %478 : vector<8x32xf32>
    %cst_119 = arith.constant 1.000000e+00 : f32
    %480 = vector.broadcast %cst_119 : f32 to vector<8x32xf32>
    %481 = arith.addf %480, %479 : vector<8x32xf32>
    %482 = arith.divf %480, %481 : vector<8x32xf32>
    %483 = vector.extract_strided_slice %25 {offsets = [4, 0, 0], sizes = [1, 8, 32], strides = [1, 1, 1]} : vector<16x8x32xf32> to vector<1x8x32xf32>
    %484 = vector.shape_cast %483 : vector<1x8x32xf32> to vector<8x32xf32>
    %485 = arith.mulf %474, %466 : vector<8x32xf32>
    %486 = arith.addf %484, %485 : vector<8x32xf32>
    %487 = math.tanh %486 : vector<8x32xf32>
    %cst_120 = arith.constant 1.000000e+00 : f32
    %488 = vector.broadcast %cst_120 : f32 to vector<8x32xf32>
    %489 = arith.subf %488, %482 : vector<8x32xf32>
    %490 = arith.mulf %489, %487 : vector<8x32xf32>
    %491 = arith.mulf %482, %461 : vector<8x32xf32>
    %492 = arith.addf %490, %491 : vector<8x32xf32>
    %c4_i32 = arith.constant 4 : i32
    %493 = vector.broadcast %c4_i32 : i32 to vector<8x1xi32>
    %494 = arith.cmpi sgt, %60, %493 : vector<8x1xi32>
    %495 = vector.shape_cast %494 : vector<8x1xi1> to vector<8x1xi1>
    %496 = vector.broadcast %495 : vector<8x1xi1> to vector<8x32xi1>
    %497 = arith.select %496, %492, %461 : vector<8x32xi1>, vector<8x32xf32>
    %cst_121 = arith.constant dense<0.000000e+00> : vector<8x32xf32>
    %498 = tpu.matmul %497, %61, %cst_121 {dimension_numbers = #tpu.dot_dimension_numbers<[1], [0], [0], [1], [0, 0, 1, 1], [], []>} : vector<8x32xf32>, vector<32x32xf32>, vector<8x32xf32> -> vector<8x32xf32>
    %cst_122 = arith.constant dense<0.000000e+00> : vector<8x32xf32>
    %499 = tpu.matmul %497, %62, %cst_122 {dimension_numbers = #tpu.dot_dimension_numbers<[1], [0], [0], [1], [0, 0, 1, 1], [], []>} : vector<8x32xf32>, vector<32x32xf32>, vector<8x32xf32> -> vector<8x32xf32>
    %cst_123 = arith.constant dense<0.000000e+00> : vector<8x32xf32>
    %500 = tpu.matmul %497, %63, %cst_123 {dimension_numbers = #tpu.dot_dimension_numbers<[1], [0], [0], [1], [0, 0, 1, 1], [], []>} : vector<8x32xf32>, vector<32x32xf32>, vector<8x32xf32> -> vector<8x32xf32>
    %501 = vector.broadcast %64 : vector<1x32xf32> to vector<8x32xf32>
    %502 = arith.addf %500, %501 : vector<8x32xf32>
    %503 = vector.extract_strided_slice %13 {offsets = [3, 0, 0], sizes = [1, 8, 32], strides = [1, 1, 1]} : vector<16x8x32xf32> to vector<1x8x32xf32>
    %504 = vector.shape_cast %503 : vector<1x8x32xf32> to vector<8x32xf32>
    %505 = arith.addf %504, %498 : vector<8x32xf32>
    %506 = arith.negf %505 : vector<8x32xf32>
    %507 = math.exp %506 : vector<8x32xf32>
    %cst_124 = arith.constant 1.000000e+00 : f32
    %508 = vector.broadcast %cst_124 : f32 to vector<8x32xf32>
    %509 = arith.addf %508, %507 : vector<8x32xf32>
    %510 = arith.divf %508, %509 : vector<8x32xf32>
    %511 = vector.extract_strided_slice %19 {offsets = [3, 0, 0], sizes = [1, 8, 32], strides = [1, 1, 1]} : vector<16x8x32xf32> to vector<1x8x32xf32>
    %512 = vector.shape_cast %511 : vector<1x8x32xf32> to vector<8x32xf32>
    %513 = arith.addf %512, %499 : vector<8x32xf32>
    %514 = arith.negf %513 : vector<8x32xf32>
    %515 = math.exp %514 : vector<8x32xf32>
    %cst_125 = arith.constant 1.000000e+00 : f32
    %516 = vector.broadcast %cst_125 : f32 to vector<8x32xf32>
    %517 = arith.addf %516, %515 : vector<8x32xf32>
    %518 = arith.divf %516, %517 : vector<8x32xf32>
    %519 = vector.extract_strided_slice %25 {offsets = [3, 0, 0], sizes = [1, 8, 32], strides = [1, 1, 1]} : vector<16x8x32xf32> to vector<1x8x32xf32>
    %520 = vector.shape_cast %519 : vector<1x8x32xf32> to vector<8x32xf32>
    %521 = arith.mulf %510, %502 : vector<8x32xf32>
    %522 = arith.addf %520, %521 : vector<8x32xf32>
    %523 = math.tanh %522 : vector<8x32xf32>
    %cst_126 = arith.constant 1.000000e+00 : f32
    %524 = vector.broadcast %cst_126 : f32 to vector<8x32xf32>
    %525 = arith.subf %524, %518 : vector<8x32xf32>
    %526 = arith.mulf %525, %523 : vector<8x32xf32>
    %527 = arith.mulf %518, %497 : vector<8x32xf32>
    %528 = arith.addf %526, %527 : vector<8x32xf32>
    %c3_i32 = arith.constant 3 : i32
    %529 = vector.broadcast %c3_i32 : i32 to vector<8x1xi32>
    %530 = arith.cmpi sgt, %60, %529 : vector<8x1xi32>
    %531 = vector.shape_cast %530 : vector<8x1xi1> to vector<8x1xi1>
    %532 = vector.broadcast %531 : vector<8x1xi1> to vector<8x32xi1>
    %533 = arith.select %532, %528, %497 : vector<8x32xi1>, vector<8x32xf32>
    %cst_127 = arith.constant dense<0.000000e+00> : vector<8x32xf32>
    %534 = tpu.matmul %533, %61, %cst_127 {dimension_numbers = #tpu.dot_dimension_numbers<[1], [0], [0], [1], [0, 0, 1, 1], [], []>} : vector<8x32xf32>, vector<32x32xf32>, vector<8x32xf32> -> vector<8x32xf32>
    %cst_128 = arith.constant dense<0.000000e+00> : vector<8x32xf32>
    %535 = tpu.matmul %533, %62, %cst_128 {dimension_numbers = #tpu.dot_dimension_numbers<[1], [0], [0], [1], [0, 0, 1, 1], [], []>} : vector<8x32xf32>, vector<32x32xf32>, vector<8x32xf32> -> vector<8x32xf32>
    %cst_129 = arith.constant dense<0.000000e+00> : vector<8x32xf32>
    %536 = tpu.matmul %533, %63, %cst_129 {dimension_numbers = #tpu.dot_dimension_numbers<[1], [0], [0], [1], [0, 0, 1, 1], [], []>} : vector<8x32xf32>, vector<32x32xf32>, vector<8x32xf32> -> vector<8x32xf32>
    %537 = vector.broadcast %64 : vector<1x32xf32> to vector<8x32xf32>
    %538 = arith.addf %536, %537 : vector<8x32xf32>
    %539 = vector.extract_strided_slice %13 {offsets = [2, 0, 0], sizes = [1, 8, 32], strides = [1, 1, 1]} : vector<16x8x32xf32> to vector<1x8x32xf32>
    %540 = vector.shape_cast %539 : vector<1x8x32xf32> to vector<8x32xf32>
    %541 = arith.addf %540, %534 : vector<8x32xf32>
    %542 = arith.negf %541 : vector<8x32xf32>
    %543 = math.exp %542 : vector<8x32xf32>
    %cst_130 = arith.constant 1.000000e+00 : f32
    %544 = vector.broadcast %cst_130 : f32 to vector<8x32xf32>
    %545 = arith.addf %544, %543 : vector<8x32xf32>
    %546 = arith.divf %544, %545 : vector<8x32xf32>
    %547 = vector.extract_strided_slice %19 {offsets = [2, 0, 0], sizes = [1, 8, 32], strides = [1, 1, 1]} : vector<16x8x32xf32> to vector<1x8x32xf32>
    %548 = vector.shape_cast %547 : vector<1x8x32xf32> to vector<8x32xf32>
    %549 = arith.addf %548, %535 : vector<8x32xf32>
    %550 = arith.negf %549 : vector<8x32xf32>
    %551 = math.exp %550 : vector<8x32xf32>
    %cst_131 = arith.constant 1.000000e+00 : f32
    %552 = vector.broadcast %cst_131 : f32 to vector<8x32xf32>
    %553 = arith.addf %552, %551 : vector<8x32xf32>
    %554 = arith.divf %552, %553 : vector<8x32xf32>
    %555 = vector.extract_strided_slice %25 {offsets = [2, 0, 0], sizes = [1, 8, 32], strides = [1, 1, 1]} : vector<16x8x32xf32> to vector<1x8x32xf32>
    %556 = vector.shape_cast %555 : vector<1x8x32xf32> to vector<8x32xf32>
    %557 = arith.mulf %546, %538 : vector<8x32xf32>
    %558 = arith.addf %556, %557 : vector<8x32xf32>
    %559 = math.tanh %558 : vector<8x32xf32>
    %cst_132 = arith.constant 1.000000e+00 : f32
    %560 = vector.broadcast %cst_132 : f32 to vector<8x32xf32>
    %561 = arith.subf %560, %554 : vector<8x32xf32>
    %562 = arith.mulf %561, %559 : vector<8x32xf32>
    %563 = arith.mulf %554, %533 : vector<8x32xf32>
    %564 = arith.addf %562, %563 : vector<8x32xf32>
    %c2_i32 = arith.constant 2 : i32
    %565 = vector.broadcast %c2_i32 : i32 to vector<8x1xi32>
    %566 = arith.cmpi sgt, %60, %565 : vector<8x1xi32>
    %567 = vector.shape_cast %566 : vector<8x1xi1> to vector<8x1xi1>
    %568 = vector.broadcast %567 : vector<8x1xi1> to vector<8x32xi1>
    %569 = arith.select %568, %564, %533 : vector<8x32xi1>, vector<8x32xf32>
    %cst_133 = arith.constant dense<0.000000e+00> : vector<8x32xf32>
    %570 = tpu.matmul %569, %61, %cst_133 {dimension_numbers = #tpu.dot_dimension_numbers<[1], [0], [0], [1], [0, 0, 1, 1], [], []>} : vector<8x32xf32>, vector<32x32xf32>, vector<8x32xf32> -> vector<8x32xf32>
    %cst_134 = arith.constant dense<0.000000e+00> : vector<8x32xf32>
    %571 = tpu.matmul %569, %62, %cst_134 {dimension_numbers = #tpu.dot_dimension_numbers<[1], [0], [0], [1], [0, 0, 1, 1], [], []>} : vector<8x32xf32>, vector<32x32xf32>, vector<8x32xf32> -> vector<8x32xf32>
    %cst_135 = arith.constant dense<0.000000e+00> : vector<8x32xf32>
    %572 = tpu.matmul %569, %63, %cst_135 {dimension_numbers = #tpu.dot_dimension_numbers<[1], [0], [0], [1], [0, 0, 1, 1], [], []>} : vector<8x32xf32>, vector<32x32xf32>, vector<8x32xf32> -> vector<8x32xf32>
    %573 = vector.broadcast %64 : vector<1x32xf32> to vector<8x32xf32>
    %574 = arith.addf %572, %573 : vector<8x32xf32>
    %575 = vector.extract_strided_slice %13 {offsets = [1, 0, 0], sizes = [1, 8, 32], strides = [1, 1, 1]} : vector<16x8x32xf32> to vector<1x8x32xf32>
    %576 = vector.shape_cast %575 : vector<1x8x32xf32> to vector<8x32xf32>
    %577 = arith.addf %576, %570 : vector<8x32xf32>
    %578 = arith.negf %577 : vector<8x32xf32>
    %579 = math.exp %578 : vector<8x32xf32>
    %cst_136 = arith.constant 1.000000e+00 : f32
    %580 = vector.broadcast %cst_136 : f32 to vector<8x32xf32>
    %581 = arith.addf %580, %579 : vector<8x32xf32>
    %582 = arith.divf %580, %581 : vector<8x32xf32>
    %583 = vector.extract_strided_slice %19 {offsets = [1, 0, 0], sizes = [1, 8, 32], strides = [1, 1, 1]} : vector<16x8x32xf32> to vector<1x8x32xf32>
    %584 = vector.shape_cast %583 : vector<1x8x32xf32> to vector<8x32xf32>
    %585 = arith.addf %584, %571 : vector<8x32xf32>
    %586 = arith.negf %585 : vector<8x32xf32>
    %587 = math.exp %586 : vector<8x32xf32>
    %cst_137 = arith.constant 1.000000e+00 : f32
    %588 = vector.broadcast %cst_137 : f32 to vector<8x32xf32>
    %589 = arith.addf %588, %587 : vector<8x32xf32>
    %590 = arith.divf %588, %589 : vector<8x32xf32>
    %591 = vector.extract_strided_slice %25 {offsets = [1, 0, 0], sizes = [1, 8, 32], strides = [1, 1, 1]} : vector<16x8x32xf32> to vector<1x8x32xf32>
    %592 = vector.shape_cast %591 : vector<1x8x32xf32> to vector<8x32xf32>
    %593 = arith.mulf %582, %574 : vector<8x32xf32>
    %594 = arith.addf %592, %593 : vector<8x32xf32>
    %595 = math.tanh %594 : vector<8x32xf32>
    %cst_138 = arith.constant 1.000000e+00 : f32
    %596 = vector.broadcast %cst_138 : f32 to vector<8x32xf32>
    %597 = arith.subf %596, %590 : vector<8x32xf32>
    %598 = arith.mulf %597, %595 : vector<8x32xf32>
    %599 = arith.mulf %590, %569 : vector<8x32xf32>
    %600 = arith.addf %598, %599 : vector<8x32xf32>
    %c1_i32 = arith.constant 1 : i32
    %601 = vector.broadcast %c1_i32 : i32 to vector<8x1xi32>
    %602 = arith.cmpi sgt, %60, %601 : vector<8x1xi32>
    %603 = vector.shape_cast %602 : vector<8x1xi1> to vector<8x1xi1>
    %604 = vector.broadcast %603 : vector<8x1xi1> to vector<8x32xi1>
    %605 = arith.select %604, %600, %569 : vector<8x32xi1>, vector<8x32xf32>
    %cst_139 = arith.constant dense<0.000000e+00> : vector<8x32xf32>
    %606 = tpu.matmul %605, %61, %cst_139 {dimension_numbers = #tpu.dot_dimension_numbers<[1], [0], [0], [1], [0, 0, 1, 1], [], []>} : vector<8x32xf32>, vector<32x32xf32>, vector<8x32xf32> -> vector<8x32xf32>
    %cst_140 = arith.constant dense<0.000000e+00> : vector<8x32xf32>
    %607 = tpu.matmul %605, %62, %cst_140 {dimension_numbers = #tpu.dot_dimension_numbers<[1], [0], [0], [1], [0, 0, 1, 1], [], []>} : vector<8x32xf32>, vector<32x32xf32>, vector<8x32xf32> -> vector<8x32xf32>
    %cst_141 = arith.constant dense<0.000000e+00> : vector<8x32xf32>
    %608 = tpu.matmul %605, %63, %cst_141 {dimension_numbers = #tpu.dot_dimension_numbers<[1], [0], [0], [1], [0, 0, 1, 1], [], []>} : vector<8x32xf32>, vector<32x32xf32>, vector<8x32xf32> -> vector<8x32xf32>
    %609 = vector.broadcast %64 : vector<1x32xf32> to vector<8x32xf32>
    %610 = arith.addf %608, %609 : vector<8x32xf32>
    %611 = vector.extract_strided_slice %13 {offsets = [0, 0, 0], sizes = [1, 8, 32], strides = [1, 1, 1]} : vector<16x8x32xf32> to vector<1x8x32xf32>
    %612 = vector.shape_cast %611 : vector<1x8x32xf32> to vector<8x32xf32>
    %613 = arith.addf %612, %606 : vector<8x32xf32>
    %614 = arith.negf %613 : vector<8x32xf32>
    %615 = math.exp %614 : vector<8x32xf32>
    %cst_142 = arith.constant 1.000000e+00 : f32
    %616 = vector.broadcast %cst_142 : f32 to vector<8x32xf32>
    %617 = arith.addf %616, %615 : vector<8x32xf32>
    %618 = arith.divf %616, %617 : vector<8x32xf32>
    %619 = vector.extract_strided_slice %19 {offsets = [0, 0, 0], sizes = [1, 8, 32], strides = [1, 1, 1]} : vector<16x8x32xf32> to vector<1x8x32xf32>
    %620 = vector.shape_cast %619 : vector<1x8x32xf32> to vector<8x32xf32>
    %621 = arith.addf %620, %607 : vector<8x32xf32>
    %622 = arith.negf %621 : vector<8x32xf32>
    %623 = math.exp %622 : vector<8x32xf32>
    %cst_143 = arith.constant 1.000000e+00 : f32
    %624 = vector.broadcast %cst_143 : f32 to vector<8x32xf32>
    %625 = arith.addf %624, %623 : vector<8x32xf32>
    %626 = arith.divf %624, %625 : vector<8x32xf32>
    %627 = vector.extract_strided_slice %25 {offsets = [0, 0, 0], sizes = [1, 8, 32], strides = [1, 1, 1]} : vector<16x8x32xf32> to vector<1x8x32xf32>
    %628 = vector.shape_cast %627 : vector<1x8x32xf32> to vector<8x32xf32>
    %629 = arith.mulf %618, %610 : vector<8x32xf32>
    %630 = arith.addf %628, %629 : vector<8x32xf32>
    %631 = math.tanh %630 : vector<8x32xf32>
    %cst_144 = arith.constant 1.000000e+00 : f32
    %632 = vector.broadcast %cst_144 : f32 to vector<8x32xf32>
    %633 = arith.subf %632, %626 : vector<8x32xf32>
    %634 = arith.mulf %633, %631 : vector<8x32xf32>
    %635 = arith.mulf %626, %605 : vector<8x32xf32>
    %636 = arith.addf %634, %635 : vector<8x32xf32>
    %c0_i32 = arith.constant 0 : i32
    %637 = vector.broadcast %c0_i32 : i32 to vector<8x1xi32>
    %638 = arith.cmpi sgt, %60, %637 : vector<8x1xi32>
    %639 = vector.shape_cast %638 : vector<8x1xi1> to vector<8x1xi1>
    %640 = vector.broadcast %639 : vector<8x1xi1> to vector<8x32xi1>
    %641 = arith.select %640, %636, %605 : vector<8x32xi1>, vector<8x32xf32>
    %642 = tpu.concatenate %59, %641 in 1 : vector<8x32xf32>, vector<8x32xf32> -> vector<8x64xf32>
    %643 = arith.mulf %642, %642 : vector<8x64xf32>
    %cst_145 = arith.constant dense<0.000000e+00> : vector<8xf32>
    %644 = vector.multi_reduction <add>, %643, %cst_145 [1] : vector<8x64xf32> to vector<8xf32>
    %645 = vector.shape_cast %644 : vector<8xf32> to vector<8x1xf32>
    %646 = math.rsqrt %645 : vector<8x1xf32>
    %647 = vector.broadcast %646 : vector<8x1xf32> to vector<8x64xf32>
    %648 = arith.mulf %642, %647 : vector<8x64xf32>
    %c0_146 = arith.constant 0 : index
    %c0_147 = arith.constant 0 : index
    %649 = vector.load %arg20[%c0_146, %c0_147] : memref<64x32xf32, #tpu.memory_space<vmem>>, vector<64x32xf32>
    %cst_148 = arith.constant dense<0.000000e+00> : vector<8x32xf32>
    %650 = tpu.matmul %648, %649, %cst_148 {dimension_numbers = #tpu.dot_dimension_numbers<[1], [0], [0], [1], [0, 0, 1, 1], [], []>} : vector<8x64xf32>, vector<64x32xf32>, vector<8x32xf32> -> vector<8x32xf32>
    %c0_149 = arith.constant 0 : index
    %c0_150 = arith.constant 0 : index
    %651 = vector.load %arg21[%c0_149, %c0_150] : memref<1x32xf32, #tpu.memory_space<vmem>>, vector<1x32xf32>
    %652 = vector.broadcast %651 : vector<1x32xf32> to vector<8x32xf32>
    %653 = arith.addf %650, %652 : vector<8x32xf32>
    %cst_151 = arith.constant 0.000000e+00 : f32
    %654 = vector.broadcast %cst_151 : f32 to vector<8x32xf32>
    %655 = arith.maximumf %653, %654 : vector<8x32xf32>
    %c0_152 = arith.constant 0 : index
    %c0_153 = arith.constant 0 : index
    %656 = vector.load %arg22[%c0_152, %c0_153] : memref<32x1xf32, #tpu.memory_space<vmem>>, vector<32x1xf32>
    %cst_154 = arith.constant dense<0.000000e+00> : vector<8x1xf32>
    %657 = tpu.matmul %655, %656, %cst_154 {dimension_numbers = #tpu.dot_dimension_numbers<[1], [0], [0], [1], [0, 0, 1, 1], [], []>} : vector<8x32xf32>, vector<32x1xf32>, vector<8x1xf32> -> vector<8x1xf32>
    %c0_155 = arith.constant 0 : index
    %c0_156 = arith.constant 0 : index
    %658 = vector.load %arg23[%c0_155, %c0_156] : memref<1x1xf32, #tpu.memory_space<vmem>>, vector<1x1xf32>
    %659 = vector.broadcast %658 : vector<1x1xf32> to vector<8x1xf32>
    %660 = arith.addf %657, %659 : vector<8x1xf32>
    %c0_157 = arith.constant 0 : index
    %c0_158 = arith.constant 0 : index
    %661 = vector.load %arg24[%c0_157, %c0_158] : memref<8x1xf32, #tpu.memory_space<vmem>>, vector<8x1xf32>
    tpu.vector_store %arg24[%c0_157, %c0_158], %660 {strides = array<i32>} : memref<8x1xf32, #tpu.memory_space<vmem>>, vector<8x1xf32>,
    return
  }
}

</mosaic_0001>

<llo_original>
// kernel: gru_utility_forward.1
$region0: #{gru_utility_forward.1}
  #allocation0 [shape = 'u32[]', space=smem, size = 0x4, offset = 0x4, fixed_abs, tag = 'smem constant byte address 0x4 - core index']
  #allocation1 [shape = 'u32[144,128]{1,0:T(1,128)}', space=vmem, size = 0x12000, scoped, tag = 'internal scratch']
  #allocation2 [shape = 'f32[1,1]{1,0:T(1,128)S(1)}', space=vmem, size = 0x200, scoped, tag = 'scoped memory for gru_utility_forward.1']
  %s0 = inlined_call_operand.vmem [shape: s32[128,1], index: 0, kind: input, shape index: {}]
  %s1 = inlined_call_operand.vmem [shape: s32[8,1], index: 1, kind: input, shape index: {}]
  %s2 = inlined_call_operand.vmem [shape: f32[128,32], index: 2, kind: input, shape index: {}]
  %s3 = inlined_call_operand.vmem [shape: f32[32,32], index: 3, kind: input, shape index: {}]
  %s4 = inlined_call_operand.vmem [shape: f32[32,32], index: 4, kind: input, shape index: {}]
  %s5 = inlined_call_operand.vmem [shape: f32[32,32], index: 5, kind: input, shape index: {}]
  %s6 = inlined_call_operand.vmem [shape: f32[1,32], index: 6, kind: input, shape index: {}]
  %s7 = inlined_call_operand.vmem [shape: f32[1,32], index: 7, kind: input, shape index: {}]
  %s8 = inlined_call_operand.vmem [shape: f32[1,32], index: 8, kind: input, shape index: {}]
  %s9 = inlined_call_operand.vmem [shape: f32[1,32], index: 9, kind: input, shape index: {}]
  %s10 = inlined_call_operand.vmem [shape: f32[32,32], index: 10, kind: input, shape index: {}]
  %s11 = inlined_call_operand.vmem [shape: f32[32,32], index: 11, kind: input, shape index: {}]
  %s12 = inlined_call_operand.vmem [shape: f32[32,32], index: 12, kind: input, shape index: {}]
  %s13 = inlined_call_operand.vmem [shape: f32[32,32], index: 13, kind: input, shape index: {}]
  %s14 = inlined_call_operand.vmem [shape: f32[32,32], index: 14, kind: input, shape index: {}]
  %s15 = inlined_call_operand.vmem [shape: f32[32,32], index: 15, kind: input, shape index: {}]
  %s16 = inlined_call_operand.vmem [shape: f32[1,32], index: 16, kind: input, shape index: {}]
  %s17 = inlined_call_operand.vmem [shape: f32[1,32], index: 17, kind: input, shape index: {}]
  %s18 = inlined_call_operand.vmem [shape: f32[1,32], index: 18, kind: input, shape index: {}]
  %s19 = inlined_call_operand.vmem [shape: f32[1,32], index: 19, kind: input, shape index: {}]
  %s20 = inlined_call_operand.vmem [shape: f32[64,32], index: 20, kind: input, shape index: {}]
  %s21 = inlined_call_operand.vmem [shape: f32[1,32], index: 21, kind: input, shape index: {}]
  %s22 = inlined_call_operand.vmem [shape: f32[32,1], index: 22, kind: input, shape index: {}]
  %s23 = inlined_call_operand.<no memory space> [shape: f32[1,1], index: 23, kind: input, shape index: {}]
  %s24 = inlined_call_operand.vmem [shape: f32[8,1], index: 24, kind: output, shape index: {}]
  %s25 = sld [smem:[#allocation0]]
  $region106: #{gru_utility_forward.1} parent=0
    _
  %s27 = ssub.s32 1, %s25
  %s28 = scalar_select 0, %s27, %s25
  %v29 = vstv %s23
  %30 = vst [vmem:[#allocation2] sm:$0x1] %v29
  // Predicated region
  $region2: #{gru_utility_forward.1} parent=0 // pred_check
    _
  $region3: #{gru_utility_forward.1} parent=0 // pred_check_branch
    %32 = sbr.rel (0) target = $region5
  $region4: #{gru_utility_forward.1} parent=0 // pred_region
    _
  $region5: #{gru_utility_forward.1} parent=0 // pred_fallthru
    _
  // Predicated region
  $region6: #{gru_utility_forward.1} parent=0 // pred_check
    _
  $region7: #{gru_utility_forward.1} parent=0 // pred_check_branch
    %34 = sbr.rel (0) target = $region9
  $region8: #{gru_utility_forward.1} parent=0 // pred_region
    _
  $region9: #{gru_utility_forward.1} parent=0 // pred_fallthru
    _
  // Predicated region
  $region10: #{gru_utility_forward.1} parent=0 // pred_check
    _
  $region11: #{gru_utility_forward.1} parent=0 // pred_check_branch
    %36 = sbr.rel (0) target = $region13
  $region12: #{gru_utility_forward.1} parent=0 // pred_region
    _
  $region13: #{gru_utility_forward.1} parent=0 // pred_fallthru
    _
  // Predicated region
  $region14: #{gru_utility_forward.1} parent=0 // pred_check
    _
  $region15: #{gru_utility_forward.1} parent=0 // pred_check_branch
    %38 = sbr.rel (0) target = $region17
  $region16: #{gru_utility_forward.1} parent=0 // pred_region
    _
  $region17: #{gru_utility_forward.1} parent=0 // pred_fallthru
    _
  // Predicated region
  $region18: #{gru_utility_forward.1} parent=0 // pred_check
    _
  $region19: #{gru_utility_forward.1} parent=0 // pred_check_branch
    %40 = sbr.rel (0) target = $region21
  $region20: #{gru_utility_forward.1} parent=0 // pred_region
    _
  $region21: #{gru_utility_forward.1} parent=0 // pred_fallthru
    _
  // Predicated region
  $region22: #{gru_utility_forward.1} parent=0 // pred_check
    _
  $region23: #{gru_utility_forward.1} parent=0 // pred_check_branch
    %42 = sbr.rel (0) target = $region25
  $region24: #{gru_utility_forward.1} parent=0 // pred_region
    _
  $region25: #{gru_utility_forward.1} parent=0 // pred_fallthru
    _
  // Predicated region
  $region26: #{gru_utility_forward.1} parent=0 // pred_check
    _
  $region27: #{gru_utility_forward.1} parent=0 // pred_check_branch
    %44 = sbr.rel (0) target = $region29
  $region28: #{gru_utility_forward.1} parent=0 // pred_region
    _
  $region29: #{gru_utility_forward.1} parent=0 // pred_fallthru
    _
  // Predicated region
  $region30: #{gru_utility_forward.1} parent=0 // pred_check
    _
  $region31: #{gru_utility_forward.1} parent=0 // pred_check_branch
    %46 = sbr.rel (0) target = $region33
  $region32: #{gru_utility_forward.1} parent=0 // pred_region
    _
  $region33: #{gru_utility_forward.1} parent=0 // pred_fallthru
    _
  // Predicated region
  $region34: #{gru_utility_forward.1} parent=0 // pred_check
    _
  $region35: #{gru_utility_forward.1} parent=0 // pred_check_branch
    %48 = sbr.rel (0) target = $region37
  $region36: #{gru_utility_forward.1} parent=0 // pred_region
    _
  $region37: #{gru_utility_forward.1} parent=0 // pred_fallthru
    _
  // Predicated region
  $region38: #{gru_utility_forward.1} parent=0 // pred_check
    _
  $region39: #{gru_utility_forward.1} parent=0 // pred_check_branch
    %50 = sbr.rel (0) target = $region41
  $region40: #{gru_utility_forward.1} parent=0 // pred_region
    _
  $region41: #{gru_utility_forward.1} parent=0 // pred_fallthru
    _
  // Predicated region
  $region42: #{gru_utility_forward.1} parent=0 // pred_check
    _
  $region43: #{gru_utility_forward.1} parent=0 // pred_check_branch
    %52 = sbr.rel (0) target = $region45
  $region44: #{gru_utility_forward.1} parent=0 // pred_region
    _
  $region45: #{gru_utility_forward.1} parent=0 // pred_fallthru
    _
  // Predicated region
  $region46: #{gru_utility_forward.1} parent=0 // pred_check
    _
  $region47: #{gru_utility_forward.1} parent=0 // pred_check_branch
    %54 = sbr.rel (0) target = $region49
  $region48: #{gru_utility_forward.1} parent=0 // pred_region
    _
  $region49: #{gru_utility_forward.1} parent=0 // pred_fallthru
    _
  // Predicated region
  $region50: #{gru_utility_forward.1} parent=0 // pred_check
    _
  $region51: #{gru_utility_forward.1} parent=0 // pred_check_branch
    %56 = sbr.rel (0) target = $region53
  $region52: #{gru_utility_forward.1} parent=0 // pred_region
    _
  $region53: #{gru_utility_forward.1} parent=0 // pred_fallthru
    _
  // Predicated region
  $region54: #{gru_utility_forward.1} parent=0 // pred_check
    _
  $region55: #{gru_utility_forward.1} parent=0 // pred_check_branch
    %58 = sbr.rel (0) target = $region57
  $region56: #{gru_utility_forward.1} parent=0 // pred_region
    _
  $region57: #{gru_utility_forward.1} parent=0 // pred_fallthru
    _
  // Predicated region
  $region58: #{gru_utility_forward.1} parent=0 // pred_check
    _
  $region59: #{gru_utility_forward.1} parent=0 // pred_check_branch
    %60 = sbr.rel (0) target = $region61
  $region60: #{gru_utility_forward.1} parent=0 // pred_region
    _
  $region61: #{gru_utility_forward.1} parent=0 // pred_fallthru
    _
  // Predicated region
  $region62: #{gru_utility_forward.1} parent=0 // pred_check
    _
  $region63: #{gru_utility_forward.1} parent=0 // pred_check_branch
    %62 = sbr.rel (0) target = $region65
  $region64: #{gru_utility_forward.1} parent=0 // pred_region
    _
  $region65: #{gru_utility_forward.1} parent=0 // pred_fallthru
    _
  // Predicated region
  $region66: #{gru_utility_forward.1} parent=0 // pred_check
    _
  $region67: #{gru_utility_forward.1} parent=0 // pred_check_branch
    %64 = sbr.rel (0) target = $region69
  $region68: #{gru_utility_forward.1} parent=0 // pred_region
    _
  $region69: #{gru_utility_forward.1} parent=0 // pred_fallthru
    _
  // Predicated region
  $region70: #{gru_utility_forward.1} parent=0 // pred_check
    _
  $region71: #{gru_utility_forward.1} parent=0 // pred_check_branch
    %66 = sbr.rel (0) target = $region73
  $region72: #{gru_utility_forward.1} parent=0 // pred_region
    _
  $region73: #{gru_utility_forward.1} parent=0 // pred_fallthru
    _
  // Predicated region
  $region74: #{gru_utility_forward.1} parent=0 // pred_check
    _
  $region75: #{gru_utility_forward.1} parent=0 // pred_check_branch
    %68 = sbr.rel (0) target = $region77
  $region76: #{gru_utility_forward.1} parent=0 // pred_region
    _
  $region77: #{gru_utility_forward.1} parent=0 // pred_fallthru
    _
  // Predicated region
  $region78: #{gru_utility_forward.1} parent=0 // pred_check
    _
  $region79: #{gru_utility_forward.1} parent=0 // pred_check_branch
    %70 = sbr.rel (0) target = $region81
  $region80: #{gru_utility_forward.1} parent=0 // pred_region
    _
  $region81: #{gru_utility_forward.1} parent=0 // pred_fallthru
    _
  // Predicated region
  $region82: #{gru_utility_forward.1} parent=0 // pred_check
    _
  $region83: #{gru_utility_forward.1} parent=0 // pred_check_branch
    %72 = sbr.rel (0) target = $region85
  $region84: #{gru_utility_forward.1} parent=0 // pred_region
    _
  $region85: #{gru_utility_forward.1} parent=0 // pred_fallthru
    _
  // Predicated region
  $region86: #{gru_utility_forward.1} parent=0 // pred_check
    _
  $region87: #{gru_utility_forward.1} parent=0 // pred_check_branch
    %74 = sbr.rel (0) target = $region89
  $region88: #{gru_utility_forward.1} parent=0 // pred_region
    _
  $region89: #{gru_utility_forward.1} parent=0 // pred_fallthru
    _
  // Predicated region
  $region90: #{gru_utility_forward.1} parent=0 // pred_check
    _
  $region91: #{gru_utility_forward.1} parent=0 // pred_check_branch
    %76 = sbr.rel (0) target = $region93
  $region92: #{gru_utility_forward.1} parent=0 // pred_region
    _
  $region93: #{gru_utility_forward.1} parent=0 // pred_fallthru
    _
  // Predicated region
  $region94: #{gru_utility_forward.1} parent=0 // pred_check
    _
  $region95: #{gru_utility_forward.1} parent=0 // pred_check_branch
    %78 = sbr.rel (0) target = $region97
  $region96: #{gru_utility_forward.1} parent=0 // pred_region
    _
  $region97: #{gru_utility_forward.1} parent=0 // pred_fallthru
    _
  %v79 = vld [vmem:[%s0] sm:$0xff]
  %v80 = vld [vmem:[%s0 + $0x8] sm:$0xff]
  %v81 = vld [vmem:[%s0 + $0x10] sm:$0xff]
  %v82 = vld [vmem:[%s0 + $0x18] sm:$0xff]
  %v83 = vld [vmem:[%s0 + $0x20] sm:$0xff]
  %v84 = vld [vmem:[%s0 + $0x28] sm:$0xff]
  %v85 = vld [vmem:[%s0 + $0x30] sm:$0xff]
  %v86 = vld [vmem:[%s0 + $0x38] sm:$0xff]
  %v87 = vld [vmem:[%s0 + $0x40] sm:$0xff]
  %v88 = vld [vmem:[%s0 + $0x48] sm:$0xff]
  %v89 = vld [vmem:[%s0 + $0x50] sm:$0xff]
  %v90 = vld [vmem:[%s0 + $0x58] sm:$0xff]
  %v91 = vld [vmem:[%s0 + $0x60] sm:$0xff]
  %v92 = vld [vmem:[%s0 + $0x68] sm:$0xff]
  %v93 = vld [vmem:[%s0 + $0x70] sm:$0xff]
  %v94 = vld [vmem:[%s0 + $0x78] sm:$0xff]
  %v95 = vlaneseq
  %v96 = vand.u32 %v95, 127
  %97 = vset.pattern.permute.xlu0 0
  %98 = vperm.xlu0 %97, %v79
  %v99 = vpop.permute.xlu0 %98
  %100 = vset.pattern.permute.xlu0 0
  %101 = vperm.xlu0 %100, %v80
  %v102 = vpop.permute.xlu0 %101
  %103 = vset.pattern.permute.xlu0 0
  %104 = vperm.xlu0 %103, %v81
  %v105 = vpop.permute.xlu0 %104
  %106 = vset.pattern.permute.xlu0 0
  %107 = vperm.xlu0 %106, %v82
  %v108 = vpop.permute.xlu0 %107
  %109 = vset.pattern.permute.xlu0 0
  %110 = vperm.xlu0 %109, %v83
  %v111 = vpop.permute.xlu0 %110
  %112 = vset.pattern.permute.xlu0 0
  %113 = vperm.xlu0 %112, %v84
  %v114 = vpop.permute.xlu0 %113
  %115 = vset.pattern.permute.xlu0 0
  %116 = vperm.xlu0 %115, %v85
  %v117 = vpop.permute.xlu0 %116
  %118 = vset.pattern.permute.xlu0 0
  %119 = vperm.xlu0 %118, %v86
  %v120 = vpop.permute.xlu0 %119
  %121 = vset.pattern.permute.xlu0 0
  %122 = vperm.xlu0 %121, %v87
  %v123 = vpop.permute.xlu0 %122
  %124 = vset.pattern.permute.xlu0 0
  %125 = vperm.xlu0 %124, %v88
  %v126 = vpop.permute.xlu0 %125
  %127 = vset.pattern.permute.xlu0 0
  %128 = vperm.xlu0 %127, %v89
  %v129 = vpop.permute.xlu0 %128
  %130 = vset.pattern.permute.xlu0 0
  %131 = vperm.xlu0 %130, %v90
  %v132 = vpop.permute.xlu0 %131
  %133 = vset.pattern.permute.xlu0 0
  %134 = vperm.xlu0 %133, %v91
  %v135 = vpop.permute.xlu0 %134
  %136 = vset.pattern.permute.xlu0 0
  %137 = vperm.xlu0 %136, %v92
  %v138 = vpop.permute.xlu0 %137
  %139 = vset.pattern.permute.xlu0 0
  %140 = vperm.xlu0 %139, %v93
  %v141 = vpop.permute.xlu0 %140
  %142 = vset.pattern.permute.xlu0 0
  %143 = vperm.xlu0 %142, %v94
  %v144 = vpop.permute.xlu0 %143
  %vm145 = vcmp.eq.s32.totalorder %v99, %v96
  %vm146 = vcmp.eq.s32.totalorder %v102, %v96
  %vm147 = vcmp.eq.s32.totalorder %v105, %v96
  %vm148 = vcmp.eq.s32.totalorder %v108, %v96
  %vm149 = vcmp.eq.s32.totalorder %v111, %v96
  %vm150 = vcmp.eq.s32.totalorder %v114, %v96
  %vm151 = vcmp.eq.s32.totalorder %v117, %v96
  %vm152 = vcmp.eq.s32.totalorder %v120, %v96
  %vm153 = vcmp.eq.s32.totalorder %v123, %v96
  %vm154 = vcmp.eq.s32.totalorder %v126, %v96
  %vm155 = vcmp.eq.s32.totalorder %v129, %v96
  %vm156 = vcmp.eq.s32.totalorder %v132, %v96
  %vm157 = vcmp.eq.s32.totalorder %v135, %v96
  %vm158 = vcmp.eq.s32.totalorder %v138, %v96
  %vm159 = vcmp.eq.s32.totalorder %v141, %v96
  %vm160 = vcmp.eq.s32.totalorder %v144, %v96
  %v161 = vsel %vm145, 1, 0
  %v162 = vsel %vm146, 1, 0
  %v163 = vsel %vm147, 1, 0
  %v164 = vsel %vm148, 1, 0
  %v165 = vsel %vm149, 1, 0
  %v166 = vsel %vm150, 1, 0
  %v167 = vsel %vm151, 1, 0
  %v168 = vsel %vm152, 1, 0
  %v169 = vsel %vm153, 1, 0
  %v170 = vsel %vm154, 1, 0
  %v171 = vsel %vm155, 1, 0
  %v172 = vsel %vm156, 1, 0
  %v173 = vsel %vm157, 1, 0
  %v174 = vsel %vm158, 1, 0
  %v175 = vsel %vm159, 1, 0
  %v176 = vsel %vm160, 1, 0
  %v177 = vcvt.s32.f32 %v161
  %v178 = vcvt.s32.f32 %v162
  %v179 = vcvt.s32.f32 %v163
  %v180 = vcvt.s32.f32 %v164
  %v181 = vcvt.s32.f32 %v165
  %v182 = vcvt.s32.f32 %v166
  %v183 = vcvt.s32.f32 %v167
  %v184 = vcvt.s32.f32 %v168
  %v185 = vcvt.s32.f32 %v169
  %v186 = vcvt.s32.f32 %v170
  %v187 = vcvt.s32.f32 %v171
  %v188 = vcvt.s32.f32 %v172
  %v189 = vcvt.s32.f32 %v173
  %v190 = vcvt.s32.f32 %v174
  %v191 = vcvt.s32.f32 %v175
  %v192 = vcvt.s32.f32 %v176
  %v193 = vld [vmem:[%s2] sm:$0xff]
  %v194 = vld [vmem:[%s2 + $0x8] sm:$0xff]
  %v195 = vld [vmem:[%s2 + $0x10] sm:$0xff]
  %v196 = vld [vmem:[%s2 + $0x18] sm:$0xff]
  %v197 = vld [vmem:[%s2 + $0x20] sm:$0xff]
  %v198 = vld [vmem:[%s2 + $0x28] sm:$0xff]
  %v199 = vld [vmem:[%s2 + $0x30] sm:$0xff]
  %v200 = vld [vmem:[%s2 + $0x38] sm:$0xff]
  %v201 = vld [vmem:[%s2 + $0x40] sm:$0xff]
  %v202 = vld [vmem:[%s2 + $0x48] sm:$0xff]
  %v203 = vld [vmem:[%s2 + $0x50] sm:$0xff]
  %v204 = vld [vmem:[%s2 + $0x58] sm:$0xff]
  %v205 = vld [vmem:[%s2 + $0x60] sm:$0xff]
  %v206 = vld [vmem:[%s2 + $0x68] sm:$0xff]
  %v207 = vld [vmem:[%s2 + $0x70] sm:$0xff]
  %v208 = vld [vmem:[%s2 + $0x78] sm:$0xff]
  %209 = vmatprep.subr.mxu0 0.0
  %210 = vmatpush1.msra.mxu0 %v208
  %211 = vmatprep.subr.mxu0 0.0
  %212 = vmatpush1.msra.mxu0 %v207
  %213 = vmatprep.subr.mxu0 0.0
  %214 = vmatpush1.msra.mxu0 %v206
  %215 = vmatprep.subr.mxu0 0.0
  %216 = vmatpush1.msra.mxu0 %v205
  %217 = vmatprep.subr.mxu0 0.0
  %218 = vmatpush1.msra.mxu0 %v204
  %219 = vmatprep.subr.mxu0 0.0
  %220 = vmatpush1.msra.mxu0 %v203
  %221 = vmatprep.subr.mxu0 0.0
  %222 = vmatpush1.msra.mxu0 %v202
  %223 = vmatprep.subr.mxu0 0.0
  %224 = vmatpush1.msra.mxu0 %v201
  %225 = vmatprep.subr.mxu0 0.0
  %226 = vmatpush1.msra.mxu0 %v200
  %227 = vmatprep.subr.mxu0 0.0
  %228 = vmatpush1.msra.mxu0 %v199
  %229 = vmatprep.subr.mxu0 0.0
  %230 = vmatpush1.msra.mxu0 %v198
  %231 = vmatprep.subr.mxu0 0.0
  %232 = vmatpush1.msra.mxu0 %v197
  %233 = vmatprep.subr.mxu0 0.0
  %234 = vmatpush1.msra.mxu0 %v196
  %235 = vmatprep.subr.mxu0 0.0
  %236 = vmatpush1.msra.mxu0 %v195
  %237 = vmatprep.subr.mxu0 0.0
  %238 = vmatpush1.msra.mxu0 %v194
  %239 = vmatprep.subr.mxu0 0.0
  %240 = vmatpush1.msra.mxu0 %v193
  %241 = vmatprep.subr.mxu0 0.0
  %242 = vmatpush2.msra.mxu0 0.0
  %243 = vmatprep.subr.mxu0 0.0
  %244 = vmatpush2.msra.mxu0 0.0
  %245 = vmatprep.subr.mxu0 0.0
  %246 = vmatpush2.msra.mxu0 0.0
  %247 = vmatprep.subr.mxu0 0.0
  %248 = vmatpush2.msra.mxu0 0.0
  %249 = vmatprep.subr.mxu0 0.0
  %250 = vmatpush2.msra.mxu0 0.0
  %251 = vmatprep.subr.mxu0 0.0
  %252 = vmatpush2.msra.mxu0 0.0
  %253 = vmatprep.subr.mxu0 0.0
  %254 = vmatpush2.msra.mxu0 0.0
  %255 = vmatprep.subr.mxu0 0.0
  %256 = vmatpush2.msra.mxu0 0.0
  %257 = vmatprep.subr.mxu0 0.0
  %258 = vmatpush2.msra.mxu0 0.0
  %259 = vmatprep.subr.mxu0 0.0
  %260 = vmatpush2.msra.mxu0 0.0
  %261 = vmatprep.subr.mxu0 0.0
  %262 = vmatpush2.msra.mxu0 0.0
  %263 = vmatprep.subr.mxu0 0.0
  %264 = vmatpush2.msra.mxu0 0.0
  %265 = vmatprep.subr.mxu0 0.0
  %266 = vmatpush2.msra.mxu0 0.0
  %267 = vmatprep.subr.mxu0 0.0
  %268 = vmatpush2.msra.mxu0 0.0
  %269 = vmatprep.subr.mxu0 0.0
  %270 = vmatpush2.msra.mxu0 0.0
  %271 = vmatprep.subr.mxu0 0.0
  %272 = vmatpush2.msra.mxu0 0.0
  %273 = vmatprep.mubr.f32.mxu0 0.0
  %274 = vmatmul.mubr.f32.gmra.mxu0 %v177
  %v275 = vpop.f32.mrf.mxu0
  %v276 = vadd.f32 0.0, %v275
  %v277 = vpop.f32.mrf.mxu0
  %278 = vmatprep.mubr.f32.mxu0 0.0
  %279 = vmatmul.mubr.f32.gmra.mxu0 %v178
  %v280 = vpop.f32.mrf.mxu0
  %v281 = vadd.f32 0.0, %v280
  %v282 = vpop.f32.mrf.mxu0
  %283 = vmatprep.mubr.f32.mxu0 0.0
  %284 = vmatmul.mubr.f32.gmra.mxu0 %v179
  %v285 = vpop.f32.mrf.mxu0
  %v286 = vadd.f32 0.0, %v285
  %v287 = vpop.f32.mrf.mxu0
  %288 = vmatprep.mubr.f32.mxu0 0.0
  %289 = vmatmul.mubr.f32.gmra.mxu0 %v180
  %v290 = vpop.f32.mrf.mxu0
  %v291 = vadd.f32 0.0, %v290
  %v292 = vpop.f32.mrf.mxu0
  %293 = vmatprep.mubr.f32.mxu0 0.0
  %294 = vmatmul.mubr.f32.gmra.mxu0 %v181
  %v295 = vpop.f32.mrf.mxu0
  %v296 = vadd.f32 0.0, %v295
  %v297 = vpop.f32.mrf.mxu0
  %298 = vmatprep.mubr.f32.mxu0 0.0
  %299 = vmatmul.mubr.f32.gmra.mxu0 %v182
  %v300 = vpop.f32.mrf.mxu0
  %v301 = vadd.f32 0.0, %v300
  %v302 = vpop.f32.mrf.mxu0
  %303 = vmatprep.mubr.f32.mxu0 0.0
  %304 = vmatmul.mubr.f32.gmra.mxu0 %v183
  %v305 = vpop.f32.mrf.mxu0
  %v306 = vadd.f32 0.0, %v305
  %v307 = vpop.f32.mrf.mxu0
  %308 = vmatprep.mubr.f32.mxu0 0.0
  %309 = vmatmul.mubr.f32.gmra.mxu0 %v184
  %v310 = vpop.f32.mrf.mxu0
  %v311 = vadd.f32 0.0, %v310
  %v312 = vpop.f32.mrf.mxu0
  %313 = vmatprep.mubr.f32.mxu0 0.0
  %314 = vmatmul.mubr.f32.gmra.mxu0 %v185
  %v315 = vpop.f32.mrf.mxu0
  %v316 = vadd.f32 0.0, %v315
  %v317 = vpop.f32.mrf.mxu0
  %318 = vmatprep.mubr.f32.mxu0 0.0
  %319 = vmatmul.mubr.f32.gmra.mxu0 %v186
  %v320 = vpop.f32.mrf.mxu0
  %v321 = vadd.f32 0.0, %v320
  %v322 = vpop.f32.mrf.mxu0
  %323 = vmatprep.mubr.f32.mxu0 0.0
  %324 = vmatmul.mubr.f32.gmra.mxu0 %v187
  %v325 = vpop.f32.mrf.mxu0
  %v326 = vadd.f32 0.0, %v325
  %v327 = vpop.f32.mrf.mxu0
  %328 = vmatprep.mubr.f32.mxu0 0.0
  %329 = vmatmul.mubr.f32.gmra.mxu0 %v188
  %v330 = vpop.f32.mrf.mxu0
  %v331 = vadd.f32 0.0, %v330
  %v332 = vpop.f32.mrf.mxu0
  %333 = vmatprep.mubr.f32.mxu0 0.0
  %334 = vmatmul.mubr.f32.gmra.mxu0 %v189
  %v335 = vpop.f32.mrf.mxu0
  %v336 = vadd.f32 0.0, %v335
  %v337 = vpop.f32.mrf.mxu0
  %338 = vmatprep.mubr.f32.mxu0 0.0
  %339 = vmatmul.mubr.f32.gmra.mxu0 %v190
  %v340 = vpop.f32.mrf.mxu0
  %v341 = vadd.f32 0.0, %v340
  %v342 = vpop.f32.mrf.mxu0
  %343 = vmatprep.mubr.f32.mxu0 0.0
  %344 = vmatmul.mubr.f32.gmra.mxu0 %v191
  %v345 = vpop.f32.mrf.mxu0
  %v346 = vadd.f32 0.0, %v345
  %v347 = vpop.f32.mrf.mxu0
  %348 = vmatprep.mubr.f32.mxu0 0.0
  %349 = vmatmul.mubr.f32.gmra.mxu0 %v192
  %v350 = vpop.f32.mrf.mxu0
  %v351 = vadd.f32 0.0, %v350
  %v352 = vpop.f32.mrf.mxu0
  %353 = vdwg.mxu0
  %v354 = vld [vmem:[%s10] sm:$0xff]
  %v355 = vld [vmem:[%s10 + $0x8] sm:$0xff]
  %v356 = vld [vmem:[%s10 + $0x10] sm:$0xff]
  %v357 = vld [vmem:[%s10 + $0x18] sm:$0xff]
  %v358 = vld [vmem:[%s16] sm:$0x1]
  %v360 = vlaneseq
  %v361 = vshrl.u32 %v360, 7
  %v362 = vsub.s32 0, %v361
  %v363 = vrot.slane %v358, %v362
  %vm365 = vcmask 261120
  %v367 = vsel %vm365, %v276, 0
  %v370 = vsel %vm365, %v281, 0
  %v373 = vsel %vm365, %v286, 0
  %v376 = vsel %vm365, %v291, 0
  %v379 = vsel %vm365, %v296, 0
  %v382 = vsel %vm365, %v301, 0
  %v385 = vsel %vm365, %v306, 0
  %v388 = vsel %vm365, %v311, 0
  %v391 = vsel %vm365, %v316, 0
  %v394 = vsel %vm365, %v321, 0
  %v397 = vsel %vm365, %v326, 0
  %v400 = vsel %vm365, %v331, 0
  %v403 = vsel %vm365, %v336, 0
  %v406 = vsel %vm365, %v341, 0
  %v409 = vsel %vm365, %v346, 0
  %v412 = vsel %vm365, %v351, 0
  %414 = vmatprep.subr.mxu0 0.0
  %415 = vmatpush1.msra.mxu0 0.0
  %416 = vmatprep.subr.mxu0 0.0
  %417 = vmatpush1.msra.mxu0 0.0
  %418 = vmatprep.subr.mxu0 0.0
  %419 = vmatpush1.msra.mxu0 0.0
  %420 = vmatprep.subr.mxu0 0.0
  %421 = vmatpush1.msra.mxu0 0.0
  %422 = vmatprep.subr.mxu0 0.0
  %423 = vmatpush1.msra.mxu0 0.0
  %424 = vmatprep.subr.mxu0 0.0
  %425 = vmatpush1.msra.mxu0 0.0
  %426 = vmatprep.subr.mxu0 0.0
  %427 = vmatpush1.msra.mxu0 0.0
  %428 = vmatprep.subr.mxu0 0.0
  %429 = vmatpush1.msra.mxu0 0.0
  %430 = vmatprep.subr.mxu0 0.0
  %431 = vmatpush1.msra.mxu0 0.0
  %432 = vmatprep.subr.mxu0 0.0
  %433 = vmatpush1.msra.mxu0 0.0
  %434 = vmatprep.subr.mxu0 0.0
  %435 = vmatpush1.msra.mxu0 0.0
  %436 = vmatprep.subr.mxu0 0.0
  %437 = vmatpush1.msra.mxu0 0.0
  %438 = vmatprep.subr.mxu0 0.0
  %439 = vmatpush1.msra.mxu0 %v357
  %440 = vmatprep.subr.mxu0 0.0
  %441 = vmatpush1.msra.mxu0 %v356
  %442 = vmatprep.subr.mxu0 0.0
  %443 = vmatpush1.msra.mxu0 %v355
  %444 = vmatprep.subr.mxu0 0.0
  %445 = vmatpush1.msra.mxu0 %v354
  %446 = vmatprep.subr.mxu0 0.0
  %447 = vmatpush2.msra.mxu0 0.0
  %448 = vmatprep.subr.mxu0 0.0
  %449 = vmatpush2.msra.mxu0 0.0
  %450 = vmatprep.subr.mxu0 0.0
  %451 = vmatpush2.msra.mxu0 0.0
  %452 = vmatprep.subr.mxu0 0.0
  %453 = vmatpush2.msra.mxu0 0.0
  %454 = vmatprep.subr.mxu0 0.0
  %455 = vmatpush2.msra.mxu0 0.0
  %456 = vmatprep.subr.mxu0 0.0
  %457 = vmatpush2.msra.mxu0 0.0
  %458 = vmatprep.subr.mxu0 0.0
  %459 = vmatpush2.msra.mxu0 0.0
  %460 = vmatprep.subr.mxu0 0.0
  %461 = vmatpush2.msra.mxu0 0.0
  %462 = vmatprep.subr.mxu0 0.0
  %463 = vmatpush2.msra.mxu0 0.0
  %464 = vmatprep.subr.mxu0 0.0
  %465 = vmatpush2.msra.mxu0 0.0
  %466 = vmatprep.subr.mxu0 0.0
  %467 = vmatpush2.msra.mxu0 0.0
  %468 = vmatprep.subr.mxu0 0.0
  %469 = vmatpush2.msra.mxu0 0.0
  %470 = vmatprep.subr.mxu0 0.0
  %471 = vmatpush2.msra.mxu0 0.0
  %472 = vmatprep.subr.mxu0 0.0
  %473 = vmatpush2.msra.mxu0 0.0
  %474 = vmatprep.subr.mxu0 0.0
  %475 = vmatpush2.msra.mxu0 0.0
  %476 = vmatprep.subr.mxu0 0.0
  %477 = vmatpush2.msra.mxu0 0.0
  %478 = vmatprep.mubr.f32.mxu0 0.0
  %479 = vmatmul.mubr.f32.gmra.mxu0 %v367
  %v480 = vpop.f32.mrf.mxu0
  %v481 = vadd.f32 %v363, %v480
  %v482 = vpop.f32.mrf.mxu0
  %483 = vmatprep.mubr.f32.mxu0 0.0
  %484 = vmatmul.mubr.f32.gmra.mxu0 %v370
  %v485 = vpop.f32.mrf.mxu0
  %v486 = vadd.f32 %v363, %v485
  %v487 = vpop.f32.mrf.mxu0
  %488 = vmatprep.mubr.f32.mxu0 0.0
  %489 = vmatmul.mubr.f32.gmra.mxu0 %v373
  %v490 = vpop.f32.mrf.mxu0
  %v491 = vadd.f32 %v363, %v490
  %v492 = vpop.f32.mrf.mxu0
  %493 = vmatprep.mubr.f32.mxu0 0.0
  %494 = vmatmul.mubr.f32.gmra.mxu0 %v376
  %v495 = vpop.f32.mrf.mxu0
  %v496 = vadd.f32 %v363, %v495
  %v497 = vpop.f32.mrf.mxu0
  %498 = vmatprep.mubr.f32.mxu0 0.0
  %499 = vmatmul.mubr.f32.gmra.mxu0 %v379
  %v500 = vpop.f32.mrf.mxu0
  %v501 = vadd.f32 %v363, %v500
  %v502 = vpop.f32.mrf.mxu0
  %503 = vmatprep.mubr.f32.mxu0 0.0
  %504 = vmatmul.mubr.f32.gmra.mxu0 %v382
  %v505 = vpop.f32.mrf.mxu0
  %v506 = vadd.f32 %v363, %v505
  %v507 = vpop.f32.mrf.mxu0
  %508 = vmatprep.mubr.f32.mxu0 0.0
  %509 = vmatmul.mubr.f32.gmra.mxu0 %v385
  %v510 = vpop.f32.mrf.mxu0
  %v511 = vadd.f32 %v363, %v510
  %v512 = vpop.f32.mrf.mxu0
  %513 = vmatprep.mubr.f32.mxu0 0.0
  %514 = vmatmul.mubr.f32.gmra.mxu0 %v388
  %v515 = vpop.f32.mrf.mxu0
  %v516 = vadd.f32 %v363, %v515
  %v517 = vpop.f32.mrf.mxu0
  %518 = vmatprep.mubr.f32.mxu0 0.0
  %519 = vmatmul.mubr.f32.gmra.mxu0 %v391
  %v520 = vpop.f32.mrf.mxu0
  %v521 = vadd.f32 %v363, %v520
  %v522 = vpop.f32.mrf.mxu0
  %523 = vmatprep.mubr.f32.mxu0 0.0
  %524 = vmatmul.mubr.f32.gmra.mxu0 %v394
  %v525 = vpop.f32.mrf.mxu0
  %v526 = vadd.f32 %v363, %v525
  %v527 = vpop.f32.mrf.mxu0
  %528 = vmatprep.mubr.f32.mxu0 0.0
  %529 = vmatmul.mubr.f32.gmra.mxu0 %v397
  %v530 = vpop.f32.mrf.mxu0
  %v531 = vadd.f32 %v363, %v530
  %v532 = vpop.f32.mrf.mxu0
  %533 = vmatprep.mubr.f32.mxu0 0.0
  %534 = vmatmul.mubr.f32.gmra.mxu0 %v400
  %v535 = vpop.f32.mrf.mxu0
  %v536 = vadd.f32 %v363, %v535
  %v537 = vpop.f32.mrf.mxu0
  %538 = vmatprep.mubr.f32.mxu0 0.0
  %539 = vmatmul.mubr.f32.gmra.mxu0 %v403
  %v540 = vpop.f32.mrf.mxu0
  %v541 = vadd.f32 %v363, %v540
  %v542 = vpop.f32.mrf.mxu0
  %543 = vmatprep.mubr.f32.mxu0 0.0
  %544 = vmatmul.mubr.f32.gmra.mxu0 %v406
  %v545 = vpop.f32.mrf.mxu0
  %v546 = vadd.f32 %v363, %v545
  %v547 = vpop.f32.mrf.mxu0
  %548 = vmatprep.mubr.f32.mxu0 0.0
  %549 = vmatmul.mubr.f32.gmra.mxu0 %v409
  %v550 = vpop.f32.mrf.mxu0
  %v551 = vadd.f32 %v363, %v550
  %v552 = vpop.f32.mrf.mxu0
  %553 = vmatprep.mubr.f32.mxu0 0.0
  %554 = vmatmul.mubr.f32.gmra.mxu0 %v412
  %v555 = vpop.f32.mrf.mxu0
  %v556 = vadd.f32 %v363, %v555
  %v557 = vpop.f32.mrf.mxu0
  %558 = vdwg.mxu0
  %v559 = vld [vmem:[%s11] sm:$0xff]
  %v560 = vld [vmem:[%s11 + $0x8] sm:$0xff]
  %v561 = vld [vmem:[%s11 + $0x10] sm:$0xff]
  %v562 = vld [vmem:[%s11 + $0x18] sm:$0xff]
  %v563 = vld [vmem:[%s17] sm:$0x1]
  %v565 = vlaneseq
  %v566 = vshrl.u32 %v565, 7
  %v567 = vsub.s32 0, %v566
  %v568 = vrot.slane %v563, %v567
  %570 = vmatprep.subr.mxu0 0.0
  %571 = vmatpush1.msra.mxu0 0.0
  %572 = vmatprep.subr.mxu0 0.0
  %573 = vmatpush1.msra.mxu0 0.0
  %574 = vmatprep.subr.mxu0 0.0
  %575 = vmatpush1.msra.mxu0 0.0
  %576 = vmatprep.subr.mxu0 0.0
  %577 = vmatpush1.msra.mxu0 0.0
  %578 = vmatprep.subr.mxu0 0.0
  %579 = vmatpush1.msra.mxu0 0.0
  %580 = vmatprep.subr.mxu0 0.0
  %581 = vmatpush1.msra.mxu0 0.0
  %582 = vmatprep.subr.mxu0 0.0
  %583 = vmatpush1.msra.mxu0 0.0
  %584 = vmatprep.subr.mxu0 0.0
  %585 = vmatpush1.msra.mxu0 0.0
  %586 = vmatprep.subr.mxu0 0.0
  %587 = vmatpush1.msra.mxu0 0.0
  %588 = vmatprep.subr.mxu0 0.0
  %589 = vmatpush1.msra.mxu0 0.0
  %590 = vmatprep.subr.mxu0 0.0
  %591 = vmatpush1.msra.mxu0 0.0
  %592 = vmatprep.subr.mxu0 0.0
  %593 = vmatpush1.msra.mxu0 0.0
  %594 = vmatprep.subr.mxu0 0.0
  %595 = vmatpush1.msra.mxu0 %v562
  %596 = vmatprep.subr.mxu0 0.0
  %597 = vmatpush1.msra.mxu0 %v561
  %598 = vmatprep.subr.mxu0 0.0
  %599 = vmatpush1.msra.mxu0 %v560
  %600 = vmatprep.subr.mxu0 0.0
  %601 = vmatpush1.msra.mxu0 %v559
  %602 = vmatprep.subr.mxu0 0.0
  %603 = vmatpush2.msra.mxu0 0.0
  %604 = vmatprep.subr.mxu0 0.0
  %605 = vmatpush2.msra.mxu0 0.0
  %606 = vmatprep.subr.mxu0 0.0
  %607 = vmatpush2.msra.mxu0 0.0
  %608 = vmatprep.subr.mxu0 0.0
  %609 = vmatpush2.msra.mxu0 0.0
  %610 = vmatprep.subr.mxu0 0.0
  %611 = vmatpush2.msra.mxu0 0.0
  %612 = vmatprep.subr.mxu0 0.0
  %613 = vmatpush2.msra.mxu0 0.0
  %614 = vmatprep.subr.mxu0 0.0
  %615 = vmatpush2.msra.mxu0 0.0
  %616 = vmatprep.subr.mxu0 0.0
  %617 = vmatpush2.msra.mxu0 0.0
  %618 = vmatprep.subr.mxu0 0.0
  %619 = vmatpush2.msra.mxu0 0.0
  %620 = vmatprep.subr.mxu0 0.0
  %621 = vmatpush2.msra.mxu0 0.0
  %622 = vmatprep.subr.mxu0 0.0
  %623 = vmatpush2.msra.mxu0 0.0
  %624 = vmatprep.subr.mxu0 0.0
  %625 = vmatpush2.msra.mxu0 0.0
  %626 = vmatprep.subr.mxu0 0.0
  %627 = vmatpush2.msra.mxu0 0.0
  %628 = vmatprep.subr.mxu0 0.0
  %629 = vmatpush2.msra.mxu0 0.0
  %630 = vmatprep.subr.mxu0 0.0
  %631 = vmatpush2.msra.mxu0 0.0
  %632 = vmatprep.subr.mxu0 0.0
  %633 = vmatpush2.msra.mxu0 0.0
  %634 = vmatprep.mubr.f32.mxu0 0.0
  %635 = vmatmul.mubr.f32.gmra.mxu0 %v367
  %v636 = vpop.f32.mrf.mxu0
  %v637 = vadd.f32 %v568, %v636
  %v638 = vpop.f32.mrf.mxu0
  %639 = vmatprep.mubr.f32.mxu0 0.0
  %640 = vmatmul.mubr.f32.gmra.mxu0 %v370
  %v641 = vpop.f32.mrf.mxu0
  %v642 = vadd.f32 %v568, %v641
  %v643 = vpop.f32.mrf.mxu0
  %644 = vmatprep.mubr.f32.mxu0 0.0
  %645 = vmatmul.mubr.f32.gmra.mxu0 %v373
  %v646 = vpop.f32.mrf.mxu0
  %v647 = vadd.f32 %v568, %v646
  %v648 = vpop.f32.mrf.mxu0
  %649 = vmatprep.mubr.f32.mxu0 0.0
  %650 = vmatmul.mubr.f32.gmra.mxu0 %v376
  %v651 = vpop.f32.mrf.mxu0
  %v652 = vadd.f32 %v568, %v651
  %v653 = vpop.f32.mrf.mxu0
  %654 = vmatprep.mubr.f32.mxu0 0.0
  %655 = vmatmul.mubr.f32.gmra.mxu0 %v379
  %v656 = vpop.f32.mrf.mxu0
  %v657 = vadd.f32 %v568, %v656
  %v658 = vpop.f32.mrf.mxu0
  %659 = vmatprep.mubr.f32.mxu0 0.0
  %660 = vmatmul.mubr.f32.gmra.mxu0 %v382
  %v661 = vpop.f32.mrf.mxu0
  %v662 = vadd.f32 %v568, %v661
  %v663 = vpop.f32.mrf.mxu0
  %664 = vmatprep.mubr.f32.mxu0 0.0
  %665 = vmatmul.mubr.f32.gmra.mxu0 %v385
  %v666 = vpop.f32.mrf.mxu0
  %v667 = vadd.f32 %v568, %v666
  %v668 = vpop.f32.mrf.mxu0
  %669 = vmatprep.mubr.f32.mxu0 0.0
  %670 = vmatmul.mubr.f32.gmra.mxu0 %v388
  %v671 = vpop.f32.mrf.mxu0
  %v672 = vadd.f32 %v568, %v671
  %v673 = vpop.f32.mrf.mxu0
  %674 = vmatprep.mubr.f32.mxu0 0.0
  %675 = vmatmul.mubr.f32.gmra.mxu0 %v391
  %v676 = vpop.f32.mrf.mxu0
  %v677 = vadd.f32 %v568, %v676
  %v678 = vpop.f32.mrf.mxu0
  %679 = vmatprep.mubr.f32.mxu0 0.0
  %680 = vmatmul.mubr.f32.gmra.mxu0 %v394
  %v681 = vpop.f32.mrf.mxu0
  %v682 = vadd.f32 %v568, %v681
  %v683 = vpop.f32.mrf.mxu0
  %684 = vmatprep.mubr.f32.mxu0 0.0
  %685 = vmatmul.mubr.f32.gmra.mxu0 %v397
  %v686 = vpop.f32.mrf.mxu0
  %v687 = vadd.f32 %v568, %v686
  %v688 = vpop.f32.mrf.mxu0
  %689 = vmatprep.mubr.f32.mxu0 0.0
  %690 = vmatmul.mubr.f32.gmra.mxu0 %v400
  %v691 = vpop.f32.mrf.mxu0
  %v692 = vadd.f32 %v568, %v691
  %v693 = vpop.f32.mrf.mxu0
  %694 = vmatprep.mubr.f32.mxu0 0.0
  %695 = vmatmul.mubr.f32.gmra.mxu0 %v403
  %v696 = vpop.f32.mrf.mxu0
  %v697 = vadd.f32 %v568, %v696
  %v698 = vpop.f32.mrf.mxu0
  %699 = vmatprep.mubr.f32.mxu0 0.0
  %700 = vmatmul.mubr.f32.gmra.mxu0 %v406
  %v701 = vpop.f32.mrf.mxu0
  %v702 = vadd.f32 %v568, %v701
  %v703 = vpop.f32.mrf.mxu0
  %704 = vmatprep.mubr.f32.mxu0 0.0
  %705 = vmatmul.mubr.f32.gmra.mxu0 %v409
  %v706 = vpop.f32.mrf.mxu0
  %v707 = vadd.f32 %v568, %v706
  %v708 = vpop.f32.mrf.mxu0
  %709 = vmatprep.mubr.f32.mxu0 0.0
  %710 = vmatmul.mubr.f32.gmra.mxu0 %v412
  %v711 = vpop.f32.mrf.mxu0
  %v712 = vadd.f32 %v568, %v711
  %v713 = vpop.f32.mrf.mxu0
  %714 = vdwg.mxu0
  %v715 = vld [vmem:[%s12] sm:$0xff]
  %v716 = vld [vmem:[%s12 + $0x8] sm:$0xff]
  %v717 = vld [vmem:[%s12 + $0x10] sm:$0xff]
  %v718 = vld [vmem:[%s12 + $0x18] sm:$0xff]
  %v719 = vld [vmem:[%s18] sm:$0x1]
  %v721 = vlaneseq
  %v722 = vshrl.u32 %v721, 7
  %v723 = vsub.s32 0, %v722
  %v724 = vrot.slane %v719, %v723
  %726 = vmatprep.subr.mxu0 0.0
  %727 = vmatpush1.msra.mxu0 0.0
  %728 = vmatprep.subr.mxu0 0.0
  %729 = vmatpush1.msra.mxu0 0.0
  %730 = vmatprep.subr.mxu0 0.0
  %731 = vmatpush1.msra.mxu0 0.0
  %732 = vmatprep.subr.mxu0 0.0
  %733 = vmatpush1.msra.mxu0 0.0
  %734 = vmatprep.subr.mxu0 0.0
  %735 = vmatpush1.msra.mxu0 0.0
  %736 = vmatprep.subr.mxu0 0.0
  %737 = vmatpush1.msra.mxu0 0.0
  %738 = vmatprep.subr.mxu0 0.0
  %739 = vmatpush1.msra.mxu0 0.0
  %740 = vmatprep.subr.mxu0 0.0
  %741 = vmatpush1.msra.mxu0 0.0
  %742 = vmatprep.subr.mxu0 0.0
  %743 = vmatpush1.msra.mxu0 0.0
  %744 = vmatprep.subr.mxu0 0.0
  %745 = vmatpush1.msra.mxu0 0.0
  %746 = vmatprep.subr.mxu0 0.0
  %747 = vmatpush1.msra.mxu0 0.0
  %748 = vmatprep.subr.mxu0 0.0
  %749 = vmatpush1.msra.mxu0 0.0
  %750 = vmatprep.subr.mxu0 0.0
  %751 = vmatpush1.msra.mxu0 %v718
  %752 = vmatprep.subr.mxu0 0.0
  %753 = vmatpush1.msra.mxu0 %v717
  %754 = vmatprep.subr.mxu0 0.0
  %755 = vmatpush1.msra.mxu0 %v716
  %756 = vmatprep.subr.mxu0 0.0
  %757 = vmatpush1.msra.mxu0 %v715
  %758 = vmatprep.subr.mxu0 0.0
  %759 = vmatpush2.msra.mxu0 0.0
  %760 = vmatprep.subr.mxu0 0.0
  %761 = vmatpush2.msra.mxu0 0.0
  %762 = vmatprep.subr.mxu0 0.0
  %763 = vmatpush2.msra.mxu0 0.0
  %764 = vmatprep.subr.mxu0 0.0
  %765 = vmatpush2.msra.mxu0 0.0
  %766 = vmatprep.subr.mxu0 0.0
  %767 = vmatpush2.msra.mxu0 0.0
  %768 = vmatprep.subr.mxu0 0.0
  %769 = vmatpush2.msra.mxu0 0.0
  %770 = vmatprep.subr.mxu0 0.0
  %771 = vmatpush2.msra.mxu0 0.0
  %772 = vmatprep.subr.mxu0 0.0
  %773 = vmatpush2.msra.mxu0 0.0
  %774 = vmatprep.subr.mxu0 0.0
  %775 = vmatpush2.msra.mxu0 0.0
  %776 = vmatprep.subr.mxu0 0.0
  %777 = vmatpush2.msra.mxu0 0.0
  %778 = vmatprep.subr.mxu0 0.0
  %779 = vmatpush2.msra.mxu0 0.0
  %780 = vmatprep.subr.mxu0 0.0
  %781 = vmatpush2.msra.mxu0 0.0
  %782 = vmatprep.subr.mxu0 0.0
  %783 = vmatpush2.msra.mxu0 0.0
  %784 = vmatprep.subr.mxu0 0.0
  %785 = vmatpush2.msra.mxu0 0.0
  %786 = vmatprep.subr.mxu0 0.0
  %787 = vmatpush2.msra.mxu0 0.0
  %788 = vmatprep.subr.mxu0 0.0
  %789 = vmatpush2.msra.mxu0 0.0
  %790 = vmatprep.mubr.f32.mxu0 0.0
  %791 = vmatmul.mubr.f32.gmra.mxu0 %v367
  %v792 = vpop.f32.mrf.mxu0
  %v793 = vadd.f32 %v724, %v792
  %v794 = vpop.f32.mrf.mxu0
  %795 = vmatprep.mubr.f32.mxu0 0.0
  %796 = vmatmul.mubr.f32.gmra.mxu0 %v370
  %v797 = vpop.f32.mrf.mxu0
  %v798 = vadd.f32 %v724, %v797
  %v799 = vpop.f32.mrf.mxu0
  %800 = vmatprep.mubr.f32.mxu0 0.0
  %801 = vmatmul.mubr.f32.gmra.mxu0 %v373
  %v802 = vpop.f32.mrf.mxu0
  %v803 = vadd.f32 %v724, %v802
  %v804 = vpop.f32.mrf.mxu0
  %805 = vmatprep.mubr.f32.mxu0 0.0
  %806 = vmatmul.mubr.f32.gmra.mxu0 %v376
  %v807 = vpop.f32.mrf.mxu0
  %v808 = vadd.f32 %v724, %v807
  %v809 = vpop.f32.mrf.mxu0
  %810 = vmatprep.mubr.f32.mxu0 0.0
  %811 = vmatmul.mubr.f32.gmra.mxu0 %v379
  %v812 = vpop.f32.mrf.mxu0
  %v813 = vadd.f32 %v724, %v812
  %v814 = vpop.f32.mrf.mxu0
  %815 = vmatprep.mubr.f32.mxu0 0.0
  %816 = vmatmul.mubr.f32.gmra.mxu0 %v382
  %v817 = vpop.f32.mrf.mxu0
  %v818 = vadd.f32 %v724, %v817
  %v819 = vpop.f32.mrf.mxu0
  %820 = vmatprep.mubr.f32.mxu0 0.0
  %821 = vmatmul.mubr.f32.gmra.mxu0 %v385
  %v822 = vpop.f32.mrf.mxu0
  %v823 = vadd.f32 %v724, %v822
  %v824 = vpop.f32.mrf.mxu0
  %825 = vmatprep.mubr.f32.mxu0 0.0
  %826 = vmatmul.mubr.f32.gmra.mxu0 %v388
  %v827 = vpop.f32.mrf.mxu0
  %v828 = vadd.f32 %v724, %v827
  %v829 = vpop.f32.mrf.mxu0
  %830 = vmatprep.mubr.f32.mxu0 0.0
  %831 = vmatmul.mubr.f32.gmra.mxu0 %v391
  %v832 = vpop.f32.mrf.mxu0
  %v833 = vadd.f32 %v724, %v832
  %v834 = vpop.f32.mrf.mxu0
  %835 = vmatprep.mubr.f32.mxu0 0.0
  %836 = vmatmul.mubr.f32.gmra.mxu0 %v394
  %v837 = vpop.f32.mrf.mxu0
  %v838 = vadd.f32 %v724, %v837
  %v839 = vpop.f32.mrf.mxu0
  %840 = vmatprep.mubr.f32.mxu0 0.0
  %841 = vmatmul.mubr.f32.gmra.mxu0 %v397
  %v842 = vpop.f32.mrf.mxu0
  %v843 = vadd.f32 %v724, %v842
  %v844 = vpop.f32.mrf.mxu0
  %845 = vmatprep.mubr.f32.mxu0 0.0
  %846 = vmatmul.mubr.f32.gmra.mxu0 %v400
  %v847 = vpop.f32.mrf.mxu0
  %v848 = vadd.f32 %v724, %v847
  %v849 = vpop.f32.mrf.mxu0
  %850 = vmatprep.mubr.f32.mxu0 0.0
  %851 = vmatmul.mubr.f32.gmra.mxu0 %v403
  %v852 = vpop.f32.mrf.mxu0
  %v853 = vadd.f32 %v724, %v852
  %v854 = vpop.f32.mrf.mxu0
  %855 = vmatprep.mubr.f32.mxu0 0.0
  %856 = vmatmul.mubr.f32.gmra.mxu0 %v406
  %v857 = vpop.f32.mrf.mxu0
  %v858 = vadd.f32 %v724, %v857
  %v859 = vpop.f32.mrf.mxu0
  %860 = vmatprep.mubr.f32.mxu0 0.0
  %861 = vmatmul.mubr.f32.gmra.mxu0 %v409
  %v862 = vpop.f32.mrf.mxu0
  %v863 = vadd.f32 %v724, %v862
  %v864 = vpop.f32.mrf.mxu0
  %865 = vmatprep.mubr.f32.mxu0 0.0
  %866 = vmatmul.mubr.f32.gmra.mxu0 %v412
  %v867 = vpop.f32.mrf.mxu0
  %v868 = vadd.f32 %v724, %v867
  %v869 = vpop.f32.mrf.mxu0
  %870 = vdwg.mxu0
  %v871 = vld [vmem:[%s3] sm:$0xff]
  %v872 = vld [vmem:[%s3 + $0x8] sm:$0xff]
  %v873 = vld [vmem:[%s3 + $0x10] sm:$0xff]
  %v874 = vld [vmem:[%s3 + $0x18] sm:$0xff]
  %v875 = vld [vmem:[%s6] sm:$0x1]
  %v877 = vlaneseq
  %v878 = vshrl.u32 %v877, 7
  %v879 = vsub.s32 0, %v878
  %v880 = vrot.slane %v875, %v879
  %882 = vmatprep.subr.mxu0 0.0
  %883 = vmatpush1.msra.mxu0 0.0
  %884 = vmatprep.subr.mxu0 0.0
  %885 = vmatpush1.msra.mxu0 0.0
  %886 = vmatprep.subr.mxu0 0.0
  %887 = vmatpush1.msra.mxu0 0.0
  %888 = vmatprep.subr.mxu0 0.0
  %889 = vmatpush1.msra.mxu0 0.0
  %890 = vmatprep.subr.mxu0 0.0
  %891 = vmatpush1.msra.mxu0 0.0
  %892 = vmatprep.subr.mxu0 0.0
  %893 = vmatpush1.msra.mxu0 0.0
  %894 = vmatprep.subr.mxu0 0.0
  %895 = vmatpush1.msra.mxu0 0.0
  %896 = vmatprep.subr.mxu0 0.0
  %897 = vmatpush1.msra.mxu0 0.0
  %898 = vmatprep.subr.mxu0 0.0
  %899 = vmatpush1.msra.mxu0 0.0
  %900 = vmatprep.subr.mxu0 0.0
  %901 = vmatpush1.msra.mxu0 0.0
  %902 = vmatprep.subr.mxu0 0.0
  %903 = vmatpush1.msra.mxu0 0.0
  %904 = vmatprep.subr.mxu0 0.0
  %905 = vmatpush1.msra.mxu0 0.0
  %906 = vmatprep.subr.mxu0 0.0
  %907 = vmatpush1.msra.mxu0 %v874
  %908 = vmatprep.subr.mxu0 0.0
  %909 = vmatpush1.msra.mxu0 %v873
  %910 = vmatprep.subr.mxu0 0.0
  %911 = vmatpush1.msra.mxu0 %v872
  %912 = vmatprep.subr.mxu0 0.0
  %913 = vmatpush1.msra.mxu0 %v871
  %914 = vmatprep.subr.mxu0 0.0
  %915 = vmatpush2.msra.mxu0 0.0
  %916 = vmatprep.subr.mxu0 0.0
  %917 = vmatpush2.msra.mxu0 0.0
  %918 = vmatprep.subr.mxu0 0.0
  %919 = vmatpush2.msra.mxu0 0.0
  %920 = vmatprep.subr.mxu0 0.0
  %921 = vmatpush2.msra.mxu0 0.0
  %922 = vmatprep.subr.mxu0 0.0
  %923 = vmatpush2.msra.mxu0 0.0
  %924 = vmatprep.subr.mxu0 0.0
  %925 = vmatpush2.msra.mxu0 0.0
  %926 = vmatprep.subr.mxu0 0.0
  %927 = vmatpush2.msra.mxu0 0.0
  %928 = vmatprep.subr.mxu0 0.0
  %929 = vmatpush2.msra.mxu0 0.0
  %930 = vmatprep.subr.mxu0 0.0
  %931 = vmatpush2.msra.mxu0 0.0
  %932 = vmatprep.subr.mxu0 0.0
  %933 = vmatpush2.msra.mxu0 0.0
  %934 = vmatprep.subr.mxu0 0.0
  %935 = vmatpush2.msra.mxu0 0.0
  %936 = vmatprep.subr.mxu0 0.0
  %937 = vmatpush2.msra.mxu0 0.0
  %938 = vmatprep.subr.mxu0 0.0
  %939 = vmatpush2.msra.mxu0 0.0
  %940 = vmatprep.subr.mxu0 0.0
  %941 = vmatpush2.msra.mxu0 0.0
  %942 = vmatprep.subr.mxu0 0.0
  %943 = vmatpush2.msra.mxu0 0.0
  %944 = vmatprep.subr.mxu0 0.0
  %945 = vmatpush2.msra.mxu0 0.0
  %946 = vmatprep.mubr.f32.mxu0 0.0
  %947 = vmatmul.mubr.f32.gmra.mxu0 %v367
  %v948 = vpop.f32.mrf.mxu0
  %v949 = vadd.f32 %v880, %v948
  %v950 = vpop.f32.mrf.mxu0
  %951 = vdwg.mxu0
  %v952 = vxor.u32 %v949, 2147483648
  %v953 = vmul.f32 %v952, 1.442695
  %v954 = vpow.pop %v953
  %v955 = vadd.f32 %v954, 1.0
  %v956 = vrcp.pop %v955
  %v957 = vmul.f32 1.0, %v956
  %v958 = vld [vmem:[%s4] sm:$0xff]
  %v959 = vld [vmem:[%s4 + $0x8] sm:$0xff]
  %v960 = vld [vmem:[%s4 + $0x10] sm:$0xff]
  %v961 = vld [vmem:[%s4 + $0x18] sm:$0xff]
  %v962 = vld [vmem:[%s7] sm:$0x1]
  %v964 = vlaneseq
  %v965 = vshrl.u32 %v964, 7
  %v966 = vsub.s32 0, %v965
  %v967 = vrot.slane %v962, %v966
  %969 = vmatprep.subr.mxu0 0.0
  %970 = vmatpush1.msra.mxu0 0.0
  %971 = vmatprep.subr.mxu0 0.0
  %972 = vmatpush1.msra.mxu0 0.0
  %973 = vmatprep.subr.mxu0 0.0
  %974 = vmatpush1.msra.mxu0 0.0
  %975 = vmatprep.subr.mxu0 0.0
  %976 = vmatpush1.msra.mxu0 0.0
  %977 = vmatprep.subr.mxu0 0.0
  %978 = vmatpush1.msra.mxu0 0.0
  %979 = vmatprep.subr.mxu0 0.0
  %980 = vmatpush1.msra.mxu0 0.0
  %981 = vmatprep.subr.mxu0 0.0
  %982 = vmatpush1.msra.mxu0 0.0
  %983 = vmatprep.subr.mxu0 0.0
  %984 = vmatpush1.msra.mxu0 0.0
  %985 = vmatprep.subr.mxu0 0.0
  %986 = vmatpush1.msra.mxu0 0.0
  %987 = vmatprep.subr.mxu0 0.0
  %988 = vmatpush1.msra.mxu0 0.0
  %989 = vmatprep.subr.mxu0 0.0
  %990 = vmatpush1.msra.mxu0 0.0
  %991 = vmatprep.subr.mxu0 0.0
  %992 = vmatpush1.msra.mxu0 0.0
  %993 = vmatprep.subr.mxu0 0.0
  %994 = vmatpush1.msra.mxu0 %v961
  %995 = vmatprep.subr.mxu0 0.0
  %996 = vmatpush1.msra.mxu0 %v960
  %997 = vmatprep.subr.mxu0 0.0
  %998 = vmatpush1.msra.mxu0 %v959
  %999 = vmatprep.subr.mxu0 0.0
  %1000 = vmatpush1.msra.mxu0 %v958
  %1001 = vmatprep.subr.mxu0 0.0
  %1002 = vmatpush2.msra.mxu0 0.0
  %1003 = vmatprep.subr.mxu0 0.0
  %1004 = vmatpush2.msra.mxu0 0.0
  %1005 = vmatprep.subr.mxu0 0.0
  %1006 = vmatpush2.msra.mxu0 0.0
  %1007 = vmatprep.subr.mxu0 0.0
  %1008 = vmatpush2.msra.mxu0 0.0
  %1009 = vmatprep.subr.mxu0 0.0
  %1010 = vmatpush2.msra.mxu0 0.0
  %1011 = vmatprep.subr.mxu0 0.0
  %1012 = vmatpush2.msra.mxu0 0.0
  %1013 = vmatprep.subr.mxu0 0.0
  %1014 = vmatpush2.msra.mxu0 0.0
  %1015 = vmatprep.subr.mxu0 0.0
  %1016 = vmatpush2.msra.mxu0 0.0
  %1017 = vmatprep.subr.mxu0 0.0
  %1018 = vmatpush2.msra.mxu0 0.0
  %1019 = vmatprep.subr.mxu0 0.0
  %1020 = vmatpush2.msra.mxu0 0.0
  %1021 = vmatprep.subr.mxu0 0.0
  %1022 = vmatpush2.msra.mxu0 0.0
  %1023 = vmatprep.subr.mxu0 0.0
  %1024 = vmatpush2.msra.mxu0 0.0
  %1025 = vmatprep.subr.mxu0 0.0
  %1026 = vmatpush2.msra.mxu0 0.0
  %1027 = vmatprep.subr.mxu0 0.0
  %1028 = vmatpush2.msra.mxu0 0.0
  %1029 = vmatprep.subr.mxu0 0.0
  %1030 = vmatpush2.msra.mxu0 0.0
  %1031 = vmatprep.subr.mxu0 0.0
  %1032 = vmatpush2.msra.mxu0 0.0
  %1033 = vmatprep.mubr.f32.mxu0 0.0
  %1034 = vmatmul.mubr.f32.gmra.mxu0 %v367
  %v1035 = vpop.f32.mrf.mxu0
  %v1036 = vadd.f32 %v967, %v1035
  %v1037 = vpop.f32.mrf.mxu0
  %1038 = vdwg.mxu0
  %v1039 = vxor.u32 %v1036, 2147483648
  %v1040 = vmul.f32 %v1039, 1.442695
  %v1041 = vpow.pop %v1040
  %v1042 = vadd.f32 %v1041, 1.0
  %v1043 = vrcp.pop %v1042
  %v1044 = vmul.f32 1.0, %v1043
  %v1045 = vld [vmem:[%s5] sm:$0xff]
  %v1046 = vld [vmem:[%s5 + $0x8] sm:$0xff]
  %v1047 = vld [vmem:[%s5 + $0x10] sm:$0xff]
  %v1048 = vld [vmem:[%s5 + $0x18] sm:$0xff]
  %v1049 = vld [vmem:[%s8] sm:$0x1]
  %v1051 = vlaneseq
  %v1052 = vshrl.u32 %v1051, 7
  %v1053 = vsub.s32 0, %v1052
  %v1054 = vrot.slane %v1049, %v1053
  %1056 = vmatprep.subr.mxu0 0.0
  %1057 = vmatpush1.msra.mxu0 0.0
  %1058 = vmatprep.subr.mxu0 0.0
  %1059 = vmatpush1.msra.mxu0 0.0
  %1060 = vmatprep.subr.mxu0 0.0
  %1061 = vmatpush1.msra.mxu0 0.0
  %1062 = vmatprep.subr.mxu0 0.0
  %1063 = vmatpush1.msra.mxu0 0.0
  %1064 = vmatprep.subr.mxu0 0.0
  %1065 = vmatpush1.msra.mxu0 0.0
  %1066 = vmatprep.subr.mxu0 0.0
  %1067 = vmatpush1.msra.mxu0 0.0
  %1068 = vmatprep.subr.mxu0 0.0
  %1069 = vmatpush1.msra.mxu0 0.0
  %1070 = vmatprep.subr.mxu0 0.0
  %1071 = vmatpush1.msra.mxu0 0.0
  %1072 = vmatprep.subr.mxu0 0.0
  %1073 = vmatpush1.msra.mxu0 0.0
  %1074 = vmatprep.subr.mxu0 0.0
  %1075 = vmatpush1.msra.mxu0 0.0
  %1076 = vmatprep.subr.mxu0 0.0
  %1077 = vmatpush1.msra.mxu0 0.0
  %1078 = vmatprep.subr.mxu0 0.0
  %1079 = vmatpush1.msra.mxu0 0.0
  %1080 = vmatprep.subr.mxu0 0.0
  %1081 = vmatpush1.msra.mxu0 %v1048
  %1082 = vmatprep.subr.mxu0 0.0
  %1083 = vmatpush1.msra.mxu0 %v1047
  %1084 = vmatprep.subr.mxu0 0.0
  %1085 = vmatpush1.msra.mxu0 %v1046
  %1086 = vmatprep.subr.mxu0 0.0
  %1087 = vmatpush1.msra.mxu0 %v1045
  %1088 = vmatprep.subr.mxu0 0.0
  %1089 = vmatpush2.msra.mxu0 0.0
  %1090 = vmatprep.subr.mxu0 0.0
  %1091 = vmatpush2.msra.mxu0 0.0
  %1092 = vmatprep.subr.mxu0 0.0
  %1093 = vmatpush2.msra.mxu0 0.0
  %1094 = vmatprep.subr.mxu0 0.0
  %1095 = vmatpush2.msra.mxu0 0.0
  %1096 = vmatprep.subr.mxu0 0.0
  %1097 = vmatpush2.msra.mxu0 0.0
  %1098 = vmatprep.subr.mxu0 0.0
  %1099 = vmatpush2.msra.mxu0 0.0
  %1100 = vmatprep.subr.mxu0 0.0
  %1101 = vmatpush2.msra.mxu0 0.0
  %1102 = vmatprep.subr.mxu0 0.0
  %1103 = vmatpush2.msra.mxu0 0.0
  %1104 = vmatprep.subr.mxu0 0.0
  %1105 = vmatpush2.msra.mxu0 0.0
  %1106 = vmatprep.subr.mxu0 0.0
  %1107 = vmatpush2.msra.mxu0 0.0
  %1108 = vmatprep.subr.mxu0 0.0
  %1109 = vmatpush2.msra.mxu0 0.0
  %1110 = vmatprep.subr.mxu0 0.0
  %1111 = vmatpush2.msra.mxu0 0.0
  %1112 = vmatprep.subr.mxu0 0.0
  %1113 = vmatpush2.msra.mxu0 0.0
  %1114 = vmatprep.subr.mxu0 0.0
  %1115 = vmatpush2.msra.mxu0 0.0
  %1116 = vmatprep.subr.mxu0 0.0
  %1117 = vmatpush2.msra.mxu0 0.0
  %1118 = vmatprep.subr.mxu0 0.0
  %1119 = vmatpush2.msra.mxu0 0.0
  %1120 = vmatprep.mubr.f32.mxu0 0.0
  %1121 = vmatmul.mubr.f32.gmra.mxu0 %v367
  %v1122 = vpop.f32.mrf.mxu0
  %v1123 = vadd.f32 %v1054, %v1122
  %v1124 = vpop.f32.mrf.mxu0
  %1125 = vdwg.mxu0
  %v1126 = vld [vmem:[%s9] sm:$0x1]
  %v1128 = vlaneseq
  %v1129 = vshrl.u32 %v1128, 7
  %v1130 = vsub.s32 0, %v1129
  %v1131 = vrot.slane %v1126, %v1130
  %v1133 = vmul.f32 %v957, %v1131
  %v1134 = vadd.f32 %v1123, %v1133
  %v1135 = vtanh.pop %v1134
  %v1136 = vsub.f32 1.0, %v1044
  %v1137 = vmul.f32 %v1136, %v1135
  %v1138 = vld [vmem:[%s1] sm:$0xff]
  %v1139 = vld [vmem:[%s13] sm:$0xff]
  %v1140 = vld [vmem:[%s13 + $0x8] sm:$0xff]
  %v1141 = vld [vmem:[%s13 + $0x10] sm:$0xff]
  %v1142 = vld [vmem:[%s13 + $0x18] sm:$0xff]
  %v1143 = vld [vmem:[%s14] sm:$0xff]
  %v1144 = vld [vmem:[%s14 + $0x8] sm:$0xff]
  %v1145 = vld [vmem:[%s14 + $0x10] sm:$0xff]
  %v1146 = vld [vmem:[%s14 + $0x18] sm:$0xff]
  %v1147 = vld [vmem:[%s15] sm:$0xff]
  %v1148 = vld [vmem:[%s15 + $0x8] sm:$0xff]
  %v1149 = vld [vmem:[%s15 + $0x10] sm:$0xff]
  %v1150 = vld [vmem:[%s15 + $0x18] sm:$0xff]
  %v1151 = vld [vmem:[%s19] sm:$0x1]
  %v1153 = vsel %vm365, 0.0, 0
  %1155 = vmatprep.subr.mxu0 0.0
  %1156 = vmatpush1.msra.mxu0 0.0
  %1157 = vmatprep.subr.mxu0 0.0
  %1158 = vmatpush1.msra.mxu0 0.0
  %1159 = vmatprep.subr.mxu0 0.0
  %1160 = vmatpush1.msra.mxu0 0.0
  %1161 = vmatprep.subr.mxu0 0.0
  %1162 = vmatpush1.msra.mxu0 0.0
  %1163 = vmatprep.subr.mxu0 0.0
  %1164 = vmatpush1.msra.mxu0 0.0
  %1165 = vmatprep.subr.mxu0 0.0
  %1166 = vmatpush1.msra.mxu0 0.0
  %1167 = vmatprep.subr.mxu0 0.0
  %1168 = vmatpush1.msra.mxu0 0.0
  %1169 = vmatprep.subr.mxu0 0.0
  %1170 = vmatpush1.msra.mxu0 0.0
  %1171 = vmatprep.subr.mxu0 0.0
  %1172 = vmatpush1.msra.mxu0 0.0
  %1173 = vmatprep.subr.mxu0 0.0
  %1174 = vmatpush1.msra.mxu0 0.0
  %1175 = vmatprep.subr.mxu0 0.0
  %1176 = vmatpush1.msra.mxu0 0.0
  %1177 = vmatprep.subr.mxu0 0.0
  %1178 = vmatpush1.msra.mxu0 0.0
  %1179 = vmatprep.subr.mxu0 0.0
  %1180 = vmatpush1.msra.mxu0 %v1142
  %1181 = vmatprep.subr.mxu0 0.0
  %1182 = vmatpush1.msra.mxu0 %v1141
  %1183 = vmatprep.subr.mxu0 0.0
  %1184 = vmatpush1.msra.mxu0 %v1140
  %1185 = vmatprep.subr.mxu0 0.0
  %1186 = vmatpush1.msra.mxu0 %v1139
  %1187 = vmatprep.subr.mxu0 0.0
  %1188 = vmatpush2.msra.mxu0 0.0
  %1189 = vmatprep.subr.mxu0 0.0
  %1190 = vmatpush2.msra.mxu0 0.0
  %1191 = vmatprep.subr.mxu0 0.0
  %1192 = vmatpush2.msra.mxu0 0.0
  %1193 = vmatprep.subr.mxu0 0.0
  %1194 = vmatpush2.msra.mxu0 0.0
  %1195 = vmatprep.subr.mxu0 0.0
  %1196 = vmatpush2.msra.mxu0 0.0
  %1197 = vmatprep.subr.mxu0 0.0
  %1198 = vmatpush2.msra.mxu0 0.0
  %1199 = vmatprep.subr.mxu0 0.0
  %1200 = vmatpush2.msra.mxu0 0.0
  %1201 = vmatprep.subr.mxu0 0.0
  %1202 = vmatpush2.msra.mxu0 0.0
  %1203 = vmatprep.subr.mxu0 0.0
  %1204 = vmatpush2.msra.mxu0 0.0
  %1205 = vmatprep.subr.mxu0 0.0
  %1206 = vmatpush2.msra.mxu0 0.0
  %1207 = vmatprep.subr.mxu0 0.0
  %1208 = vmatpush2.msra.mxu0 0.0
  %1209 = vmatprep.subr.mxu0 0.0
  %1210 = vmatpush2.msra.mxu0 0.0
  %1211 = vmatprep.subr.mxu0 0.0
  %1212 = vmatpush2.msra.mxu0 0.0
  %1213 = vmatprep.subr.mxu0 0.0
  %1214 = vmatpush2.msra.mxu0 0.0
  %1215 = vmatprep.subr.mxu0 0.0
  %1216 = vmatpush2.msra.mxu0 0.0
  %1217 = vmatprep.subr.mxu0 0.0
  %1218 = vmatpush2.msra.mxu0 0.0
  %1219 = vmatprep.mubr.f32.mxu0 0.0
  %1220 = vmatmul.mubr.f32.gmra.mxu0 %v1153
  %v1221 = vpop.f32.mrf.mxu0
  %v1222 = vadd.f32 0.0, %v1221
  %v1223 = vpop.f32.mrf.mxu0
  %1224 = vdwg.mxu0
  %1225 = vmatprep.subr.mxu0 0.0
  %1226 = vmatpush1.msra.mxu0 0.0
  %1227 = vmatprep.subr.mxu0 0.0
  %1228 = vmatpush1.msra.mxu0 0.0
  %1229 = vmatprep.subr.mxu0 0.0
  %1230 = vmatpush1.msra.mxu0 0.0
  %1231 = vmatprep.subr.mxu0 0.0
  %1232 = vmatpush1.msra.mxu0 0.0
  %1233 = vmatprep.subr.mxu0 0.0
  %1234 = vmatpush1.msra.mxu0 0.0
  %1235 = vmatprep.subr.mxu0 0.0
  %1236 = vmatpush1.msra.mxu0 0.0
  %1237 = vmatprep.subr.mxu0 0.0
  %1238 = vmatpush1.msra.mxu0 0.0
  %1239 = vmatprep.subr.mxu0 0.0
  %1240 = vmatpush1.msra.mxu0 0.0
  %1241 = vmatprep.subr.mxu0 0.0
  %1242 = vmatpush1.msra.mxu0 0.0
  %1243 = vmatprep.subr.mxu0 0.0
  %1244 = vmatpush1.msra.mxu0 0.0
  %1245 = vmatprep.subr.mxu0 0.0
  %1246 = vmatpush1.msra.mxu0 0.0
  %1247 = vmatprep.subr.mxu0 0.0
  %1248 = vmatpush1.msra.mxu0 0.0
  %1249 = vmatprep.subr.mxu0 0.0
  %1250 = vmatpush1.msra.mxu0 %v1146
  %1251 = vmatprep.subr.mxu0 0.0
  %1252 = vmatpush1.msra.mxu0 %v1145
  %1253 = vmatprep.subr.mxu0 0.0
  %1254 = vmatpush1.msra.mxu0 %v1144
  %1255 = vmatprep.subr.mxu0 0.0
  %1256 = vmatpush1.msra.mxu0 %v1143
  %1257 = vmatprep.subr.mxu0 0.0
  %1258 = vmatpush2.msra.mxu0 0.0
  %1259 = vmatprep.subr.mxu0 0.0
  %1260 = vmatpush2.msra.mxu0 0.0
  %1261 = vmatprep.subr.mxu0 0.0
  %1262 = vmatpush2.msra.mxu0 0.0
  %1263 = vmatprep.subr.mxu0 0.0
  %1264 = vmatpush2.msra.mxu0 0.0
  %1265 = vmatprep.subr.mxu0 0.0
  %1266 = vmatpush2.msra.mxu0 0.0
  %1267 = vmatprep.subr.mxu0 0.0
  %1268 = vmatpush2.msra.mxu0 0.0
  %1269 = vmatprep.subr.mxu0 0.0
  %1270 = vmatpush2.msra.mxu0 0.0
  %1271 = vmatprep.subr.mxu0 0.0
  %1272 = vmatpush2.msra.mxu0 0.0
  %1273 = vmatprep.subr.mxu0 0.0
  %1274 = vmatpush2.msra.mxu0 0.0
  %1275 = vmatprep.subr.mxu0 0.0
  %1276 = vmatpush2.msra.mxu0 0.0
  %1277 = vmatprep.subr.mxu0 0.0
  %1278 = vmatpush2.msra.mxu0 0.0
  %1279 = vmatprep.subr.mxu0 0.0
  %1280 = vmatpush2.msra.mxu0 0.0
  %1281 = vmatprep.subr.mxu0 0.0
  %1282 = vmatpush2.msra.mxu0 0.0
  %1283 = vmatprep.subr.mxu0 0.0
  %1284 = vmatpush2.msra.mxu0 0.0
  %1285 = vmatprep.subr.mxu0 0.0
  %1286 = vmatpush2.msra.mxu0 0.0
  %1287 = vmatprep.subr.mxu0 0.0
  %1288 = vmatpush2.msra.mxu0 0.0
  %1289 = vmatprep.mubr.f32.mxu0 0.0
  %1290 = vmatmul.mubr.f32.gmra.mxu0 %v1153
  %v1291 = vpop.f32.mrf.mxu0
  %v1292 = vadd.f32 0.0, %v1291
  %v1293 = vpop.f32.mrf.mxu0
  %1294 = vdwg.mxu0
  %v1296 = vlaneseq
  %v1297 = vshrl.u32 %v1296, 7
  %v1298 = vsub.s32 0, %v1297
  %v1299 = vrot.slane %v1151, %v1298
  %1301 = vmatprep.subr.mxu0 0.0
  %1302 = vmatpush1.msra.mxu0 0.0
  %1303 = vmatprep.subr.mxu0 0.0
  %1304 = vmatpush1.msra.mxu0 0.0
  %1305 = vmatprep.subr.mxu0 0.0
  %1306 = vmatpush1.msra.mxu0 0.0
  %1307 = vmatprep.subr.mxu0 0.0
  %1308 = vmatpush1.msra.mxu0 0.0
  %1309 = vmatprep.subr.mxu0 0.0
  %1310 = vmatpush1.msra.mxu0 0.0
  %1311 = vmatprep.subr.mxu0 0.0
  %1312 = vmatpush1.msra.mxu0 0.0
  %1313 = vmatprep.subr.mxu0 0.0
  %1314 = vmatpush1.msra.mxu0 0.0
  %1315 = vmatprep.subr.mxu0 0.0
  %1316 = vmatpush1.msra.mxu0 0.0
  %1317 = vmatprep.subr.mxu0 0.0
  %1318 = vmatpush1.msra.mxu0 0.0
  %1319 = vmatprep.subr.mxu0 0.0
  %1320 = vmatpush1.msra.mxu0 0.0
  %1321 = vmatprep.subr.mxu0 0.0
  %1322 = vmatpush1.msra.mxu0 0.0
  %1323 = vmatprep.subr.mxu0 0.0
  %1324 = vmatpush1.msra.mxu0 0.0
  %1325 = vmatprep.subr.mxu0 0.0
  %1326 = vmatpush1.msra.mxu0 %v1150
  %1327 = vmatprep.subr.mxu0 0.0
  %1328 = vmatpush1.msra.mxu0 %v1149
  %1329 = vmatprep.subr.mxu0 0.0
  %1330 = vmatpush1.msra.mxu0 %v1148
  %1331 = vmatprep.subr.mxu0 0.0
  %1332 = vmatpush1.msra.mxu0 %v1147
  %1333 = vmatprep.subr.mxu0 0.0
  %1334 = vmatpush2.msra.mxu0 0.0
  %1335 = vmatprep.subr.mxu0 0.0
  %1336 = vmatpush2.msra.mxu0 0.0
  %1337 = vmatprep.subr.mxu0 0.0
  %1338 = vmatpush2.msra.mxu0 0.0
  %1339 = vmatprep.subr.mxu0 0.0
  %1340 = vmatpush2.msra.mxu0 0.0
  %1341 = vmatprep.subr.mxu0 0.0
  %1342 = vmatpush2.msra.mxu0 0.0
  %1343 = vmatprep.subr.mxu0 0.0
  %1344 = vmatpush2.msra.mxu0 0.0
  %1345 = vmatprep.subr.mxu0 0.0
  %1346 = vmatpush2.msra.mxu0 0.0
  %1347 = vmatprep.subr.mxu0 0.0
  %1348 = vmatpush2.msra.mxu0 0.0
  %1349 = vmatprep.subr.mxu0 0.0
  %1350 = vmatpush2.msra.mxu0 0.0
  %1351 = vmatprep.subr.mxu0 0.0
  %1352 = vmatpush2.msra.mxu0 0.0
  %1353 = vmatprep.subr.mxu0 0.0
  %1354 = vmatpush2.msra.mxu0 0.0
  %1355 = vmatprep.subr.mxu0 0.0
  %1356 = vmatpush2.msra.mxu0 0.0
  %1357 = vmatprep.subr.mxu0 0.0
  %1358 = vmatpush2.msra.mxu0 0.0
  %1359 = vmatprep.subr.mxu0 0.0
  %1360 = vmatpush2.msra.mxu0 0.0
  %1361 = vmatprep.subr.mxu0 0.0
  %1362 = vmatpush2.msra.mxu0 0.0
  %1363 = vmatprep.subr.mxu0 0.0
  %1364 = vmatpush2.msra.mxu0 0.0
  %1365 = vmatprep.mubr.f32.mxu0 0.0
  %1366 = vmatmul.mubr.f32.gmra.mxu0 %v1153
  %v1367 = vpop.f32.mrf.mxu0
  %v1368 = vadd.f32 %v1299, %v1367
  %v1369 = vpop.f32.mrf.mxu0
  %1370 = vdwg.mxu0
  %v1371 = vadd.f32 %v556, %v1222
  %v1372 = vxor.u32 %v1371, 2147483648
  %v1373 = vmul.f32 %v1372, 1.442695
  %v1374 = vpow.pop %v1373
  %v1375 = vadd.f32 %v1374, 1.0
  %v1376 = vrcp.pop %v1375
  %v1377 = vmul.f32 1.0, %v1376
  %v1378 = vadd.f32 %v712, %v1292
  %v1379 = vxor.u32 %v1378, 2147483648
  %v1380 = vmul.f32 %v1379, 1.442695
  %v1381 = vpow.pop %v1380
  %v1382 = vadd.f32 %v1381, 1.0
  %v1383 = vrcp.pop %v1382
  %v1384 = vmul.f32 1.0, %v1383
  %v1385 = vmul.f32 %v1377, %v1368
  %v1386 = vadd.f32 %v868, %v1385
  %v1387 = vtanh.pop %v1386
  %v1388 = vsub.f32 1.0, %v1384
  %v1389 = vmul.f32 %v1388, %v1387
  %v1390 = vmul.f32 %v1384, 0.0
  %v1391 = vadd.f32 %v1389, %v1390
  %vm1392 = vcmp.gt.s32.totalorder %v1138, 15
  %v1393 = vsel %vm1392, 1, 0
  %1394 = vset.pattern.permute.xlu0 0
  %1395 = vperm.xlu0 %1394, %v1393
  %v1396 = vpop.permute.xlu0 %1395
  %vm1397 = vcmp.eq.s32.totalorder %v1396, 1
  %v1398 = vsel %vm1397, %v1391, 0.0
  %v1400 = vsel %vm365, %v1398, 0
  %1402 = vmatprep.subr.mxu0 0.0
  %1403 = vmatpush1.msra.mxu0 0.0
  %1404 = vmatprep.subr.mxu0 0.0
  %1405 = vmatpush1.msra.mxu0 0.0
  %1406 = vmatprep.subr.mxu0 0.0
  %1407 = vmatpush1.msra.mxu0 0.0
  %1408 = vmatprep.subr.mxu0 0.0
  %1409 = vmatpush1.msra.mxu0 0.0
  %1410 = vmatprep.subr.mxu0 0.0
  %1411 = vmatpush1.msra.mxu0 0.0
  %1412 = vmatprep.subr.mxu0 0.0
  %1413 = vmatpush1.msra.mxu0 0.0
  %1414 = vmatprep.subr.mxu0 0.0
  %1415 = vmatpush1.msra.mxu0 0.0
  %1416 = vmatprep.subr.mxu0 0.0
  %1417 = vmatpush1.msra.mxu0 0.0
  %1418 = vmatprep.subr.mxu0 0.0
  %1419 = vmatpush1.msra.mxu0 0.0
  %1420 = vmatprep.subr.mxu0 0.0
  %1421 = vmatpush1.msra.mxu0 0.0
  %1422 = vmatprep.subr.mxu0 0.0
  %1423 = vmatpush1.msra.mxu0 0.0
  %1424 = vmatprep.subr.mxu0 0.0
  %1425 = vmatpush1.msra.mxu0 0.0
  %1426 = vmatprep.subr.mxu0 0.0
  %1427 = vmatpush1.msra.mxu0 %v1142
  %1428 = vmatprep.subr.mxu0 0.0
  %1429 = vmatpush1.msra.mxu0 %v1141
  %1430 = vmatprep.subr.mxu0 0.0
  %1431 = vmatpush1.msra.mxu0 %v1140
  %1432 = vmatprep.subr.mxu0 0.0
  %1433 = vmatpush1.msra.mxu0 %v1139
  %1434 = vmatprep.subr.mxu0 0.0
  %1435 = vmatpush2.msra.mxu0 0.0
  %1436 = vmatprep.subr.mxu0 0.0
  %1437 = vmatpush2.msra.mxu0 0.0
  %1438 = vmatprep.subr.mxu0 0.0
  %1439 = vmatpush2.msra.mxu0 0.0
  %1440 = vmatprep.subr.mxu0 0.0
  %1441 = vmatpush2.msra.mxu0 0.0
  %1442 = vmatprep.subr.mxu0 0.0
  %1443 = vmatpush2.msra.mxu0 0.0
  %1444 = vmatprep.subr.mxu0 0.0
  %1445 = vmatpush2.msra.mxu0 0.0
  %1446 = vmatprep.subr.mxu0 0.0
  %1447 = vmatpush2.msra.mxu0 0.0
  %1448 = vmatprep.subr.mxu0 0.0
  %1449 = vmatpush2.msra.mxu0 0.0
  %1450 = vmatprep.subr.mxu0 0.0
  %1451 = vmatpush2.msra.mxu0 0.0
  %1452 = vmatprep.subr.mxu0 0.0
  %1453 = vmatpush2.msra.mxu0 0.0
  %1454 = vmatprep.subr.mxu0 0.0
  %1455 = vmatpush2.msra.mxu0 0.0
  %1456 = vmatprep.subr.mxu0 0.0
  %1457 = vmatpush2.msra.mxu0 0.0
  %1458 = vmatprep.subr.mxu0 0.0
  %1459 = vmatpush2.msra.mxu0 0.0
  %1460 = vmatprep.subr.mxu0 0.0
  %1461 = vmatpush2.msra.mxu0 0.0
  %1462 = vmatprep.subr.mxu0 0.0
  %1463 = vmatpush2.msra.mxu0 0.0
  %1464 = vmatprep.subr.mxu0 0.0
  %1465 = vmatpush2.msra.mxu0 0.0
  %1466 = vmatprep.mubr.f32.mxu0 0.0
  %1467 = vmatmul.mubr.f32.gmra.mxu0 %v1400
  %v1468 = vpop.f32.mrf.mxu0
  %v1469 = vadd.f32 0.0, %v1468
  %v1470 = vpop.f32.mrf.mxu0
  %1471 = vdwg.mxu0
  %1472 = vmatprep.subr.mxu0 0.0
  %1473 = vmatpush1.msra.mxu0 0.0
  %1474 = vmatprep.subr.mxu0 0.0
  %1475 = vmatpush1.msra.mxu0 0.0
  %1476 = vmatprep.subr.mxu0 0.0
  %1477 = vmatpush1.msra.mxu0 0.0
  %1478 = vmatprep.subr.mxu0 0.0
  %1479 = vmatpush1.msra.mxu0 0.0
  %1480 = vmatprep.subr.mxu0 0.0
  %1481 = vmatpush1.msra.mxu0 0.0
  %1482 = vmatprep.subr.mxu0 0.0
  %1483 = vmatpush1.msra.mxu0 0.0
  %1484 = vmatprep.subr.mxu0 0.0
  %1485 = vmatpush1.msra.mxu0 0.0
  %1486 = vmatprep.subr.mxu0 0.0
  %1487 = vmatpush1.msra.mxu0 0.0
  %1488 = vmatprep.subr.mxu0 0.0
  %1489 = vmatpush1.msra.mxu0 0.0
  %1490 = vmatprep.subr.mxu0 0.0
  %1491 = vmatpush1.msra.mxu0 0.0
  %1492 = vmatprep.subr.mxu0 0.0
  %1493 = vmatpush1.msra.mxu0 0.0
  %1494 = vmatprep.subr.mxu0 0.0
  %1495 = vmatpush1.msra.mxu0 0.0
  %1496 = vmatprep.subr.mxu0 0.0
  %1497 = vmatpush1.msra.mxu0 %v1146
  %1498 = vmatprep.subr.mxu0 0.0
  %1499 = vmatpush1.msra.mxu0 %v1145
  %1500 = vmatprep.subr.mxu0 0.0
  %1501 = vmatpush1.msra.mxu0 %v1144
  %1502 = vmatprep.subr.mxu0 0.0
  %1503 = vmatpush1.msra.mxu0 %v1143
  %1504 = vmatprep.subr.mxu0 0.0
  %1505 = vmatpush2.msra.mxu0 0.0
  %1506 = vmatprep.subr.mxu0 0.0
  %1507 = vmatpush2.msra.mxu0 0.0
  %1508 = vmatprep.subr.mxu0 0.0
  %1509 = vmatpush2.msra.mxu0 0.0
  %1510 = vmatprep.subr.mxu0 0.0
  %1511 = vmatpush2.msra.mxu0 0.0
  %1512 = vmatprep.subr.mxu0 0.0
  %1513 = vmatpush2.msra.mxu0 0.0
  %1514 = vmatprep.subr.mxu0 0.0
  %1515 = vmatpush2.msra.mxu0 0.0
  %1516 = vmatprep.subr.mxu0 0.0
  %1517 = vmatpush2.msra.mxu0 0.0
  %1518 = vmatprep.subr.mxu0 0.0
  %1519 = vmatpush2.msra.mxu0 0.0
  %1520 = vmatprep.subr.mxu0 0.0
  %1521 = vmatpush2.msra.mxu0 0.0
  %1522 = vmatprep.subr.mxu0 0.0
  %1523 = vmatpush2.msra.mxu0 0.0
  %1524 = vmatprep.subr.mxu0 0.0
  %1525 = vmatpush2.msra.mxu0 0.0
  %1526 = vmatprep.subr.mxu0 0.0
  %1527 = vmatpush2.msra.mxu0 0.0
  %1528 = vmatprep.subr.mxu0 0.0
  %1529 = vmatpush2.msra.mxu0 0.0
  %1530 = vmatprep.subr.mxu0 0.0
  %1531 = vmatpush2.msra.mxu0 0.0
  %1532 = vmatprep.subr.mxu0 0.0
  %1533 = vmatpush2.msra.mxu0 0.0
  %1534 = vmatprep.subr.mxu0 0.0
  %1535 = vmatpush2.msra.mxu0 0.0
  %1536 = vmatprep.mubr.f32.mxu0 0.0
  %1537 = vmatmul.mubr.f32.gmra.mxu0 %v1400
  %v1538 = vpop.f32.mrf.mxu0
  %v1539 = vadd.f32 0.0, %v1538
  %v1540 = vpop.f32.mrf.mxu0
  %1541 = vdwg.mxu0
  %1542 = vmatprep.subr.mxu0 0.0
  %1543 = vmatpush1.msra.mxu0 0.0
  %1544 = vmatprep.subr.mxu0 0.0
  %1545 = vmatpush1.msra.mxu0 0.0
  %1546 = vmatprep.subr.mxu0 0.0
  %1547 = vmatpush1.msra.mxu0 0.0
  %1548 = vmatprep.subr.mxu0 0.0
  %1549 = vmatpush1.msra.mxu0 0.0
  %1550 = vmatprep.subr.mxu0 0.0
  %1551 = vmatpush1.msra.mxu0 0.0
  %1552 = vmatprep.subr.mxu0 0.0
  %1553 = vmatpush1.msra.mxu0 0.0
  %1554 = vmatprep.subr.mxu0 0.0
  %1555 = vmatpush1.msra.mxu0 0.0
  %1556 = vmatprep.subr.mxu0 0.0
  %1557 = vmatpush1.msra.mxu0 0.0
  %1558 = vmatprep.subr.mxu0 0.0
  %1559 = vmatpush1.msra.mxu0 0.0
  %1560 = vmatprep.subr.mxu0 0.0
  %1561 = vmatpush1.msra.mxu0 0.0
  %1562 = vmatprep.subr.mxu0 0.0
  %1563 = vmatpush1.msra.mxu0 0.0
  %1564 = vmatprep.subr.mxu0 0.0
  %1565 = vmatpush1.msra.mxu0 0.0
  %1566 = vmatprep.subr.mxu0 0.0
  %1567 = vmatpush1.msra.mxu0 %v1150
  %1568 = vmatprep.subr.mxu0 0.0
  %1569 = vmatpush1.msra.mxu0 %v1149
  %1570 = vmatprep.subr.mxu0 0.0
  %1571 = vmatpush1.msra.mxu0 %v1148
  %1572 = vmatprep.subr.mxu0 0.0
  %1573 = vmatpush1.msra.mxu0 %v1147
  %1574 = vmatprep.subr.mxu0 0.0
  %1575 = vmatpush2.msra.mxu0 0.0
  %1576 = vmatprep.subr.mxu0 0.0
  %1577 = vmatpush2.msra.mxu0 0.0
  %1578 = vmatprep.subr.mxu0 0.0
  %1579 = vmatpush2.msra.mxu0 0.0
  %1580 = vmatprep.subr.mxu0 0.0
  %1581 = vmatpush2.msra.mxu0 0.0
  %1582 = vmatprep.subr.mxu0 0.0
  %1583 = vmatpush2.msra.mxu0 0.0
  %1584 = vmatprep.subr.mxu0 0.0
  %1585 = vmatpush2.msra.mxu0 0.0
  %1586 = vmatprep.subr.mxu0 0.0
  %1587 = vmatpush2.msra.mxu0 0.0
  %1588 = vmatprep.subr.mxu0 0.0
  %1589 = vmatpush2.msra.mxu0 0.0
  %1590 = vmatprep.subr.mxu0 0.0
  %1591 = vmatpush2.msra.mxu0 0.0
  %1592 = vmatprep.subr.mxu0 0.0
  %1593 = vmatpush2.msra.mxu0 0.0
  %1594 = vmatprep.subr.mxu0 0.0
  %1595 = vmatpush2.msra.mxu0 0.0
  %1596 = vmatprep.subr.mxu0 0.0
  %1597 = vmatpush2.msra.mxu0 0.0
  %1598 = vmatprep.subr.mxu0 0.0
  %1599 = vmatpush2.msra.mxu0 0.0
  %1600 = vmatprep.subr.mxu0 0.0
  %1601 = vmatpush2.msra.mxu0 0.0
  %1602 = vmatprep.subr.mxu0 0.0
  %1603 = vmatpush2.msra.mxu0 0.0
  %1604 = vmatprep.subr.mxu0 0.0
  %1605 = vmatpush2.msra.mxu0 0.0
  %1606 = vmatprep.mubr.f32.mxu0 0.0
  %1607 = vmatmul.mubr.f32.gmra.mxu0 %v1400
  %v1608 = vpop.f32.mrf.mxu0
  %v1609 = vadd.f32 %v1299, %v1608
  %v1610 = vpop.f32.mrf.mxu0
  %1611 = vdwg.mxu0
  %v1612 = vadd.f32 %v551, %v1469
  %v1613 = vxor.u32 %v1612, 2147483648
  %v1614 = vmul.f32 %v1613, 1.442695
  %v1615 = vpow.pop %v1614
  %v1616 = vadd.f32 %v1615, 1.0
  %v1617 = vrcp.pop %v1616
  %v1618 = vmul.f32 1.0, %v1617
  %v1619 = vadd.f32 %v707, %v1539
  %v1620 = vxor.u32 %v1619, 2147483648
  %v1621 = vmul.f32 %v1620, 1.442695
  %v1622 = vpow.pop %v1621
  %v1623 = vadd.f32 %v1622, 1.0
  %v1624 = vrcp.pop %v1623
  %v1625 = vmul.f32 1.0, %v1624
  %v1626 = vmul.f32 %v1618, %v1609
  %v1627 = vadd.f32 %v863, %v1626
  %v1628 = vtanh.pop %v1627
  %v1629 = vsub.f32 1.0, %v1625
  %v1630 = vmul.f32 %v1629, %v1628
  %v1631 = vmul.f32 %v1625, %v1398
  %v1632 = vadd.f32 %v1630, %v1631
  %vm1633 = vcmp.gt.s32.totalorder %v1138, 14
  %v1634 = vsel %vm1633, 1, 0
  %1635 = vset.pattern.permute.xlu0 0
  %1636 = vperm.xlu0 %1635, %v1634
  %v1637 = vpop.permute.xlu0 %1636
  %vm1638 = vcmp.eq.s32.totalorder %v1637, 1
  %v1639 = vsel %vm1638, %v1632, %v1398
  %v1641 = vsel %vm365, %v1639, 0
  %1643 = vmatprep.subr.mxu0 0.0
  %1644 = vmatpush1.msra.mxu0 0.0
  %1645 = vmatprep.subr.mxu0 0.0
  %1646 = vmatpush1.msra.mxu0 0.0
  %1647 = vmatprep.subr.mxu0 0.0
  %1648 = vmatpush1.msra.mxu0 0.0
  %1649 = vmatprep.subr.mxu0 0.0
  %1650 = vmatpush1.msra.mxu0 0.0
  %1651 = vmatprep.subr.mxu0 0.0
  %1652 = vmatpush1.msra.mxu0 0.0
  %1653 = vmatprep.subr.mxu0 0.0
  %1654 = vmatpush1.msra.mxu0 0.0
  %1655 = vmatprep.subr.mxu0 0.0
  %1656 = vmatpush1.msra.mxu0 0.0
  %1657 = vmatprep.subr.mxu0 0.0
  %1658 = vmatpush1.msra.mxu0 0.0
  %1659 = vmatprep.subr.mxu0 0.0
  %1660 = vmatpush1.msra.mxu0 0.0
  %1661 = vmatprep.subr.mxu0 0.0
  %1662 = vmatpush1.msra.mxu0 0.0
  %1663 = vmatprep.subr.mxu0 0.0
  %1664 = vmatpush1.msra.mxu0 0.0
  %1665 = vmatprep.subr.mxu0 0.0
  %1666 = vmatpush1.msra.mxu0 0.0
  %1667 = vmatprep.subr.mxu0 0.0
  %1668 = vmatpush1.msra.mxu0 %v1142
  %1669 = vmatprep.subr.mxu0 0.0
  %1670 = vmatpush1.msra.mxu0 %v1141
  %1671 = vmatprep.subr.mxu0 0.0
  %1672 = vmatpush1.msra.mxu0 %v1140
  %1673 = vmatprep.subr.mxu0 0.0
  %1674 = vmatpush1.msra.mxu0 %v1139
  %1675 = vmatprep.subr.mxu0 0.0
  %1676 = vmatpush2.msra.mxu0 0.0
  %1677 = vmatprep.subr.mxu0 0.0
  %1678 = vmatpush2.msra.mxu0 0.0
  %1679 = vmatprep.subr.mxu0 0.0
  %1680 = vmatpush2.msra.mxu0 0.0
  %1681 = vmatprep.subr.mxu0 0.0
  %1682 = vmatpush2.msra.mxu0 0.0
  %1683 = vmatprep.subr.mxu0 0.0
  %1684 = vmatpush2.msra.mxu0 0.0
  %1685 = vmatprep.subr.mxu0 0.0
  %1686 = vmatpush2.msra.mxu0 0.0
  %1687 = vmatprep.subr.mxu0 0.0
  %1688 = vmatpush2.msra.mxu0 0.0
  %1689 = vmatprep.subr.mxu0 0.0
  %1690 = vmatpush2.msra.mxu0 0.0
  %1691 = vmatprep.subr.mxu0 0.0
  %1692 = vmatpush2.msra.mxu0 0.0
  %1693 = vmatprep.subr.mxu0 0.0
  %1694 = vmatpush2.msra.mxu0 0.0
  %1695 = vmatprep.subr.mxu0 0.0
  %1696 = vmatpush2.msra.mxu0 0.0
  %1697 = vmatprep.subr.mxu0 0.0
  %1698 = vmatpush2.msra.mxu0 0.0
  %1699 = vmatprep.subr.mxu0 0.0
  %1700 = vmatpush2.msra.mxu0 0.0
  %1701 = vmatprep.subr.mxu0 0.0
  %1702 = vmatpush2.msra.mxu0 0.0
  %1703 = vmatprep.subr.mxu0 0.0
  %1704 = vmatpush2.msra.mxu0 0.0
  %1705 = vmatprep.subr.mxu0 0.0
  %1706 = vmatpush2.msra.mxu0 0.0
  %1707 = vmatprep.mubr.f32.mxu0 0.0
  %1708 = vmatmul.mubr.f32.gmra.mxu0 %v1641
  %v1709 = vpop.f32.mrf.mxu0
  %v1710 = vadd.f32 0.0, %v1709
  %v1711 = vpop.f32.mrf.mxu0
  %1712 = vdwg.mxu0
  %1713 = vmatprep.subr.mxu0 0.0
  %1714 = vmatpush1.msra.mxu0 0.0
  %1715 = vmatprep.subr.mxu0 0.0
  %1716 = vmatpush1.msra.mxu0 0.0
  %1717 = vmatprep.subr.mxu0 0.0
  %1718 = vmatpush1.msra.mxu0 0.0
  %1719 = vmatprep.subr.mxu0 0.0
  %1720 = vmatpush1.msra.mxu0 0.0
  %1721 = vmatprep.subr.mxu0 0.0
  %1722 = vmatpush1.msra.mxu0 0.0
  %1723 = vmatprep.subr.mxu0 0.0
  %1724 = vmatpush1.msra.mxu0 0.0
  %1725 = vmatprep.subr.mxu0 0.0
  %1726 = vmatpush1.msra.mxu0 0.0
  %1727 = vmatprep.subr.mxu0 0.0
  %1728 = vmatpush1.msra.mxu0 0.0
  %1729 = vmatprep.subr.mxu0 0.0
  %1730 = vmatpush1.msra.mxu0 0.0
  %1731 = vmatprep.subr.mxu0 0.0
  %1732 = vmatpush1.msra.mxu0 0.0
  %1733 = vmatprep.subr.mxu0 0.0
  %1734 = vmatpush1.msra.mxu0 0.0
  %1735 = vmatprep.subr.mxu0 0.0
  %1736 = vmatpush1.msra.mxu0 0.0
  %1737 = vmatprep.subr.mxu0 0.0
  %1738 = vmatpush1.msra.mxu0 %v1146
  %1739 = vmatprep.subr.mxu0 0.0
  %1740 = vmatpush1.msra.mxu0 %v1145
  %1741 = vmatprep.subr.mxu0 0.0
  %1742 = vmatpush1.msra.mxu0 %v1144
  %1743 = vmatprep.subr.mxu0 0.0
  %1744 = vmatpush1.msra.mxu0 %v1143
  %1745 = vmatprep.subr.mxu0 0.0
  %1746 = vmatpush2.msra.mxu0 0.0
  %1747 = vmatprep.subr.mxu0 0.0
  %1748 = vmatpush2.msra.mxu0 0.0
  %1749 = vmatprep.subr.mxu0 0.0
  %1750 = vmatpush2.msra.mxu0 0.0
  %1751 = vmatprep.subr.mxu0 0.0
  %1752 = vmatpush2.msra.mxu0 0.0
  %1753 = vmatprep.subr.mxu0 0.0
  %1754 = vmatpush2.msra.mxu0 0.0
  %1755 = vmatprep.subr.mxu0 0.0
  %1756 = vmatpush2.msra.mxu0 0.0
  %1757 = vmatprep.subr.mxu0 0.0
  %1758 = vmatpush2.msra.mxu0 0.0
  %1759 = vmatprep.subr.mxu0 0.0
  %1760 = vmatpush2.msra.mxu0 0.0
  %1761 = vmatprep.subr.mxu0 0.0
  %1762 = vmatpush2.msra.mxu0 0.0
  %1763 = vmatprep.subr.mxu0 0.0
  %1764 = vmatpush2.msra.mxu0 0.0
  %1765 = vmatprep.subr.mxu0 0.0
  %1766 = vmatpush2.msra.mxu0 0.0
  %1767 = vmatprep.subr.mxu0 0.0
  %1768 = vmatpush2.msra.mxu0 0.0
  %1769 = vmatprep.subr.mxu0 0.0
  %1770 = vmatpush2.msra.mxu0 0.0
  %1771 = vmatprep.subr.mxu0 0.0
  %1772 = vmatpush2.msra.mxu0 0.0
  %1773 = vmatprep.subr.mxu0 0.0
  %1774 = vmatpush2.msra.mxu0 0.0
  %1775 = vmatprep.subr.mxu0 0.0
  %1776 = vmatpush2.msra.mxu0 0.0
  %1777 = vmatprep.mubr.f32.mxu0 0.0
  %1778 = vmatmul.mubr.f32.gmra.mxu0 %v1641
  %v1779 = vpop.f32.mrf.mxu0
  %v1780 = vadd.f32 0.0, %v1779
  %v1781 = vpop.f32.mrf.mxu0
  %1782 = vdwg.mxu0
  %1783 = vmatprep.subr.mxu0 0.0
  %1784 = vmatpush1.msra.mxu0 0.0
  %1785 = vmatprep.subr.mxu0 0.0
  %1786 = vmatpush1.msra.mxu0 0.0
  %1787 = vmatprep.subr.mxu0 0.0
  %1788 = vmatpush1.msra.mxu0 0.0
  %1789 = vmatprep.subr.mxu0 0.0
  %1790 = vmatpush1.msra.mxu0 0.0
  %1791 = vmatprep.subr.mxu0 0.0
  %1792 = vmatpush1.msra.mxu0 0.0
  %1793 = vmatprep.subr.mxu0 0.0
  %1794 = vmatpush1.msra.mxu0 0.0
  %1795 = vmatprep.subr.mxu0 0.0
  %1796 = vmatpush1.msra.mxu0 0.0
  %1797 = vmatprep.subr.mxu0 0.0
  %1798 = vmatpush1.msra.mxu0 0.0
  %1799 = vmatprep.subr.mxu0 0.0
  %1800 = vmatpush1.msra.mxu0 0.0
  %1801 = vmatprep.subr.mxu0 0.0
  %1802 = vmatpush1.msra.mxu0 0.0
  %1803 = vmatprep.subr.mxu0 0.0
  %1804 = vmatpush1.msra.mxu0 0.0
  %1805 = vmatprep.subr.mxu0 0.0
  %1806 = vmatpush1.msra.mxu0 0.0
  %1807 = vmatprep.subr.mxu0 0.0
  %1808 = vmatpush1.msra.mxu0 %v1150
  %1809 = vmatprep.subr.mxu0 0.0
  %1810 = vmatpush1.msra.mxu0 %v1149
  %1811 = vmatprep.subr.mxu0 0.0
  %1812 = vmatpush1.msra.mxu0 %v1148
  %1813 = vmatprep.subr.mxu0 0.0
  %1814 = vmatpush1.msra.mxu0 %v1147
  %1815 = vmatprep.subr.mxu0 0.0
  %1816 = vmatpush2.msra.mxu0 0.0
  %1817 = vmatprep.subr.mxu0 0.0
  %1818 = vmatpush2.msra.mxu0 0.0
  %1819 = vmatprep.subr.mxu0 0.0
  %1820 = vmatpush2.msra.mxu0 0.0
  %1821 = vmatprep.subr.mxu0 0.0
  %1822 = vmatpush2.msra.mxu0 0.0
  %1823 = vmatprep.subr.mxu0 0.0
  %1824 = vmatpush2.msra.mxu0 0.0
  %1825 = vmatprep.subr.mxu0 0.0
  %1826 = vmatpush2.msra.mxu0 0.0
  %1827 = vmatprep.subr.mxu0 0.0
  %1828 = vmatpush2.msra.mxu0 0.0
  %1829 = vmatprep.subr.mxu0 0.0
  %1830 = vmatpush2.msra.mxu0 0.0
  %1831 = vmatprep.subr.mxu0 0.0
  %1832 = vmatpush2.msra.mxu0 0.0
  %1833 = vmatprep.subr.mxu0 0.0
  %1834 = vmatpush2.msra.mxu0 0.0
  %1835 = vmatprep.subr.mxu0 0.0
  %1836 = vmatpush2.msra.mxu0 0.0
  %1837 = vmatprep.subr.mxu0 0.0
  %1838 = vmatpush2.msra.mxu0 0.0
  %1839 = vmatprep.subr.mxu0 0.0
  %1840 = vmatpush2.msra.mxu0 0.0
  %1841 = vmatprep.subr.mxu0 0.0
  %1842 = vmatpush2.msra.mxu0 0.0
  %1843 = vmatprep.subr.mxu0 0.0
  %1844 = vmatpush2.msra.mxu0 0.0
  %1845 = vmatprep.subr.mxu0 0.0
  %1846 = vmatpush2.msra.mxu0 0.0
  %1847 = vmatprep.mubr.f32.mxu0 0.0
  %1848 = vmatmul.mubr.f32.gmra.mxu0 %v1641
  %v1849 = vpop.f32.mrf.mxu0
  %v1850 = vadd.f32 %v1299, %v1849
  %v1851 = vpop.f32.mrf.mxu0
  %1852 = vdwg.mxu0
  %v1853 = vadd.f32 %v546, %v1710
  %v1854 = vxor.u32 %v1853, 2147483648
  %v1855 = vmul.f32 %v1854, 1.442695
  %v1856 = vpow.pop %v1855
  %v1857 = vadd.f32 %v1856, 1.0
  %v1858 = vrcp.pop %v1857
  %v1859 = vmul.f32 1.0, %v1858
  %v1860 = vadd.f32 %v702, %v1780
  %v1861 = vxor.u32 %v1860, 2147483648
  %v1862 = vmul.f32 %v1861, 1.442695
  %v1863 = vpow.pop %v1862
  %v1864 = vadd.f32 %v1863, 1.0
  %v1865 = vrcp.pop %v1864
  %v1866 = vmul.f32 1.0, %v1865
  %v1867 = vmul.f32 %v1859, %v1850
  %v1868 = vadd.f32 %v858, %v1867
  %v1869 = vtanh.pop %v1868
  %v1870 = vsub.f32 1.0, %v1866
  %v1871 = vmul.f32 %v1870, %v1869
  %v1872 = vmul.f32 %v1866, %v1639
  %v1873 = vadd.f32 %v1871, %v1872
  %vm1874 = vcmp.gt.s32.totalorder %v1138, 13
  %v1875 = vsel %vm1874, 1, 0
  %1876 = vset.pattern.permute.xlu0 0
  %1877 = vperm.xlu0 %1876, %v1875
  %v1878 = vpop.permute.xlu0 %1877
  %vm1879 = vcmp.eq.s32.totalorder %v1878, 1
  %v1880 = vsel %vm1879, %v1873, %v1639
  %v1882 = vsel %vm365, %v1880, 0
  %1884 = vmatprep.subr.mxu0 0.0
  %1885 = vmatpush1.msra.mxu0 0.0
  %1886 = vmatprep.subr.mxu0 0.0
  %1887 = vmatpush1.msra.mxu0 0.0
  %1888 = vmatprep.subr.mxu0 0.0
  %1889 = vmatpush1.msra.mxu0 0.0
  %1890 = vmatprep.subr.mxu0 0.0
  %1891 = vmatpush1.msra.mxu0 0.0
  %1892 = vmatprep.subr.mxu0 0.0
  %1893 = vmatpush1.msra.mxu0 0.0
  %1894 = vmatprep.subr.mxu0 0.0
  %1895 = vmatpush1.msra.mxu0 0.0
  %1896 = vmatprep.subr.mxu0 0.0
  %1897 = vmatpush1.msra.mxu0 0.0
  %1898 = vmatprep.subr.mxu0 0.0
  %1899 = vmatpush1.msra.mxu0 0.0
  %1900 = vmatprep.subr.mxu0 0.0
  %1901 = vmatpush1.msra.mxu0 0.0
  %1902 = vmatprep.subr.mxu0 0.0
  %1903 = vmatpush1.msra.mxu0 0.0
  %1904 = vmatprep.subr.mxu0 0.0
  %1905 = vmatpush1.msra.mxu0 0.0
  %1906 = vmatprep.subr.mxu0 0.0
  %1907 = vmatpush1.msra.mxu0 0.0
  %1908 = vmatprep.subr.mxu0 0.0
  %1909 = vmatpush1.msra.mxu0 %v1142
  %1910 = vmatprep.subr.mxu0 0.0
  %1911 = vmatpush1.msra.mxu0 %v1141
  %1912 = vmatprep.subr.mxu0 0.0
  %1913 = vmatpush1.msra.mxu0 %v1140
  %1914 = vmatprep.subr.mxu0 0.0
  %1915 = vmatpush1.msra.mxu0 %v1139
  %1916 = vmatprep.subr.mxu0 0.0
  %1917 = vmatpush2.msra.mxu0 0.0
  %1918 = vmatprep.subr.mxu0 0.0
  %1919 = vmatpush2.msra.mxu0 0.0
  %1920 = vmatprep.subr.mxu0 0.0
  %1921 = vmatpush2.msra.mxu0 0.0
  %1922 = vmatprep.subr.mxu0 0.0
  %1923 = vmatpush2.msra.mxu0 0.0
  %1924 = vmatprep.subr.mxu0 0.0
  %1925 = vmatpush2.msra.mxu0 0.0
  %1926 = vmatprep.subr.mxu0 0.0
  %1927 = vmatpush2.msra.mxu0 0.0
  %1928 = vmatprep.subr.mxu0 0.0
  %1929 = vmatpush2.msra.mxu0 0.0
  %1930 = vmatprep.subr.mxu0 0.0
  %1931 = vmatpush2.msra.mxu0 0.0
  %1932 = vmatprep.subr.mxu0 0.0
  %1933 = vmatpush2.msra.mxu0 0.0
  %1934 = vmatprep.subr.mxu0 0.0
  %1935 = vmatpush2.msra.mxu0 0.0
  %1936 = vmatprep.subr.mxu0 0.0
  %1937 = vmatpush2.msra.mxu0 0.0
  %1938 = vmatprep.subr.mxu0 0.0
  %1939 = vmatpush2.msra.mxu0 0.0
  %1940 = vmatprep.subr.mxu0 0.0
  %1941 = vmatpush2.msra.mxu0 0.0
  %1942 = vmatprep.subr.mxu0 0.0
  %1943 = vmatpush2.msra.mxu0 0.0
  %1944 = vmatprep.subr.mxu0 0.0
  %1945 = vmatpush2.msra.mxu0 0.0
  %1946 = vmatprep.subr.mxu0 0.0
  %1947 = vmatpush2.msra.mxu0 0.0
  %1948 = vmatprep.mubr.f32.mxu0 0.0
  %1949 = vmatmul.mubr.f32.gmra.mxu0 %v1882
  %v1950 = vpop.f32.mrf.mxu0
  %v1951 = vadd.f32 0.0, %v1950
  %v1952 = vpop.f32.mrf.mxu0
  %1953 = vdwg.mxu0
  %1954 = vmatprep.subr.mxu0 0.0
  %1955 = vmatpush1.msra.mxu0 0.0
  %1956 = vmatprep.subr.mxu0 0.0
  %1957 = vmatpush1.msra.mxu0 0.0
  %1958 = vmatprep.subr.mxu0 0.0
  %1959 = vmatpush1.msra.mxu0 0.0
  %1960 = vmatprep.subr.mxu0 0.0
  %1961 = vmatpush1.msra.mxu0 0.0
  %1962 = vmatprep.subr.mxu0 0.0
  %1963 = vmatpush1.msra.mxu0 0.0
  %1964 = vmatprep.subr.mxu0 0.0
  %1965 = vmatpush1.msra.mxu0 0.0
  %1966 = vmatprep.subr.mxu0 0.0
  %1967 = vmatpush1.msra.mxu0 0.0
  %1968 = vmatprep.subr.mxu0 0.0
  %1969 = vmatpush1.msra.mxu0 0.0
  %1970 = vmatprep.subr.mxu0 0.0
  %1971 = vmatpush1.msra.mxu0 0.0
  %1972 = vmatprep.subr.mxu0 0.0
  %1973 = vmatpush1.msra.mxu0 0.0
  %1974 = vmatprep.subr.mxu0 0.0
  %1975 = vmatpush1.msra.mxu0 0.0
  %1976 = vmatprep.subr.mxu0 0.0
  %1977 = vmatpush1.msra.mxu0 0.0
  %1978 = vmatprep.subr.mxu0 0.0
  %1979 = vmatpush1.msra.mxu0 %v1146
  %1980 = vmatprep.subr.mxu0 0.0
  %1981 = vmatpush1.msra.mxu0 %v1145
  %1982 = vmatprep.subr.mxu0 0.0
  %1983 = vmatpush1.msra.mxu0 %v1144
  %1984 = vmatprep.subr.mxu0 0.0
  %1985 = vmatpush1.msra.mxu0 %v1143
  %1986 = vmatprep.subr.mxu0 0.0
  %1987 = vmatpush2.msra.mxu0 0.0
  %1988 = vmatprep.subr.mxu0 0.0
  %1989 = vmatpush2.msra.mxu0 0.0
  %1990 = vmatprep.subr.mxu0 0.0
  %1991 = vmatpush2.msra.mxu0 0.0
  %1992 = vmatprep.subr.mxu0 0.0
  %1993 = vmatpush2.msra.mxu0 0.0
  %1994 = vmatprep.subr.mxu0 0.0
  %1995 = vmatpush2.msra.mxu0 0.0
  %1996 = vmatprep.subr.mxu0 0.0
  %1997 = vmatpush2.msra.mxu0 0.0
  %1998 = vmatprep.subr.mxu0 0.0
  %1999 = vmatpush2.msra.mxu0 0.0
  %2000 = vmatprep.subr.mxu0 0.0
  %2001 = vmatpush2.msra.mxu0 0.0
  %2002 = vmatprep.subr.mxu0 0.0
  %2003 = vmatpush2.msra.mxu0 0.0
  %2004 = vmatprep.subr.mxu0 0.0
  %2005 = vmatpush2.msra.mxu0 0.0
  %2006 = vmatprep.subr.mxu0 0.0
  %2007 = vmatpush2.msra.mxu0 0.0
  %2008 = vmatprep.subr.mxu0 0.0
  %2009 = vmatpush2.msra.mxu0 0.0
  %2010 = vmatprep.subr.mxu0 0.0
  %2011 = vmatpush2.msra.mxu0 0.0
  %2012 = vmatprep.subr.mxu0 0.0
  %2013 = vmatpush2.msra.mxu0 0.0
  %2014 = vmatprep.subr.mxu0 0.0
  %2015 = vmatpush2.msra.mxu0 0.0
  %2016 = vmatprep.subr.mxu0 0.0
  %2017 = vmatpush2.msra.mxu0 0.0
  %2018 = vmatprep.mubr.f32.mxu0 0.0
  %2019 = vmatmul.mubr.f32.gmra.mxu0 %v1882
  %v2020 = vpop.f32.mrf.mxu0
  %v2021 = vadd.f32 0.0, %v2020
  %v2022 = vpop.f32.mrf.mxu0
  %2023 = vdwg.mxu0
  %2024 = vmatprep.subr.mxu0 0.0
  %2025 = vmatpush1.msra.mxu0 0.0
  %2026 = vmatprep.subr.mxu0 0.0
  %2027 = vmatpush1.msra.mxu0 0.0
  %2028 = vmatprep.subr.mxu0 0.0
  %2029 = vmatpush1.msra.mxu0 0.0
  %2030 = vmatprep.subr.mxu0 0.0
  %2031 = vmatpush1.msra.mxu0 0.0
  %2032 = vmatprep.subr.mxu0 0.0
  %2033 = vmatpush1.msra.mxu0 0.0
  %2034 = vmatprep.subr.mxu0 0.0
  %2035 = vmatpush1.msra.mxu0 0.0
  %2036 = vmatprep.subr.mxu0 0.0
  %2037 = vmatpush1.msra.mxu0 0.0
  %2038 = vmatprep.subr.mxu0 0.0
  %2039 = vmatpush1.msra.mxu0 0.0
  %2040 = vmatprep.subr.mxu0 0.0
  %2041 = vmatpush1.msra.mxu0 0.0
  %2042 = vmatprep.subr.mxu0 0.0
  %2043 = vmatpush1.msra.mxu0 0.0
  %2044 = vmatprep.subr.mxu0 0.0
  %2045 = vmatpush1.msra.mxu0 0.0
  %2046 = vmatprep.subr.mxu0 0.0
  %2047 = vmatpush1.msra.mxu0 0.0
  %2048 = vmatprep.subr.mxu0 0.0
  %2049 = vmatpush1.msra.mxu0 %v1150
  %2050 = vmatprep.subr.mxu0 0.0
  %2051 = vmatpush1.msra.mxu0 %v1149
  %2052 = vmatprep.subr.mxu0 0.0
  %2053 = vmatpush1.msra.mxu0 %v1148
  %2054 = vmatprep.subr.mxu0 0.0
  %2055 = vmatpush1.msra.mxu0 %v1147
  %2056 = vmatprep.subr.mxu0 0.0
  %2057 = vmatpush2.msra.mxu0 0.0
  %2058 = vmatprep.subr.mxu0 0.0
  %2059 = vmatpush2.msra.mxu0 0.0
  %2060 = vmatprep.subr.mxu0 0.0
  %2061 = vmatpush2.msra.mxu0 0.0
  %2062 = vmatprep.subr.mxu0 0.0
  %2063 = vmatpush2.msra.mxu0 0.0
  %2064 = vmatprep.subr.mxu0 0.0
  %2065 = vmatpush2.msra.mxu0 0.0
  %2066 = vmatprep.subr.mxu0 0.0
  %2067 = vmatpush2.msra.mxu0 0.0
  %2068 = vmatprep.subr.mxu0 0.0
  %2069 = vmatpush2.msra.mxu0 0.0
  %2070 = vmatprep.subr.mxu0 0.0
  %2071 = vmatpush2.msra.mxu0 0.0
  %2072 = vmatprep.subr.mxu0 0.0
  %2073 = vmatpush2.msra.mxu0 0.0
  %2074 = vmatprep.subr.mxu0 0.0
  %2075 = vmatpush2.msra.mxu0 0.0
  %2076 = vmatprep.subr.mxu0 0.0
  %2077 = vmatpush2.msra.mxu0 0.0
  %2078 = vmatprep.subr.mxu0 0.0
  %2079 = vmatpush2.msra.mxu0 0.0
  %2080 = vmatprep.subr.mxu0 0.0
  %2081 = vmatpush2.msra.mxu0 0.0
  %2082 = vmatprep.subr.mxu0 0.0
  %2083 = vmatpush2.msra.mxu0 0.0
  %2084 = vmatprep.subr.mxu0 0.0
  %2085 = vmatpush2.msra.mxu0 0.0
  %2086 = vmatprep.subr.mxu0 0.0
  %2087 = vmatpush2.msra.mxu0 0.0
  %2088 = vmatprep.mubr.f32.mxu0 0.0
  %2089 = vmatmul.mubr.f32.gmra.mxu0 %v1882
  %v2090 = vpop.f32.mrf.mxu0
  %v2091 = vadd.f32 %v1299, %v2090
  %v2092 = vpop.f32.mrf.mxu0
  %2093 = vdwg.mxu0
  %v2094 = vadd.f32 %v541, %v1951
  %v2095 = vxor.u32 %v2094, 2147483648
  %v2096 = vmul.f32 %v2095, 1.442695
  %v2097 = vpow.pop %v2096
  %v2098 = vadd.f32 %v2097, 1.0
  %v2099 = vrcp.pop %v2098
  %v2100 = vmul.f32 1.0, %v2099
  %v2101 = vadd.f32 %v697, %v2021
  %v2102 = vxor.u32 %v2101, 2147483648
  %v2103 = vmul.f32 %v2102, 1.442695
  %v2104 = vpow.pop %v2103
  %v2105 = vadd.f32 %v2104, 1.0
  %v2106 = vrcp.pop %v2105
  %v2107 = vmul.f32 1.0, %v2106
  %v2108 = vmul.f32 %v2100, %v2091
  %v2109 = vadd.f32 %v853, %v2108
  %v2110 = vtanh.pop %v2109
  %v2111 = vsub.f32 1.0, %v2107
  %v2112 = vmul.f32 %v2111, %v2110
  %v2113 = vmul.f32 %v2107, %v1880
  %v2114 = vadd.f32 %v2112, %v2113
  %vm2115 = vcmp.gt.s32.totalorder %v1138, 12
  %v2116 = vsel %vm2115, 1, 0
  %2117 = vset.pattern.permute.xlu0 0
  %2118 = vperm.xlu0 %2117, %v2116
  %v2119 = vpop.permute.xlu0 %2118
  %vm2120 = vcmp.eq.s32.totalorder %v2119, 1
  %v2121 = vsel %vm2120, %v2114, %v1880
  %v2123 = vsel %vm365, %v2121, 0
  %2125 = vmatprep.subr.mxu0 0.0
  %2126 = vmatpush1.msra.mxu0 0.0
  %2127 = vmatprep.subr.mxu0 0.0
  %2128 = vmatpush1.msra.mxu0 0.0
  %2129 = vmatprep.subr.mxu0 0.0
  %2130 = vmatpush1.msra.mxu0 0.0
  %2131 = vmatprep.subr.mxu0 0.0
  %2132 = vmatpush1.msra.mxu0 0.0
  %2133 = vmatprep.subr.mxu0 0.0
  %2134 = vmatpush1.msra.mxu0 0.0
  %2135 = vmatprep.subr.mxu0 0.0
  %2136 = vmatpush1.msra.mxu0 0.0
  %2137 = vmatprep.subr.mxu0 0.0
  %2138 = vmatpush1.msra.mxu0 0.0
  %2139 = vmatprep.subr.mxu0 0.0
  %2140 = vmatpush1.msra.mxu0 0.0
  %2141 = vmatprep.subr.mxu0 0.0
  %2142 = vmatpush1.msra.mxu0 0.0
  %2143 = vmatprep.subr.mxu0 0.0
  %2144 = vmatpush1.msra.mxu0 0.0
  %2145 = vmatprep.subr.mxu0 0.0
  %2146 = vmatpush1.msra.mxu0 0.0
  %2147 = vmatprep.subr.mxu0 0.0
  %2148 = vmatpush1.msra.mxu0 0.0
  %2149 = vmatprep.subr.mxu0 0.0
  %2150 = vmatpush1.msra.mxu0 %v1142
  %2151 = vmatprep.subr.mxu0 0.0
  %2152 = vmatpush1.msra.mxu0 %v1141
  %2153 = vmatprep.subr.mxu0 0.0
  %2154 = vmatpush1.msra.mxu0 %v1140
  %2155 = vmatprep.subr.mxu0 0.0
  %2156 = vmatpush1.msra.mxu0 %v1139
  %2157 = vmatprep.subr.mxu0 0.0
  %2158 = vmatpush2.msra.mxu0 0.0
  %2159 = vmatprep.subr.mxu0 0.0
  %2160 = vmatpush2.msra.mxu0 0.0
  %2161 = vmatprep.subr.mxu0 0.0
  %2162 = vmatpush2.msra.mxu0 0.0
  %2163 = vmatprep.subr.mxu0 0.0
  %2164 = vmatpush2.msra.mxu0 0.0
  %2165 = vmatprep.subr.mxu0 0.0
  %2166 = vmatpush2.msra.mxu0 0.0
  %2167 = vmatprep.subr.mxu0 0.0
  %2168 = vmatpush2.msra.mxu0 0.0
  %2169 = vmatprep.subr.mxu0 0.0
  %2170 = vmatpush2.msra.mxu0 0.0
  %2171 = vmatprep.subr.mxu0 0.0
  %2172 = vmatpush2.msra.mxu0 0.0
  %2173 = vmatprep.subr.mxu0 0.0
  %2174 = vmatpush2.msra.mxu0 0.0
  %2175 = vmatprep.subr.mxu0 0.0
  %2176 = vmatpush2.msra.mxu0 0.0
  %2177 = vmatprep.subr.mxu0 0.0
  %2178 = vmatpush2.msra.mxu0 0.0
  %2179 = vmatprep.subr.mxu0 0.0
  %2180 = vmatpush2.msra.mxu0 0.0
  %2181 = vmatprep.subr.mxu0 0.0
  %2182 = vmatpush2.msra.mxu0 0.0
  %2183 = vmatprep.subr.mxu0 0.0
  %2184 = vmatpush2.msra.mxu0 0.0
  %2185 = vmatprep.subr.mxu0 0.0
  %2186 = vmatpush2.msra.mxu0 0.0
  %2187 = vmatprep.subr.mxu0 0.0
  %2188 = vmatpush2.msra.mxu0 0.0
  %2189 = vmatprep.mubr.f32.mxu0 0.0
  %2190 = vmatmul.mubr.f32.gmra.mxu0 %v2123
  %v2191 = vpop.f32.mrf.mxu0
  %v2192 = vadd.f32 0.0, %v2191
  %v2193 = vpop.f32.mrf.mxu0
  %2194 = vdwg.mxu0
  %2195 = vmatprep.subr.mxu0 0.0
  %2196 = vmatpush1.msra.mxu0 0.0
  %2197 = vmatprep.subr.mxu0 0.0
  %2198 = vmatpush1.msra.mxu0 0.0
  %2199 = vmatprep.subr.mxu0 0.0
  %2200 = vmatpush1.msra.mxu0 0.0
  %2201 = vmatprep.subr.mxu0 0.0
  %2202 = vmatpush1.msra.mxu0 0.0
  %2203 = vmatprep.subr.mxu0 0.0
  %2204 = vmatpush1.msra.mxu0 0.0
  %2205 = vmatprep.subr.mxu0 0.0
  %2206 = vmatpush1.msra.mxu0 0.0
  %2207 = vmatprep.subr.mxu0 0.0
  %2208 = vmatpush1.msra.mxu0 0.0
  %2209 = vmatprep.subr.mxu0 0.0
  %2210 = vmatpush1.msra.mxu0 0.0
  %2211 = vmatprep.subr.mxu0 0.0
  %2212 = vmatpush1.msra.mxu0 0.0
  %2213 = vmatprep.subr.mxu0 0.0
  %2214 = vmatpush1.msra.mxu0 0.0
  %2215 = vmatprep.subr.mxu0 0.0
  %2216 = vmatpush1.msra.mxu0 0.0
  %2217 = vmatprep.subr.mxu0 0.0
  %2218 = vmatpush1.msra.mxu0 0.0
  %2219 = vmatprep.subr.mxu0 0.0
  %2220 = vmatpush1.msra.mxu0 %v1146
  %2221 = vmatprep.subr.mxu0 0.0
  %2222 = vmatpush1.msra.mxu0 %v1145
  %2223 = vmatprep.subr.mxu0 0.0
  %2224 = vmatpush1.msra.mxu0 %v1144
  %2225 = vmatprep.subr.mxu0 0.0
  %2226 = vmatpush1.msra.mxu0 %v1143
  %2227 = vmatprep.subr.mxu0 0.0
  %2228 = vmatpush2.msra.mxu0 0.0
  %2229 = vmatprep.subr.mxu0 0.0
  %2230 = vmatpush2.msra.mxu0 0.0
  %2231 = vmatprep.subr.mxu0 0.0
  %2232 = vmatpush2.msra.mxu0 0.0
  %2233 = vmatprep.subr.mxu0 0.0
  %2234 = vmatpush2.msra.mxu0 0.0
  %2235 = vmatprep.subr.mxu0 0.0
  %2236 = vmatpush2.msra.mxu0 0.0
  %2237 = vmatprep.subr.mxu0 0.0
  %2238 = vmatpush2.msra.mxu0 0.0
  %2239 = vmatprep.subr.mxu0 0.0
  %2240 = vmatpush2.msra.mxu0 0.0
  %2241 = vmatprep.subr.mxu0 0.0
  %2242 = vmatpush2.msra.mxu0 0.0
  %2243 = vmatprep.subr.mxu0 0.0
  %2244 = vmatpush2.msra.mxu0 0.0
  %2245 = vmatprep.subr.mxu0 0.0
  %2246 = vmatpush2.msra.mxu0 0.0
  %2247 = vmatprep.subr.mxu0 0.0
  %2248 = vmatpush2.msra.mxu0 0.0
  %2249 = vmatprep.subr.mxu0 0.0
  %2250 = vmatpush2.msra.mxu0 0.0
  %2251 = vmatprep.subr.mxu0 0.0
  %2252 = vmatpush2.msra.mxu0 0.0
  %2253 = vmatprep.subr.mxu0 0.0
  %2254 = vmatpush2.msra.mxu0 0.0
  %2255 = vmatprep.subr.mxu0 0.0
  %2256 = vmatpush2.msra.mxu0 0.0
  %2257 = vmatprep.subr.mxu0 0.0
  %2258 = vmatpush2.msra.mxu0 0.0
  %2259 = vmatprep.mubr.f32.mxu0 0.0
  %2260 = vmatmul.mubr.f32.gmra.mxu0 %v2123
  %v2261 = vpop.f32.mrf.mxu0
  %v2262 = vadd.f32 0.0, %v2261
  %v2263 = vpop.f32.mrf.mxu0
  %2264 = vdwg.mxu0
  %2265 = vmatprep.subr.mxu0 0.0
  %2266 = vmatpush1.msra.mxu0 0.0
  %2267 = vmatprep.subr.mxu0 0.0
  %2268 = vmatpush1.msra.mxu0 0.0
  %2269 = vmatprep.subr.mxu0 0.0
  %2270 = vmatpush1.msra.mxu0 0.0
  %2271 = vmatprep.subr.mxu0 0.0
  %2272 = vmatpush1.msra.mxu0 0.0
  %2273 = vmatprep.subr.mxu0 0.0
  %2274 = vmatpush1.msra.mxu0 0.0
  %2275 = vmatprep.subr.mxu0 0.0
  %2276 = vmatpush1.msra.mxu0 0.0
  %2277 = vmatprep.subr.mxu0 0.0
  %2278 = vmatpush1.msra.mxu0 0.0
  %2279 = vmatprep.subr.mxu0 0.0
  %2280 = vmatpush1.msra.mxu0 0.0
  %2281 = vmatprep.subr.mxu0 0.0
  %2282 = vmatpush1.msra.mxu0 0.0
  %2283 = vmatprep.subr.mxu0 0.0
  %2284 = vmatpush1.msra.mxu0 0.0
  %2285 = vmatprep.subr.mxu0 0.0
  %2286 = vmatpush1.msra.mxu0 0.0
  %2287 = vmatprep.subr.mxu0 0.0
  %2288 = vmatpush1.msra.mxu0 0.0
  %2289 = vmatprep.subr.mxu0 0.0
  %2290 = vmatpush1.msra.mxu0 %v1150
  %2291 = vmatprep.subr.mxu0 0.0
  %2292 = vmatpush1.msra.mxu0 %v1149
  %2293 = vmatprep.subr.mxu0 0.0
  %2294 = vmatpush1.msra.mxu0 %v1148
  %2295 = vmatprep.subr.mxu0 0.0
  %2296 = vmatpush1.msra.mxu0 %v1147
  %2297 = vmatprep.subr.mxu0 0.0
  %2298 = vmatpush2.msra.mxu0 0.0
  %2299 = vmatprep.subr.mxu0 0.0
  %2300 = vmatpush2.msra.mxu0 0.0
  %2301 = vmatprep.subr.mxu0 0.0
  %2302 = vmatpush2.msra.mxu0 0.0
  %2303 = vmatprep.subr.mxu0 0.0
  %2304 = vmatpush2.msra.mxu0 0.0
  %2305 = vmatprep.subr.mxu0 0.0
  %2306 = vmatpush2.msra.mxu0 0.0
  %2307 = vmatprep.subr.mxu0 0.0
  %2308 = vmatpush2.msra.mxu0 0.0
  %2309 = vmatprep.subr.mxu0 0.0
  %2310 = vmatpush2.msra.mxu0 0.0
  %2311 = vmatprep.subr.mxu0 0.0
  %2312 = vmatpush2.msra.mxu0 0.0
  %2313 = vmatprep.subr.mxu0 0.0
  %2314 = vmatpush2.msra.mxu0 0.0
  %2315 = vmatprep.subr.mxu0 0.0
  %2316 = vmatpush2.msra.mxu0 0.0
  %2317 = vmatprep.subr.mxu0 0.0
  %2318 = vmatpush2.msra.mxu0 0.0
  %2319 = vmatprep.subr.mxu0 0.0
  %2320 = vmatpush2.msra.mxu0 0.0
  %2321 = vmatprep.subr.mxu0 0.0
  %2322 = vmatpush2.msra.mxu0 0.0
  %2323 = vmatprep.subr.mxu0 0.0
  %2324 = vmatpush2.msra.mxu0 0.0
  %2325 = vmatprep.subr.mxu0 0.0
  %2326 = vmatpush2.msra.mxu0 0.0
  %2327 = vmatprep.subr.mxu0 0.0
  %2328 = vmatpush2.msra.mxu0 0.0
  %2329 = vmatprep.mubr.f32.mxu0 0.0
  %2330 = vmatmul.mubr.f32.gmra.mxu0 %v2123
  %v2331 = vpop.f32.mrf.mxu0
  %v2332 = vadd.f32 %v1299, %v2331
  %v2333 = vpop.f32.mrf.mxu0
  %2334 = vdwg.mxu0
  %v2335 = vadd.f32 %v536, %v2192
  %v2336 = vxor.u32 %v2335, 2147483648
  %v2337 = vmul.f32 %v2336, 1.442695
  %v2338 = vpow.pop %v2337
  %v2339 = vadd.f32 %v2338, 1.0
  %v2340 = vrcp.pop %v2339
  %v2341 = vmul.f32 1.0, %v2340
  %v2342 = vadd.f32 %v692, %v2262
  %v2343 = vxor.u32 %v2342, 2147483648
  %v2344 = vmul.f32 %v2343, 1.442695
  %v2345 = vpow.pop %v2344
  %v2346 = vadd.f32 %v2345, 1.0
  %v2347 = vrcp.pop %v2346
  %v2348 = vmul.f32 1.0, %v2347
  %v2349 = vmul.f32 %v2341, %v2332
  %v2350 = vadd.f32 %v848, %v2349
  %v2351 = vtanh.pop %v2350
  %v2352 = vsub.f32 1.0, %v2348
  %v2353 = vmul.f32 %v2352, %v2351
  %v2354 = vmul.f32 %v2348, %v2121
  %v2355 = vadd.f32 %v2353, %v2354
  %vm2356 = vcmp.gt.s32.totalorder %v1138, 11
  %v2357 = vsel %vm2356, 1, 0
  %2358 = vset.pattern.permute.xlu0 0
  %2359 = vperm.xlu0 %2358, %v2357
  %v2360 = vpop.permute.xlu0 %2359
  %vm2361 = vcmp.eq.s32.totalorder %v2360, 1
  %v2362 = vsel %vm2361, %v2355, %v2121
  %v2364 = vsel %vm365, %v2362, 0
  %2366 = vmatprep.subr.mxu0 0.0
  %2367 = vmatpush1.msra.mxu0 0.0
  %2368 = vmatprep.subr.mxu0 0.0
  %2369 = vmatpush1.msra.mxu0 0.0
  %2370 = vmatprep.subr.mxu0 0.0
  %2371 = vmatpush1.msra.mxu0 0.0
  %2372 = vmatprep.subr.mxu0 0.0
  %2373 = vmatpush1.msra.mxu0 0.0
  %2374 = vmatprep.subr.mxu0 0.0
  %2375 = vmatpush1.msra.mxu0 0.0
  %2376 = vmatprep.subr.mxu0 0.0
  %2377 = vmatpush1.msra.mxu0 0.0
  %2378 = vmatprep.subr.mxu0 0.0
  %2379 = vmatpush1.msra.mxu0 0.0
  %2380 = vmatprep.subr.mxu0 0.0
  %2381 = vmatpush1.msra.mxu0 0.0
  %2382 = vmatprep.subr.mxu0 0.0
  %2383 = vmatpush1.msra.mxu0 0.0
  %2384 = vmatprep.subr.mxu0 0.0
  %2385 = vmatpush1.msra.mxu0 0.0
  %2386 = vmatprep.subr.mxu0 0.0
  %2387 = vmatpush1.msra.mxu0 0.0
  %2388 = vmatprep.subr.mxu0 0.0
  %2389 = vmatpush1.msra.mxu0 0.0
  %2390 = vmatprep.subr.mxu0 0.0
  %2391 = vmatpush1.msra.mxu0 %v1142
  %2392 = vmatprep.subr.mxu0 0.0
  %2393 = vmatpush1.msra.mxu0 %v1141
  %2394 = vmatprep.subr.mxu0 0.0
  %2395 = vmatpush1.msra.mxu0 %v1140
  %2396 = vmatprep.subr.mxu0 0.0
  %2397 = vmatpush1.msra.mxu0 %v1139
  %2398 = vmatprep.subr.mxu0 0.0
  %2399 = vmatpush2.msra.mxu0 0.0
  %2400 = vmatprep.subr.mxu0 0.0
  %2401 = vmatpush2.msra.mxu0 0.0
  %2402 = vmatprep.subr.mxu0 0.0
  %2403 = vmatpush2.msra.mxu0 0.0
  %2404 = vmatprep.subr.mxu0 0.0
  %2405 = vmatpush2.msra.mxu0 0.0
  %2406 = vmatprep.subr.mxu0 0.0
  %2407 = vmatpush2.msra.mxu0 0.0
  %2408 = vmatprep.subr.mxu0 0.0
  %2409 = vmatpush2.msra.mxu0 0.0
  %2410 = vmatprep.subr.mxu0 0.0
  %2411 = vmatpush2.msra.mxu0 0.0
  %2412 = vmatprep.subr.mxu0 0.0
  %2413 = vmatpush2.msra.mxu0 0.0
  %2414 = vmatprep.subr.mxu0 0.0
  %2415 = vmatpush2.msra.mxu0 0.0
  %2416 = vmatprep.subr.mxu0 0.0
  %2417 = vmatpush2.msra.mxu0 0.0
  %2418 = vmatprep.subr.mxu0 0.0
  %2419 = vmatpush2.msra.mxu0 0.0
  %2420 = vmatprep.subr.mxu0 0.0
  %2421 = vmatpush2.msra.mxu0 0.0
  %2422 = vmatprep.subr.mxu0 0.0
  %2423 = vmatpush2.msra.mxu0 0.0
  %2424 = vmatprep.subr.mxu0 0.0
  %2425 = vmatpush2.msra.mxu0 0.0
  %2426 = vmatprep.subr.mxu0 0.0
  %2427 = vmatpush2.msra.mxu0 0.0
  %2428 = vmatprep.subr.mxu0 0.0
  %2429 = vmatpush2.msra.mxu0 0.0
  %2430 = vmatprep.mubr.f32.mxu0 0.0
  %2431 = vmatmul.mubr.f32.gmra.mxu0 %v2364
  %v2432 = vpop.f32.mrf.mxu0
  %v2433 = vadd.f32 0.0, %v2432
  %v2434 = vpop.f32.mrf.mxu0
  %2435 = vdwg.mxu0
  %2436 = vmatprep.subr.mxu0 0.0
  %2437 = vmatpush1.msra.mxu0 0.0
  %2438 = vmatprep.subr.mxu0 0.0
  %2439 = vmatpush1.msra.mxu0 0.0
  %2440 = vmatprep.subr.mxu0 0.0
  %2441 = vmatpush1.msra.mxu0 0.0
  %2442 = vmatprep.subr.mxu0 0.0
  %2443 = vmatpush1.msra.mxu0 0.0
  %2444 = vmatprep.subr.mxu0 0.0
  %2445 = vmatpush1.msra.mxu0 0.0
  %2446 = vmatprep.subr.mxu0 0.0
  %2447 = vmatpush1.msra.mxu0 0.0
  %2448 = vmatprep.subr.mxu0 0.0
  %2449 = vmatpush1.msra.mxu0 0.0
  %2450 = vmatprep.subr.mxu0 0.0
  %2451 = vmatpush1.msra.mxu0 0.0
  %2452 = vmatprep.subr.mxu0 0.0
  %2453 = vmatpush1.msra.mxu0 0.0
  %2454 = vmatprep.subr.mxu0 0.0
  %2455 = vmatpush1.msra.mxu0 0.0
  %2456 = vmatprep.subr.mxu0 0.0
  %2457 = vmatpush1.msra.mxu0 0.0
  %2458 = vmatprep.subr.mxu0 0.0
  %2459 = vmatpush1.msra.mxu0 0.0
  %2460 = vmatprep.subr.mxu0 0.0
  %2461 = vmatpush1.msra.mxu0 %v1146
  %2462 = vmatprep.subr.mxu0 0.0
  %2463 = vmatpush1.msra.mxu0 %v1145
  %2464 = vmatprep.subr.mxu0 0.0
  %2465 = vmatpush1.msra.mxu0 %v1144
  %2466 = vmatprep.subr.mxu0 0.0
  %2467 = vmatpush1.msra.mxu0 %v1143
  %2468 = vmatprep.subr.mxu0 0.0
  %2469 = vmatpush2.msra.mxu0 0.0
  %2470 = vmatprep.subr.mxu0 0.0
  %2471 = vmatpush2.msra.mxu0 0.0
  %2472 = vmatprep.subr.mxu0 0.0
  %2473 = vmatpush2.msra.mxu0 0.0
  %2474 = vmatprep.subr.mxu0 0.0
  %2475 = vmatpush2.msra.mxu0 0.0
  %2476 = vmatprep.subr.mxu0 0.0
  %2477 = vmatpush2.msra.mxu0 0.0
  %2478 = vmatprep.subr.mxu0 0.0
  %2479 = vmatpush2.msra.mxu0 0.0
  %2480 = vmatprep.subr.mxu0 0.0
  %2481 = vmatpush2.msra.mxu0 0.0
  %2482 = vmatprep.subr.mxu0 0.0
  %2483 = vmatpush2.msra.mxu0 0.0
  %2484 = vmatprep.subr.mxu0 0.0
  %2485 = vmatpush2.msra.mxu0 0.0
  %2486 = vmatprep.subr.mxu0 0.0
  %2487 = vmatpush2.msra.mxu0 0.0
  %2488 = vmatprep.subr.mxu0 0.0
  %2489 = vmatpush2.msra.mxu0 0.0
  %2490 = vmatprep.subr.mxu0 0.0
  %2491 = vmatpush2.msra.mxu0 0.0
  %2492 = vmatprep.subr.mxu0 0.0
  %2493 = vmatpush2.msra.mxu0 0.0
  %2494 = vmatprep.subr.mxu0 0.0
  %2495 = vmatpush2.msra.mxu0 0.0
  %2496 = vmatprep.subr.mxu0 0.0
  %2497 = vmatpush2.msra.mxu0 0.0
  %2498 = vmatprep.subr.mxu0 0.0
  %2499 = vmatpush2.msra.mxu0 0.0
  %2500 = vmatprep.mubr.f32.mxu0 0.0
  %2501 = vmatmul.mubr.f32.gmra.mxu0 %v2364
  %v2502 = vpop.f32.mrf.mxu0
  %v2503 = vadd.f32 0.0, %v2502
  %v2504 = vpop.f32.mrf.mxu0
  %2505 = vdwg.mxu0
  %2506 = vmatprep.subr.mxu0 0.0
  %2507 = vmatpush1.msra.mxu0 0.0
  %2508 = vmatprep.subr.mxu0 0.0
  %2509 = vmatpush1.msra.mxu0 0.0
  %2510 = vmatprep.subr.mxu0 0.0
  %2511 = vmatpush1.msra.mxu0 0.0
  %2512 = vmatprep.subr.mxu0 0.0
  %2513 = vmatpush1.msra.mxu0 0.0
  %2514 = vmatprep.subr.mxu0 0.0
  %2515 = vmatpush1.msra.mxu0 0.0
  %2516 = vmatprep.subr.mxu0 0.0
  %2517 = vmatpush1.msra.mxu0 0.0
  %2518 = vmatprep.subr.mxu0 0.0
  %2519 = vmatpush1.msra.mxu0 0.0
  %2520 = vmatprep.subr.mxu0 0.0
  %2521 = vmatpush1.msra.mxu0 0.0
  %2522 = vmatprep.subr.mxu0 0.0
  %2523 = vmatpush1.msra.mxu0 0.0
  %2524 = vmatprep.subr.mxu0 0.0
  %2525 = vmatpush1.msra.mxu0 0.0
  %2526 = vmatprep.subr.mxu0 0.0
  %2527 = vmatpush1.msra.mxu0 0.0
  %2528 = vmatprep.subr.mxu0 0.0
  %2529 = vmatpush1.msra.mxu0 0.0
  %2530 = vmatprep.subr.mxu0 0.0
  %2531 = vmatpush1.msra.mxu0 %v1150
  %2532 = vmatprep.subr.mxu0 0.0
  %2533 = vmatpush1.msra.mxu0 %v1149
  %2534 = vmatprep.subr.mxu0 0.0
  %2535 = vmatpush1.msra.mxu0 %v1148
  %2536 = vmatprep.subr.mxu0 0.0
  %2537 = vmatpush1.msra.mxu0 %v1147
  %2538 = vmatprep.subr.mxu0 0.0
  %2539 = vmatpush2.msra.mxu0 0.0
  %2540 = vmatprep.subr.mxu0 0.0
  %2541 = vmatpush2.msra.mxu0 0.0
  %2542 = vmatprep.subr.mxu0 0.0
  %2543 = vmatpush2.msra.mxu0 0.0
  %2544 = vmatprep.subr.mxu0 0.0
  %2545 = vmatpush2.msra.mxu0 0.0
  %2546 = vmatprep.subr.mxu0 0.0
  %2547 = vmatpush2.msra.mxu0 0.0
  %2548 = vmatprep.subr.mxu0 0.0
  %2549 = vmatpush2.msra.mxu0 0.0
  %2550 = vmatprep.subr.mxu0 0.0
  %2551 = vmatpush2.msra.mxu0 0.0
  %2552 = vmatprep.subr.mxu0 0.0
  %2553 = vmatpush2.msra.mxu0 0.0
  %2554 = vmatprep.subr.mxu0 0.0
  %2555 = vmatpush2.msra.mxu0 0.0
  %2556 = vmatprep.subr.mxu0 0.0
  %2557 = vmatpush2.msra.mxu0 0.0
  %2558 = vmatprep.subr.mxu0 0.0
  %2559 = vmatpush2.msra.mxu0 0.0
  %2560 = vmatprep.subr.mxu0 0.0
  %2561 = vmatpush2.msra.mxu0 0.0
  %2562 = vmatprep.subr.mxu0 0.0
  %2563 = vmatpush2.msra.mxu0 0.0
  %2564 = vmatprep.subr.mxu0 0.0
  %2565 = vmatpush2.msra.mxu0 0.0
  %2566 = vmatprep.subr.mxu0 0.0
  %2567 = vmatpush2.msra.mxu0 0.0
  %2568 = vmatprep.subr.mxu0 0.0
  %2569 = vmatpush2.msra.mxu0 0.0
  %2570 = vmatprep.mubr.f32.mxu0 0.0
  %2571 = vmatmul.mubr.f32.gmra.mxu0 %v2364
  %v2572 = vpop.f32.mrf.mxu0
  %v2573 = vadd.f32 %v1299, %v2572
  %v2574 = vpop.f32.mrf.mxu0
  %2575 = vdwg.mxu0
  %v2576 = vadd.f32 %v531, %v2433
  %v2577 = vxor.u32 %v2576, 2147483648
  %v2578 = vmul.f32 %v2577, 1.442695
  %v2579 = vpow.pop %v2578
  %v2580 = vadd.f32 %v2579, 1.0
  %v2581 = vrcp.pop %v2580
  %v2582 = vmul.f32 1.0, %v2581
  %v2583 = vadd.f32 %v687, %v2503
  %v2584 = vxor.u32 %v2583, 2147483648
  %v2585 = vmul.f32 %v2584, 1.442695
  %v2586 = vpow.pop %v2585
  %v2587 = vadd.f32 %v2586, 1.0
  %v2588 = vrcp.pop %v2587
  %v2589 = vmul.f32 1.0, %v2588
  %v2590 = vmul.f32 %v2582, %v2573
  %v2591 = vadd.f32 %v843, %v2590
  %v2592 = vtanh.pop %v2591
  %v2593 = vsub.f32 1.0, %v2589
  %v2594 = vmul.f32 %v2593, %v2592
  %v2595 = vmul.f32 %v2589, %v2362
  %v2596 = vadd.f32 %v2594, %v2595
  %vm2597 = vcmp.gt.s32.totalorder %v1138, 10
  %v2598 = vsel %vm2597, 1, 0
  %2599 = vset.pattern.permute.xlu0 0
  %2600 = vperm.xlu0 %2599, %v2598
  %v2601 = vpop.permute.xlu0 %2600
  %vm2602 = vcmp.eq.s32.totalorder %v2601, 1
  %v2603 = vsel %vm2602, %v2596, %v2362
  %v2605 = vsel %vm365, %v2603, 0
  %2607 = vmatprep.subr.mxu0 0.0
  %2608 = vmatpush1.msra.mxu0 0.0
  %2609 = vmatprep.subr.mxu0 0.0
  %2610 = vmatpush1.msra.mxu0 0.0
  %2611 = vmatprep.subr.mxu0 0.0
  %2612 = vmatpush1.msra.mxu0 0.0
  %2613 = vmatprep.subr.mxu0 0.0
  %2614 = vmatpush1.msra.mxu0 0.0
  %2615 = vmatprep.subr.mxu0 0.0
  %2616 = vmatpush1.msra.mxu0 0.0
  %2617 = vmatprep.subr.mxu0 0.0
  %2618 = vmatpush1.msra.mxu0 0.0
  %2619 = vmatprep.subr.mxu0 0.0
  %2620 = vmatpush1.msra.mxu0 0.0
  %2621 = vmatprep.subr.mxu0 0.0
  %2622 = vmatpush1.msra.mxu0 0.0
  %2623 = vmatprep.subr.mxu0 0.0
  %2624 = vmatpush1.msra.mxu0 0.0
  %2625 = vmatprep.subr.mxu0 0.0
  %2626 = vmatpush1.msra.mxu0 0.0
  %2627 = vmatprep.subr.mxu0 0.0
  %2628 = vmatpush1.msra.mxu0 0.0
  %2629 = vmatprep.subr.mxu0 0.0
  %2630 = vmatpush1.msra.mxu0 0.0
  %2631 = vmatprep.subr.mxu0 0.0
  %2632 = vmatpush1.msra.mxu0 %v1142
  %2633 = vmatprep.subr.mxu0 0.0
  %2634 = vmatpush1.msra.mxu0 %v1141
  %2635 = vmatprep.subr.mxu0 0.0
  %2636 = vmatpush1.msra.mxu0 %v1140
  %2637 = vmatprep.subr.mxu0 0.0
  %2638 = vmatpush1.msra.mxu0 %v1139
  %2639 = vmatprep.subr.mxu0 0.0
  %2640 = vmatpush2.msra.mxu0 0.0
  %2641 = vmatprep.subr.mxu0 0.0
  %2642 = vmatpush2.msra.mxu0 0.0
  %2643 = vmatprep.subr.mxu0 0.0
  %2644 = vmatpush2.msra.mxu0 0.0
  %2645 = vmatprep.subr.mxu0 0.0
  %2646 = vmatpush2.msra.mxu0 0.0
  %2647 = vmatprep.subr.mxu0 0.0
  %2648 = vmatpush2.msra.mxu0 0.0
  %2649 = vmatprep.subr.mxu0 0.0
  %2650 = vmatpush2.msra.mxu0 0.0
  %2651 = vmatprep.subr.mxu0 0.0
  %2652 = vmatpush2.msra.mxu0 0.0
  %2653 = vmatprep.subr.mxu0 0.0
  %2654 = vmatpush2.msra.mxu0 0.0
  %2655 = vmatprep.subr.mxu0 0.0
  %2656 = vmatpush2.msra.mxu0 0.0
  %2657 = vmatprep.subr.mxu0 0.0
  %2658 = vmatpush2.msra.mxu0 0.0
  %2659 = vmatprep.subr.mxu0 0.0
  %2660 = vmatpush2.msra.mxu0 0.0
  %2661 = vmatprep.subr.mxu0 0.0
  %2662 = vmatpush2.msra.mxu0 0.0
  %2663 = vmatprep.subr.mxu0 0.0
  %2664 = vmatpush2.msra.mxu0 0.0
  %2665 = vmatprep.subr.mxu0 0.0
  %2666 = vmatpush2.msra.mxu0 0.0
  %2667 = vmatprep.subr.mxu0 0.0
  %2668 = vmatpush2.msra.mxu0 0.0
  %2669 = vmatprep.subr.mxu0 0.0
  %2670 = vmatpush2.msra.mxu0 0.0
  %2671 = vmatprep.mubr.f32.mxu0 0.0
  %2672 = vmatmul.mubr.f32.gmra.mxu0 %v2605
  %v2673 = vpop.f32.mrf.mxu0
  %v2674 = vadd.f32 0.0, %v2673
  %v2675 = vpop.f32.mrf.mxu0
  %2676 = vdwg.mxu0
  %2677 = vmatprep.subr.mxu0 0.0
  %2678 = vmatpush1.msra.mxu0 0.0
  %2679 = vmatprep.subr.mxu0 0.0
  %2680 = vmatpush1.msra.mxu0 0.0
  %2681 = vmatprep.subr.mxu0 0.0
  %2682 = vmatpush1.msra.mxu0 0.0
  %2683 = vmatprep.subr.mxu0 0.0
  %2684 = vmatpush1.msra.mxu0 0.0
  %2685 = vmatprep.subr.mxu0 0.0
  %2686 = vmatpush1.msra.mxu0 0.0
  %2687 = vmatprep.subr.mxu0 0.0
  %2688 = vmatpush1.msra.mxu0 0.0
  %2689 = vmatprep.subr.mxu0 0.0
  %2690 = vmatpush1.msra.mxu0 0.0
  %2691 = vmatprep.subr.mxu0 0.0
  %2692 = vmatpush1.msra.mxu0 0.0
  %2693 = vmatprep.subr.mxu0 0.0
  %2694 = vmatpush1.msra.mxu0 0.0
  %2695 = vmatprep.subr.mxu0 0.0
  %2696 = vmatpush1.msra.mxu0 0.0
  %2697 = vmatprep.subr.mxu0 0.0
  %2698 = vmatpush1.msra.mxu0 0.0
  %2699 = vmatprep.subr.mxu0 0.0
  %2700 = vmatpush1.msra.mxu0 0.0
  %2701 = vmatprep.subr.mxu0 0.0
  %2702 = vmatpush1.msra.mxu0 %v1146
  %2703 = vmatprep.subr.mxu0 0.0
  %2704 = vmatpush1.msra.mxu0 %v1145
  %2705 = vmatprep.subr.mxu0 0.0
  %2706 = vmatpush1.msra.mxu0 %v1144
  %2707 = vmatprep.subr.mxu0 0.0
  %2708 = vmatpush1.msra.mxu0 %v1143
  %2709 = vmatprep.subr.mxu0 0.0
  %2710 = vmatpush2.msra.mxu0 0.0
  %2711 = vmatprep.subr.mxu0 0.0
  %2712 = vmatpush2.msra.mxu0 0.0
  %2713 = vmatprep.subr.mxu0 0.0
  %2714 = vmatpush2.msra.mxu0 0.0
  %2715 = vmatprep.subr.mxu0 0.0
  %2716 = vmatpush2.msra.mxu0 0.0
  %2717 = vmatprep.subr.mxu0 0.0
  %2718 = vmatpush2.msra.mxu0 0.0
  %2719 = vmatprep.subr.mxu0 0.0
  %2720 = vmatpush2.msra.mxu0 0.0
  %2721 = vmatprep.subr.mxu0 0.0
  %2722 = vmatpush2.msra.mxu0 0.0
  %2723 = vmatprep.subr.mxu0 0.0
  %2724 = vmatpush2.msra.mxu0 0.0
  %2725 = vmatprep.subr.mxu0 0.0
  %2726 = vmatpush2.msra.mxu0 0.0
  %2727 = vmatprep.subr.mxu0 0.0
  %2728 = vmatpush2.msra.mxu0 0.0
  %2729 = vmatprep.subr.mxu0 0.0
  %2730 = vmatpush2.msra.mxu0 0.0
  %2731 = vmatprep.subr.mxu0 0.0
  %2732 = vmatpush2.msra.mxu0 0.0
  %2733 = vmatprep.subr.mxu0 0.0
  %2734 = vmatpush2.msra.mxu0 0.0
  %2735 = vmatprep.subr.mxu0 0.0
  %2736 = vmatpush2.msra.mxu0 0.0
  %2737 = vmatprep.subr.mxu0 0.0
  %2738 = vmatpush2.msra.mxu0 0.0
  %2739 = vmatprep.subr.mxu0 0.0
  %2740 = vmatpush2.msra.mxu0 0.0
  %2741 = vmatprep.mubr.f32.mxu0 0.0
  %2742 = vmatmul.mubr.f32.gmra.mxu0 %v2605
  %v2743 = vpop.f32.mrf.mxu0
  %v2744 = vadd.f32 0.0, %v2743
  %v2745 = vpop.f32.mrf.mxu0
  %2746 = vdwg.mxu0
  %2747 = vmatprep.subr.mxu0 0.0
  %2748 = vmatpush1.msra.mxu0 0.0
  %2749 = vmatprep.subr.mxu0 0.0
  %2750 = vmatpush1.msra.mxu0 0.0
  %2751 = vmatprep.subr.mxu0 0.0
  %2752 = vmatpush1.msra.mxu0 0.0
  %2753 = vmatprep.subr.mxu0 0.0
  %2754 = vmatpush1.msra.mxu0 0.0
  %2755 = vmatprep.subr.mxu0 0.0
  %2756 = vmatpush1.msra.mxu0 0.0
  %2757 = vmatprep.subr.mxu0 0.0
  %2758 = vmatpush1.msra.mxu0 0.0
  %2759 = vmatprep.subr.mxu0 0.0
  %2760 = vmatpush1.msra.mxu0 0.0
  %2761 = vmatprep.subr.mxu0 0.0
  %2762 = vmatpush1.msra.mxu0 0.0
  %2763 = vmatprep.subr.mxu0 0.0
  %2764 = vmatpush1.msra.mxu0 0.0
  %2765 = vmatprep.subr.mxu0 0.0
  %2766 = vmatpush1.msra.mxu0 0.0
  %2767 = vmatprep.subr.mxu0 0.0
  %2768 = vmatpush1.msra.mxu0 0.0
  %2769 = vmatprep.subr.mxu0 0.0
  %2770 = vmatpush1.msra.mxu0 0.0
  %2771 = vmatprep.subr.mxu0 0.0
  %2772 = vmatpush1.msra.mxu0 %v1150
  %2773 = vmatprep.subr.mxu0 0.0
  %2774 = vmatpush1.msra.mxu0 %v1149
  %2775 = vmatprep.subr.mxu0 0.0
  %2776 = vmatpush1.msra.mxu0 %v1148
  %2777 = vmatprep.subr.mxu0 0.0
  %2778 = vmatpush1.msra.mxu0 %v1147
  %2779 = vmatprep.subr.mxu0 0.0
  %2780 = vmatpush2.msra.mxu0 0.0
  %2781 = vmatprep.subr.mxu0 0.0
  %2782 = vmatpush2.msra.mxu0 0.0
  %2783 = vmatprep.subr.mxu0 0.0
  %2784 = vmatpush2.msra.mxu0 0.0
  %2785 = vmatprep.subr.mxu0 0.0
  %2786 = vmatpush2.msra.mxu0 0.0
  %2787 = vmatprep.subr.mxu0 0.0
  %2788 = vmatpush2.msra.mxu0 0.0
  %2789 = vmatprep.subr.mxu0 0.0
  %2790 = vmatpush2.msra.mxu0 0.0
  %2791 = vmatprep.subr.mxu0 0.0
  %2792 = vmatpush2.msra.mxu0 0.0
  %2793 = vmatprep.subr.mxu0 0.0
  %2794 = vmatpush2.msra.mxu0 0.0
  %2795 = vmatprep.subr.mxu0 0.0
  %2796 = vmatpush2.msra.mxu0 0.0
  %2797 = vmatprep.subr.mxu0 0.0
  %2798 = vmatpush2.msra.mxu0 0.0
  %2799 = vmatprep.subr.mxu0 0.0
  %2800 = vmatpush2.msra.mxu0 0.0
  %2801 = vmatprep.subr.mxu0 0.0
  %2802 = vmatpush2.msra.mxu0 0.0
  %2803 = vmatprep.subr.mxu0 0.0
  %2804 = vmatpush2.msra.mxu0 0.0
  %2805 = vmatprep.subr.mxu0 0.0
  %2806 = vmatpush2.msra.mxu0 0.0
  %2807 = vmatprep.subr.mxu0 0.0
  %2808 = vmatpush2.msra.mxu0 0.0
  %2809 = vmatprep.subr.mxu0 0.0
  %2810 = vmatpush2.msra.mxu0 0.0
  %2811 = vmatprep.mubr.f32.mxu0 0.0
  %2812 = vmatmul.mubr.f32.gmra.mxu0 %v2605
  %v2813 = vpop.f32.mrf.mxu0
  %v2814 = vadd.f32 %v1299, %v2813
  %v2815 = vpop.f32.mrf.mxu0
  %2816 = vdwg.mxu0
  %v2817 = vadd.f32 %v526, %v2674
  %v2818 = vxor.u32 %v2817, 2147483648
  %v2819 = vmul.f32 %v2818, 1.442695
  %v2820 = vpow.pop %v2819
  %v2821 = vadd.f32 %v2820, 1.0
  %v2822 = vrcp.pop %v2821
  %v2823 = vmul.f32 1.0, %v2822
  %v2824 = vadd.f32 %v682, %v2744
  %v2825 = vxor.u32 %v2824, 2147483648
  %v2826 = vmul.f32 %v2825, 1.442695
  %v2827 = vpow.pop %v2826
  %v2828 = vadd.f32 %v2827, 1.0
  %v2829 = vrcp.pop %v2828
  %v2830 = vmul.f32 1.0, %v2829
  %v2831 = vmul.f32 %v2823, %v2814
  %v2832 = vadd.f32 %v838, %v2831
  %v2833 = vtanh.pop %v2832
  %v2834 = vsub.f32 1.0, %v2830
  %v2835 = vmul.f32 %v2834, %v2833
  %v2836 = vmul.f32 %v2830, %v2603
  %v2837 = vadd.f32 %v2835, %v2836
  %vm2838 = vcmp.gt.s32.totalorder %v1138, 9
  %v2839 = vsel %vm2838, 1, 0
  %2840 = vset.pattern.permute.xlu0 0
  %2841 = vperm.xlu0 %2840, %v2839
  %v2842 = vpop.permute.xlu0 %2841
  %vm2843 = vcmp.eq.s32.totalorder %v2842, 1
  %v2844 = vsel %vm2843, %v2837, %v2603
  %v2846 = vsel %vm365, %v2844, 0
  %2848 = vmatprep.subr.mxu0 0.0
  %2849 = vmatpush1.msra.mxu0 0.0
  %2850 = vmatprep.subr.mxu0 0.0
  %2851 = vmatpush1.msra.mxu0 0.0
  %2852 = vmatprep.subr.mxu0 0.0
  %2853 = vmatpush1.msra.mxu0 0.0
  %2854 = vmatprep.subr.mxu0 0.0
  %2855 = vmatpush1.msra.mxu0 0.0
  %2856 = vmatprep.subr.mxu0 0.0
  %2857 = vmatpush1.msra.mxu0 0.0
  %2858 = vmatprep.subr.mxu0 0.0
  %2859 = vmatpush1.msra.mxu0 0.0
  %2860 = vmatprep.subr.mxu0 0.0
  %2861 = vmatpush1.msra.mxu0 0.0
  %2862 = vmatprep.subr.mxu0 0.0
  %2863 = vmatpush1.msra.mxu0 0.0
  %2864 = vmatprep.subr.mxu0 0.0
  %2865 = vmatpush1.msra.mxu0 0.0
  %2866 = vmatprep.subr.mxu0 0.0
  %2867 = vmatpush1.msra.mxu0 0.0
  %2868 = vmatprep.subr.mxu0 0.0
  %2869 = vmatpush1.msra.mxu0 0.0
  %2870 = vmatprep.subr.mxu0 0.0
  %2871 = vmatpush1.msra.mxu0 0.0
  %2872 = vmatprep.subr.mxu0 0.0
  %2873 = vmatpush1.msra.mxu0 %v1142
  %2874 = vmatprep.subr.mxu0 0.0
  %2875 = vmatpush1.msra.mxu0 %v1141
  %2876 = vmatprep.subr.mxu0 0.0
  %2877 = vmatpush1.msra.mxu0 %v1140
  %2878 = vmatprep.subr.mxu0 0.0
  %2879 = vmatpush1.msra.mxu0 %v1139
  %2880 = vmatprep.subr.mxu0 0.0
  %2881 = vmatpush2.msra.mxu0 0.0
  %2882 = vmatprep.subr.mxu0 0.0
  %2883 = vmatpush2.msra.mxu0 0.0
  %2884 = vmatprep.subr.mxu0 0.0
  %2885 = vmatpush2.msra.mxu0 0.0
  %2886 = vmatprep.subr.mxu0 0.0
  %2887 = vmatpush2.msra.mxu0 0.0
  %2888 = vmatprep.subr.mxu0 0.0
  %2889 = vmatpush2.msra.mxu0 0.0
  %2890 = vmatprep.subr.mxu0 0.0
  %2891 = vmatpush2.msra.mxu0 0.0
  %2892 = vmatprep.subr.mxu0 0.0
  %2893 = vmatpush2.msra.mxu0 0.0
  %2894 = vmatprep.subr.mxu0 0.0
  %2895 = vmatpush2.msra.mxu0 0.0
  %2896 = vmatprep.subr.mxu0 0.0
  %2897 = vmatpush2.msra.mxu0 0.0
  %2898 = vmatprep.subr.mxu0 0.0
  %2899 = vmatpush2.msra.mxu0 0.0
  %2900 = vmatprep.subr.mxu0 0.0
  %2901 = vmatpush2.msra.mxu0 0.0
  %2902 = vmatprep.subr.mxu0 0.0
  %2903 = vmatpush2.msra.mxu0 0.0
  %2904 = vmatprep.subr.mxu0 0.0
  %2905 = vmatpush2.msra.mxu0 0.0
  %2906 = vmatprep.subr.mxu0 0.0
  %2907 = vmatpush2.msra.mxu0 0.0
  %2908 = vmatprep.subr.mxu0 0.0
  %2909 = vmatpush2.msra.mxu0 0.0
  %2910 = vmatprep.subr.mxu0 0.0
  %2911 = vmatpush2.msra.mxu0 0.0
  %2912 = vmatprep.mubr.f32.mxu0 0.0
  %2913 = vmatmul.mubr.f32.gmra.mxu0 %v2846
  %v2914 = vpop.f32.mrf.mxu0
  %v2915 = vadd.f32 0.0, %v2914
  %v2916 = vpop.f32.mrf.mxu0
  %2917 = vdwg.mxu0
  %2918 = vmatprep.subr.mxu0 0.0
  %2919 = vmatpush1.msra.mxu0 0.0
  %2920 = vmatprep.subr.mxu0 0.0
  %2921 = vmatpush1.msra.mxu0 0.0
  %2922 = vmatprep.subr.mxu0 0.0
  %2923 = vmatpush1.msra.mxu0 0.0
  %2924 = vmatprep.subr.mxu0 0.0
  %2925 = vmatpush1.msra.mxu0 0.0
  %2926 = vmatprep.subr.mxu0 0.0
  %2927 = vmatpush1.msra.mxu0 0.0
  %2928 = vmatprep.subr.mxu0 0.0
  %2929 = vmatpush1.msra.mxu0 0.0
  %2930 = vmatprep.subr.mxu0 0.0
  %2931 = vmatpush1.msra.mxu0 0.0
  %2932 = vmatprep.subr.mxu0 0.0
  %2933 = vmatpush1.msra.mxu0 0.0
  %2934 = vmatprep.subr.mxu0 0.0
  %2935 = vmatpush1.msra.mxu0 0.0
  %2936 = vmatprep.subr.mxu0 0.0
  %2937 = vmatpush1.msra.mxu0 0.0
  %2938 = vmatprep.subr.mxu0 0.0
  %2939 = vmatpush1.msra.mxu0 0.0
  %2940 = vmatprep.subr.mxu0 0.0
  %2941 = vmatpush1.msra.mxu0 0.0
  %2942 = vmatprep.subr.mxu0 0.0
  %2943 = vmatpush1.msra.mxu0 %v1146
  %2944 = vmatprep.subr.mxu0 0.0
  %2945 = vmatpush1.msra.mxu0 %v1145
  %2946 = vmatprep.subr.mxu0 0.0
  %2947 = vmatpush1.msra.mxu0 %v1144
  %2948 = vmatprep.subr.mxu0 0.0
  %2949 = vmatpush1.msra.mxu0 %v1143
  %2950 = vmatprep.subr.mxu0 0.0
  %2951 = vmatpush2.msra.mxu0 0.0
  %2952 = vmatprep.subr.mxu0 0.0
  %2953 = vmatpush2.msra.mxu0 0.0
  %2954 = vmatprep.subr.mxu0 0.0
  %2955 = vmatpush2.msra.mxu0 0.0
  %2956 = vmatprep.subr.mxu0 0.0
  %2957 = vmatpush2.msra.mxu0 0.0
  %2958 = vmatprep.subr.mxu0 0.0
  %2959 = vmatpush2.msra.mxu0 0.0
  %2960 = vmatprep.subr.mxu0 0.0
  %2961 = vmatpush2.msra.mxu0 0.0
  %2962 = vmatprep.subr.mxu0 0.0
  %2963 = vmatpush2.msra.mxu0 0.0
  %2964 = vmatprep.subr.mxu0 0.0
  %2965 = vmatpush2.msra.mxu0 0.0
  %2966 = vmatprep.subr.mxu0 0.0
  %2967 = vmatpush2.msra.mxu0 0.0
  %2968 = vmatprep.subr.mxu0 0.0
  %2969 = vmatpush2.msra.mxu0 0.0
  %2970 = vmatprep.subr.mxu0 0.0
  %2971 = vmatpush2.msra.mxu0 0.0
  %2972 = vmatprep.subr.mxu0 0.0
  %2973 = vmatpush2.msra.mxu0 0.0
  %2974 = vmatprep.subr.mxu0 0.0
  %2975 = vmatpush2.msra.mxu0 0.0
  %2976 = vmatprep.subr.mxu0 0.0
  %2977 = vmatpush2.msra.mxu0 0.0
  %2978 = vmatprep.subr.mxu0 0.0
  %2979 = vmatpush2.msra.mxu0 0.0
  %2980 = vmatprep.subr.mxu0 0.0
  %2981 = vmatpush2.msra.mxu0 0.0
  %2982 = vmatprep.mubr.f32.mxu0 0.0
  %2983 = vmatmul.mubr.f32.gmra.mxu0 %v2846
  %v2984 = vpop.f32.mrf.mxu0
  %v2985 = vadd.f32 0.0, %v2984
  %v2986 = vpop.f32.mrf.mxu0
  %2987 = vdwg.mxu0
  %2988 = vmatprep.subr.mxu0 0.0
  %2989 = vmatpush1.msra.mxu0 0.0
  %2990 = vmatprep.subr.mxu0 0.0
  %2991 = vmatpush1.msra.mxu0 0.0
  %2992 = vmatprep.subr.mxu0 0.0
  %2993 = vmatpush1.msra.mxu0 0.0
  %2994 = vmatprep.subr.mxu0 0.0
  %2995 = vmatpush1.msra.mxu0 0.0
  %2996 = vmatprep.subr.mxu0 0.0
  %2997 = vmatpush1.msra.mxu0 0.0
  %2998 = vmatprep.subr.mxu0 0.0
  %2999 = vmatpush1.msra.mxu0 0.0
  %3000 = vmatprep.subr.mxu0 0.0
  %3001 = vmatpush1.msra.mxu0 0.0
  %3002 = vmatprep.subr.mxu0 0.0
  %3003 = vmatpush1.msra.mxu0 0.0
  %3004 = vmatprep.subr.mxu0 0.0
  %3005 = vmatpush1.msra.mxu0 0.0
  %3006 = vmatprep.subr.mxu0 0.0
  %3007 = vmatpush1.msra.mxu0 0.0
  %3008 = vmatprep.subr.mxu0 0.0
  %3009 = vmatpush1.msra.mxu0 0.0
  %3010 = vmatprep.subr.mxu0 0.0
  %3011 = vmatpush1.msra.mxu0 0.0
  %3012 = vmatprep.subr.mxu0 0.0
  %3013 = vmatpush1.msra.mxu0 %v1150
  %3014 = vmatprep.subr.mxu0 0.0
  %3015 = vmatpush1.msra.mxu0 %v1149
  %3016 = vmatprep.subr.mxu0 0.0
  %3017 = vmatpush1.msra.mxu0 %v1148
  %3018 = vmatprep.subr.mxu0 0.0
  %3019 = vmatpush1.msra.mxu0 %v1147
  %3020 = vmatprep.subr.mxu0 0.0
  %3021 = vmatpush2.msra.mxu0 0.0
  %3022 = vmatprep.subr.mxu0 0.0
  %3023 = vmatpush2.msra.mxu0 0.0
  %3024 = vmatprep.subr.mxu0 0.0
  %3025 = vmatpush2.msra.mxu0 0.0
  %3026 = vmatprep.subr.mxu0 0.0
  %3027 = vmatpush2.msra.mxu0 0.0
  %3028 = vmatprep.subr.mxu0 0.0
  %3029 = vmatpush2.msra.mxu0 0.0
  %3030 = vmatprep.subr.mxu0 0.0
  %3031 = vmatpush2.msra.mxu0 0.0
  %3032 = vmatprep.subr.mxu0 0.0
  %3033 = vmatpush2.msra.mxu0 0.0
  %3034 = vmatprep.subr.mxu0 0.0
  %3035 = vmatpush2.msra.mxu0 0.0
  %3036 = vmatprep.subr.mxu0 0.0
  %3037 = vmatpush2.msra.mxu0 0.0
  %3038 = vmatprep.subr.mxu0 0.0
  %3039 = vmatpush2.msra.mxu0 0.0
  %3040 = vmatprep.subr.mxu0 0.0
  %3041 = vmatpush2.msra.mxu0 0.0
  %3042 = vmatprep.subr.mxu0 0.0
  %3043 = vmatpush2.msra.mxu0 0.0
  %3044 = vmatprep.subr.mxu0 0.0
  %3045 = vmatpush2.msra.mxu0 0.0
  %3046 = vmatprep.subr.mxu0 0.0
  %3047 = vmatpush2.msra.mxu0 0.0
  %3048 = vmatprep.subr.mxu0 0.0
  %3049 = vmatpush2.msra.mxu0 0.0
  %3050 = vmatprep.subr.mxu0 0.0
  %3051 = vmatpush2.msra.mxu0 0.0
  %3052 = vmatprep.mubr.f32.mxu0 0.0
  %3053 = vmatmul.mubr.f32.gmra.mxu0 %v2846
  %v3054 = vpop.f32.mrf.mxu0
  %v3055 = vadd.f32 %v1299, %v3054
  %v3056 = vpop.f32.mrf.mxu0
  %3057 = vdwg.mxu0
  %v3058 = vadd.f32 %v521, %v2915
  %v3059 = vxor.u32 %v3058, 2147483648
  %v3060 = vmul.f32 %v3059, 1.442695
  %v3061 = vpow.pop %v3060
  %v3062 = vadd.f32 %v3061, 1.0
  %v3063 = vrcp.pop %v3062
  %v3064 = vmul.f32 1.0, %v3063
  %v3065 = vadd.f32 %v677, %v2985
  %v3066 = vxor.u32 %v3065, 2147483648
  %v3067 = vmul.f32 %v3066, 1.442695
  %v3068 = vpow.pop %v3067
  %v3069 = vadd.f32 %v3068, 1.0
  %v3070 = vrcp.pop %v3069
  %v3071 = vmul.f32 1.0, %v3070
  %v3072 = vmul.f32 %v3064, %v3055
  %v3073 = vadd.f32 %v833, %v3072
  %v3074 = vtanh.pop %v3073
  %v3075 = vsub.f32 1.0, %v3071
  %v3076 = vmul.f32 %v3075, %v3074
  %v3077 = vmul.f32 %v3071, %v2844
  %v3078 = vadd.f32 %v3076, %v3077
  %vm3079 = vcmp.gt.s32.totalorder %v1138, 8
  %v3080 = vsel %vm3079, 1, 0
  %3081 = vset.pattern.permute.xlu0 0
  %3082 = vperm.xlu0 %3081, %v3080
  %v3083 = vpop.permute.xlu0 %3082
  %vm3084 = vcmp.eq.s32.totalorder %v3083, 1
  %v3085 = vsel %vm3084, %v3078, %v2844
  %v3087 = vsel %vm365, %v3085, 0
  %3089 = vmatprep.subr.mxu0 0.0
  %3090 = vmatpush1.msra.mxu0 0.0
  %3091 = vmatprep.subr.mxu0 0.0
  %3092 = vmatpush1.msra.mxu0 0.0
  %3093 = vmatprep.subr.mxu0 0.0
  %3094 = vmatpush1.msra.mxu0 0.0
  %3095 = vmatprep.subr.mxu0 0.0
  %3096 = vmatpush1.msra.mxu0 0.0
  %3097 = vmatprep.subr.mxu0 0.0
  %3098 = vmatpush1.msra.mxu0 0.0
  %3099 = vmatprep.subr.mxu0 0.0
  %3100 = vmatpush1.msra.mxu0 0.0
  %3101 = vmatprep.subr.mxu0 0.0
  %3102 = vmatpush1.msra.mxu0 0.0
  %3103 = vmatprep.subr.mxu0 0.0
  %3104 = vmatpush1.msra.mxu0 0.0
  %3105 = vmatprep.subr.mxu0 0.0
  %3106 = vmatpush1.msra.mxu0 0.0
  %3107 = vmatprep.subr.mxu0 0.0
  %3108 = vmatpush1.msra.mxu0 0.0
  %3109 = vmatprep.subr.mxu0 0.0
  %3110 = vmatpush1.msra.mxu0 0.0
  %3111 = vmatprep.subr.mxu0 0.0
  %3112 = vmatpush1.msra.mxu0 0.0
  %3113 = vmatprep.subr.mxu0 0.0
  %3114 = vmatpush1.msra.mxu0 %v1142
  %3115 = vmatprep.subr.mxu0 0.0
  %3116 = vmatpush1.msra.mxu0 %v1141
  %3117 = vmatprep.subr.mxu0 0.0
  %3118 = vmatpush1.msra.mxu0 %v1140
  %3119 = vmatprep.subr.mxu0 0.0
  %3120 = vmatpush1.msra.mxu0 %v1139
  %3121 = vmatprep.subr.mxu0 0.0
  %3122 = vmatpush2.msra.mxu0 0.0
  %3123 = vmatprep.subr.mxu0 0.0
  %3124 = vmatpush2.msra.mxu0 0.0
  %3125 = vmatprep.subr.mxu0 0.0
  %3126 = vmatpush2.msra.mxu0 0.0
  %3127 = vmatprep.subr.mxu0 0.0
  %3128 = vmatpush2.msra.mxu0 0.0
  %3129 = vmatprep.subr.mxu0 0.0
  %3130 = vmatpush2.msra.mxu0 0.0
  %3131 = vmatprep.subr.mxu0 0.0
  %3132 = vmatpush2.msra.mxu0 0.0
  %3133 = vmatprep.subr.mxu0 0.0
  %3134 = vmatpush2.msra.mxu0 0.0
  %3135 = vmatprep.subr.mxu0 0.0
  %3136 = vmatpush2.msra.mxu0 0.0
  %3137 = vmatprep.subr.mxu0 0.0
  %3138 = vmatpush2.msra.mxu0 0.0
  %3139 = vmatprep.subr.mxu0 0.0
  %3140 = vmatpush2.msra.mxu0 0.0
  %3141 = vmatprep.subr.mxu0 0.0
  %3142 = vmatpush2.msra.mxu0 0.0
  %3143 = vmatprep.subr.mxu0 0.0
  %3144 = vmatpush2.msra.mxu0 0.0
  %3145 = vmatprep.subr.mxu0 0.0
  %3146 = vmatpush2.msra.mxu0 0.0
  %3147 = vmatprep.subr.mxu0 0.0
  %3148 = vmatpush2.msra.mxu0 0.0
  %3149 = vmatprep.subr.mxu0 0.0
  %3150 = vmatpush2.msra.mxu0 0.0
  %3151 = vmatprep.subr.mxu0 0.0
  %3152 = vmatpush2.msra.mxu0 0.0
  %3153 = vmatprep.mubr.f32.mxu0 0.0
  %3154 = vmatmul.mubr.f32.gmra.mxu0 %v3087
  %v3155 = vpop.f32.mrf.mxu0
  %v3156 = vadd.f32 0.0, %v3155
  %v3157 = vpop.f32.mrf.mxu0
  %3158 = vdwg.mxu0
  %3159 = vmatprep.subr.mxu0 0.0
  %3160 = vmatpush1.msra.mxu0 0.0
  %3161 = vmatprep.subr.mxu0 0.0
  %3162 = vmatpush1.msra.mxu0 0.0
  %3163 = vmatprep.subr.mxu0 0.0
  %3164 = vmatpush1.msra.mxu0 0.0
  %3165 = vmatprep.subr.mxu0 0.0
  %3166 = vmatpush1.msra.mxu0 0.0
  %3167 = vmatprep.subr.mxu0 0.0
  %3168 = vmatpush1.msra.mxu0 0.0
  %3169 = vmatprep.subr.mxu0 0.0
  %3170 = vmatpush1.msra.mxu0 0.0
  %3171 = vmatprep.subr.mxu0 0.0
  %3172 = vmatpush1.msra.mxu0 0.0
  %3173 = vmatprep.subr.mxu0 0.0
  %3174 = vmatpush1.msra.mxu0 0.0
  %3175 = vmatprep.subr.mxu0 0.0
  %3176 = vmatpush1.msra.mxu0 0.0
  %3177 = vmatprep.subr.mxu0 0.0
  %3178 = vmatpush1.msra.mxu0 0.0
  %3179 = vmatprep.subr.mxu0 0.0
  %3180 = vmatpush1.msra.mxu0 0.0
  %3181 = vmatprep.subr.mxu0 0.0
  %3182 = vmatpush1.msra.mxu0 0.0
  %3183 = vmatprep.subr.mxu0 0.0
  %3184 = vmatpush1.msra.mxu0 %v1146
  %3185 = vmatprep.subr.mxu0 0.0
  %3186 = vmatpush1.msra.mxu0 %v1145
  %3187 = vmatprep.subr.mxu0 0.0
  %3188 = vmatpush1.msra.mxu0 %v1144
  %3189 = vmatprep.subr.mxu0 0.0
  %3190 = vmatpush1.msra.mxu0 %v1143
  %3191 = vmatprep.subr.mxu0 0.0
  %3192 = vmatpush2.msra.mxu0 0.0
  %3193 = vmatprep.subr.mxu0 0.0
  %3194 = vmatpush2.msra.mxu0 0.0
  %3195 = vmatprep.subr.mxu0 0.0
  %3196 = vmatpush2.msra.mxu0 0.0
  %3197 = vmatprep.subr.mxu0 0.0
  %3198 = vmatpush2.msra.mxu0 0.0
  %3199 = vmatprep.subr.mxu0 0.0
  %3200 = vmatpush2.msra.mxu0 0.0
  %3201 = vmatprep.subr.mxu0 0.0
  %3202 = vmatpush2.msra.mxu0 0.0
  %3203 = vmatprep.subr.mxu0 0.0
  %3204 = vmatpush2.msra.mxu0 0.0
  %3205 = vmatprep.subr.mxu0 0.0
  %3206 = vmatpush2.msra.mxu0 0.0
  %3207 = vmatprep.subr.mxu0 0.0
  %3208 = vmatpush2.msra.mxu0 0.0
  %3209 = vmatprep.subr.mxu0 0.0
  %3210 = vmatpush2.msra.mxu0 0.0
  %3211 = vmatprep.subr.mxu0 0.0
  %3212 = vmatpush2.msra.mxu0 0.0
  %3213 = vmatprep.subr.mxu0 0.0
  %3214 = vmatpush2.msra.mxu0 0.0
  %3215 = vmatprep.subr.mxu0 0.0
  %3216 = vmatpush2.msra.mxu0 0.0
  %3217 = vmatprep.subr.mxu0 0.0
  %3218 = vmatpush2.msra.mxu0 0.0
  %3219 = vmatprep.subr.mxu0 0.0
  %3220 = vmatpush2.msra.mxu0 0.0
  %3221 = vmatprep.subr.mxu0 0.0
  %3222 = vmatpush2.msra.mxu0 0.0
  %3223 = vmatprep.mubr.f32.mxu0 0.0
  %3224 = vmatmul.mubr.f32.gmra.mxu0 %v3087
  %v3225 = vpop.f32.mrf.mxu0
  %v3226 = vadd.f32 0.0, %v3225
  %v3227 = vpop.f32.mrf.mxu0
  %3228 = vdwg.mxu0
  %3229 = vmatprep.subr.mxu0 0.0
  %3230 = vmatpush1.msra.mxu0 0.0
  %3231 = vmatprep.subr.mxu0 0.0
  %3232 = vmatpush1.msra.mxu0 0.0
  %3233 = vmatprep.subr.mxu0 0.0
  %3234 = vmatpush1.msra.mxu0 0.0
  %3235 = vmatprep.subr.mxu0 0.0
  %3236 = vmatpush1.msra.mxu0 0.0
  %3237 = vmatprep.subr.mxu0 0.0
  %3238 = vmatpush1.msra.mxu0 0.0
  %3239 = vmatprep.subr.mxu0 0.0
  %3240 = vmatpush1.msra.mxu0 0.0
  %3241 = vmatprep.subr.mxu0 0.0
  %3242 = vmatpush1.msra.mxu0 0.0
  %3243 = vmatprep.subr.mxu0 0.0
  %3244 = vmatpush1.msra.mxu0 0.0
  %3245 = vmatprep.subr.mxu0 0.0
  %3246 = vmatpush1.msra.mxu0 0.0
  %3247 = vmatprep.subr.mxu0 0.0
  %3248 = vmatpush1.msra.mxu0 0.0
  %3249 = vmatprep.subr.mxu0 0.0
  %3250 = vmatpush1.msra.mxu0 0.0
  %3251 = vmatprep.subr.mxu0 0.0
  %3252 = vmatpush1.msra.mxu0 0.0
  %3253 = vmatprep.subr.mxu0 0.0
  %3254 = vmatpush1.msra.mxu0 %v1150
  %3255 = vmatprep.subr.mxu0 0.0
  %3256 = vmatpush1.msra.mxu0 %v1149
  %3257 = vmatprep.subr.mxu0 0.0
  %3258 = vmatpush1.msra.mxu0 %v1148
  %3259 = vmatprep.subr.mxu0 0.0
  %3260 = vmatpush1.msra.mxu0 %v1147
  %3261 = vmatprep.subr.mxu0 0.0
  %3262 = vmatpush2.msra.mxu0 0.0
  %3263 = vmatprep.subr.mxu0 0.0
  %3264 = vmatpush2.msra.mxu0 0.0
  %3265 = vmatprep.subr.mxu0 0.0
  %3266 = vmatpush2.msra.mxu0 0.0
  %3267 = vmatprep.subr.mxu0 0.0
  %3268 = vmatpush2.msra.mxu0 0.0
  %3269 = vmatprep.subr.mxu0 0.0
  %3270 = vmatpush2.msra.mxu0 0.0
  %3271 = vmatprep.subr.mxu0 0.0
  %3272 = vmatpush2.msra.mxu0 0.0
  %3273 = vmatprep.subr.mxu0 0.0
  %3274 = vmatpush2.msra.mxu0 0.0
  %3275 = vmatprep.subr.mxu0 0.0
  %3276 = vmatpush2.msra.mxu0 0.0
  %3277 = vmatprep.subr.mxu0 0.0
  %3278 = vmatpush2.msra.mxu0 0.0
  %3279 = vmatprep.subr.mxu0 0.0
  %3280 = vmatpush2.msra.mxu0 0.0
  %3281 = vmatprep.subr.mxu0 0.0
  %3282 = vmatpush2.msra.mxu0 0.0
  %3283 = vmatprep.subr.mxu0 0.0
  %3284 = vmatpush2.msra.mxu0 0.0
  %3285 = vmatprep.subr.mxu0 0.0
  %3286 = vmatpush2.msra.mxu0 0.0
  %3287 = vmatprep.subr.mxu0 0.0
  %3288 = vmatpush2.msra.mxu0 0.0
  %3289 = vmatprep.subr.mxu0 0.0
  %3290 = vmatpush2.msra.mxu0 0.0
  %3291 = vmatprep.subr.mxu0 0.0
  %3292 = vmatpush2.msra.mxu0 0.0
  %3293 = vmatprep.mubr.f32.mxu0 0.0
  %3294 = vmatmul.mubr.f32.gmra.mxu0 %v3087
  %v3295 = vpop.f32.mrf.mxu0
  %v3296 = vadd.f32 %v1299, %v3295
  %v3297 = vpop.f32.mrf.mxu0
  %3298 = vdwg.mxu0
  %v3299 = vadd.f32 %v516, %v3156
  %v3300 = vxor.u32 %v3299, 2147483648
  %v3301 = vmul.f32 %v3300, 1.442695
  %v3302 = vpow.pop %v3301
  %v3303 = vadd.f32 %v3302, 1.0
  %v3304 = vrcp.pop %v3303
  %v3305 = vmul.f32 1.0, %v3304
  %v3306 = vadd.f32 %v672, %v3226
  %v3307 = vxor.u32 %v3306, 2147483648
  %v3308 = vmul.f32 %v3307, 1.442695
  %v3309 = vpow.pop %v3308
  %v3310 = vadd.f32 %v3309, 1.0
  %v3311 = vrcp.pop %v3310
  %v3312 = vmul.f32 1.0, %v3311
  %v3313 = vmul.f32 %v3305, %v3296
  %v3314 = vadd.f32 %v828, %v3313
  %v3315 = vtanh.pop %v3314
  %v3316 = vsub.f32 1.0, %v3312
  %v3317 = vmul.f32 %v3316, %v3315
  %v3318 = vmul.f32 %v3312, %v3085
  %v3319 = vadd.f32 %v3317, %v3318
  %vm3320 = vcmp.gt.s32.totalorder %v1138, 7
  %v3321 = vsel %vm3320, 1, 0
  %3322 = vset.pattern.permute.xlu0 0
  %3323 = vperm.xlu0 %3322, %v3321
  %v3324 = vpop.permute.xlu0 %3323
  %vm3325 = vcmp.eq.s32.totalorder %v3324, 1
  %v3326 = vsel %vm3325, %v3319, %v3085
  %v3328 = vsel %vm365, %v3326, 0
  %3330 = vmatprep.subr.mxu0 0.0
  %3331 = vmatpush1.msra.mxu0 0.0
  %3332 = vmatprep.subr.mxu0 0.0
  %3333 = vmatpush1.msra.mxu0 0.0
  %3334 = vmatprep.subr.mxu0 0.0
  %3335 = vmatpush1.msra.mxu0 0.0
  %3336 = vmatprep.subr.mxu0 0.0
  %3337 = vmatpush1.msra.mxu0 0.0
  %3338 = vmatprep.subr.mxu0 0.0
  %3339 = vmatpush1.msra.mxu0 0.0
  %3340 = vmatprep.subr.mxu0 0.0
  %3341 = vmatpush1.msra.mxu0 0.0
  %3342 = vmatprep.subr.mxu0 0.0
  %3343 = vmatpush1.msra.mxu0 0.0
  %3344 = vmatprep.subr.mxu0 0.0
  %3345 = vmatpush1.msra.mxu0 0.0
  %3346 = vmatprep.subr.mxu0 0.0
  %3347 = vmatpush1.msra.mxu0 0.0
  %3348 = vmatprep.subr.mxu0 0.0
  %3349 = vmatpush1.msra.mxu0 0.0
  %3350 = vmatprep.subr.mxu0 0.0
  %3351 = vmatpush1.msra.mxu0 0.0
  %3352 = vmatprep.subr.mxu0 0.0
  %3353 = vmatpush1.msra.mxu0 0.0
  %3354 = vmatprep.subr.mxu0 0.0
  %3355 = vmatpush1.msra.mxu0 %v1142
  %3356 = vmatprep.subr.mxu0 0.0
  %3357 = vmatpush1.msra.mxu0 %v1141
  %3358 = vmatprep.subr.mxu0 0.0
  %3359 = vmatpush1.msra.mxu0 %v1140
  %3360 = vmatprep.subr.mxu0 0.0
  %3361 = vmatpush1.msra.mxu0 %v1139
  %3362 = vmatprep.subr.mxu0 0.0
  %3363 = vmatpush2.msra.mxu0 0.0
  %3364 = vmatprep.subr.mxu0 0.0
  %3365 = vmatpush2.msra.mxu0 0.0
  %3366 = vmatprep.subr.mxu0 0.0
  %3367 = vmatpush2.msra.mxu0 0.0
  %3368 = vmatprep.subr.mxu0 0.0
  %3369 = vmatpush2.msra.mxu0 0.0
  %3370 = vmatprep.subr.mxu0 0.0
  %3371 = vmatpush2.msra.mxu0 0.0
  %3372 = vmatprep.subr.mxu0 0.0
  %3373 = vmatpush2.msra.mxu0 0.0
  %3374 = vmatprep.subr.mxu0 0.0
  %3375 = vmatpush2.msra.mxu0 0.0
  %3376 = vmatprep.subr.mxu0 0.0
  %3377 = vmatpush2.msra.mxu0 0.0
  %3378 = vmatprep.subr.mxu0 0.0
  %3379 = vmatpush2.msra.mxu0 0.0
  %3380 = vmatprep.subr.mxu0 0.0
  %3381 = vmatpush2.msra.mxu0 0.0
  %3382 = vmatprep.subr.mxu0 0.0
  %3383 = vmatpush2.msra.mxu0 0.0
  %3384 = vmatprep.subr.mxu0 0.0
  %3385 = vmatpush2.msra.mxu0 0.0
  %3386 = vmatprep.subr.mxu0 0.0
  %3387 = vmatpush2.msra.mxu0 0.0
  %3388 = vmatprep.subr.mxu0 0.0
  %3389 = vmatpush2.msra.mxu0 0.0
  %3390 = vmatprep.subr.mxu0 0.0
  %3391 = vmatpush2.msra.mxu0 0.0
  %3392 = vmatprep.subr.mxu0 0.0
  %3393 = vmatpush2.msra.mxu0 0.0
  %3394 = vmatprep.mubr.f32.mxu0 0.0
  %3395 = vmatmul.mubr.f32.gmra.mxu0 %v3328
  %v3396 = vpop.f32.mrf.mxu0
  %v3397 = vadd.f32 0.0, %v3396
  %v3398 = vpop.f32.mrf.mxu0
  %3399 = vdwg.mxu0
  %3400 = vmatprep.subr.mxu0 0.0
  %3401 = vmatpush1.msra.mxu0 0.0
  %3402 = vmatprep.subr.mxu0 0.0
  %3403 = vmatpush1.msra.mxu0 0.0
  %3404 = vmatprep.subr.mxu0 0.0
  %3405 = vmatpush1.msra.mxu0 0.0
  %3406 = vmatprep.subr.mxu0 0.0
  %3407 = vmatpush1.msra.mxu0 0.0
  %3408 = vmatprep.subr.mxu0 0.0
  %3409 = vmatpush1.msra.mxu0 0.0
  %3410 = vmatprep.subr.mxu0 0.0
  %3411 = vmatpush1.msra.mxu0 0.0
  %3412 = vmatprep.subr.mxu0 0.0
  %3413 = vmatpush1.msra.mxu0 0.0
  %3414 = vmatprep.subr.mxu0 0.0
  %3415 = vmatpush1.msra.mxu0 0.0
  %3416 = vmatprep.subr.mxu0 0.0
  %3417 = vmatpush1.msra.mxu0 0.0
  %3418 = vmatprep.subr.mxu0 0.0
  %3419 = vmatpush1.msra.mxu0 0.0
  %3420 = vmatprep.subr.mxu0 0.0
  %3421 = vmatpush1.msra.mxu0 0.0
  %3422 = vmatprep.subr.mxu0 0.0
  %3423 = vmatpush1.msra.mxu0 0.0
  %3424 = vmatprep.subr.mxu0 0.0
  %3425 = vmatpush1.msra.mxu0 %v1146
  %3426 = vmatprep.subr.mxu0 0.0
  %3427 = vmatpush1.msra.mxu0 %v1145
  %3428 = vmatprep.subr.mxu0 0.0
  %3429 = vmatpush1.msra.mxu0 %v1144
  %3430 = vmatprep.subr.mxu0 0.0
  %3431 = vmatpush1.msra.mxu0 %v1143
  %3432 = vmatprep.subr.mxu0 0.0
  %3433 = vmatpush2.msra.mxu0 0.0
  %3434 = vmatprep.subr.mxu0 0.0
  %3435 = vmatpush2.msra.mxu0 0.0
  %3436 = vmatprep.subr.mxu0 0.0
  %3437 = vmatpush2.msra.mxu0 0.0
  %3438 = vmatprep.subr.mxu0 0.0
  %3439 = vmatpush2.msra.mxu0 0.0
  %3440 = vmatprep.subr.mxu0 0.0
  %3441 = vmatpush2.msra.mxu0 0.0
  %3442 = vmatprep.subr.mxu0 0.0
  %3443 = vmatpush2.msra.mxu0 0.0
  %3444 = vmatprep.subr.mxu0 0.0
  %3445 = vmatpush2.msra.mxu0 0.0
  %3446 = vmatprep.subr.mxu0 0.0
  %3447 = vmatpush2.msra.mxu0 0.0
  %3448 = vmatprep.subr.mxu0 0.0
  %3449 = vmatpush2.msra.mxu0 0.0
  %3450 = vmatprep.subr.mxu0 0.0
  %3451 = vmatpush2.msra.mxu0 0.0
  %3452 = vmatprep.subr.mxu0 0.0
  %3453 = vmatpush2.msra.mxu0 0.0
  %3454 = vmatprep.subr.mxu0 0.0
  %3455 = vmatpush2.msra.mxu0 0.0
  %3456 = vmatprep.subr.mxu0 0.0
  %3457 = vmatpush2.msra.mxu0 0.0
  %3458 = vmatprep.subr.mxu0 0.0
  %3459 = vmatpush2.msra.mxu0 0.0
  %3460 = vmatprep.subr.mxu0 0.0
  %3461 = vmatpush2.msra.mxu0 0.0
  %3462 = vmatprep.subr.mxu0 0.0
  %3463 = vmatpush2.msra.mxu0 0.0
  %3464 = vmatprep.mubr.f32.mxu0 0.0
  %3465 = vmatmul.mubr.f32.gmra.mxu0 %v3328
  %v3466 = vpop.f32.mrf.mxu0
  %v3467 = vadd.f32 0.0, %v3466
  %v3468 = vpop.f32.mrf.mxu0
  %3469 = vdwg.mxu0
  %3470 = vmatprep.subr.mxu0 0.0
  %3471 = vmatpush1.msra.mxu0 0.0
  %3472 = vmatprep.subr.mxu0 0.0
  %3473 = vmatpush1.msra.mxu0 0.0
  %3474 = vmatprep.subr.mxu0 0.0
  %3475 = vmatpush1.msra.mxu0 0.0
  %3476 = vmatprep.subr.mxu0 0.0
  %3477 = vmatpush1.msra.mxu0 0.0
  %3478 = vmatprep.subr.mxu0 0.0
  %3479 = vmatpush1.msra.mxu0 0.0
  %3480 = vmatprep.subr.mxu0 0.0
  %3481 = vmatpush1.msra.mxu0 0.0
  %3482 = vmatprep.subr.mxu0 0.0
  %3483 = vmatpush1.msra.mxu0 0.0
  %3484 = vmatprep.subr.mxu0 0.0
  %3485 = vmatpush1.msra.mxu0 0.0
  %3486 = vmatprep.subr.mxu0 0.0
  %3487 = vmatpush1.msra.mxu0 0.0
  %3488 = vmatprep.subr.mxu0 0.0
  %3489 = vmatpush1.msra.mxu0 0.0
  %3490 = vmatprep.subr.mxu0 0.0
  %3491 = vmatpush1.msra.mxu0 0.0
  %3492 = vmatprep.subr.mxu0 0.0
  %3493 = vmatpush1.msra.mxu0 0.0
  %3494 = vmatprep.subr.mxu0 0.0
  %3495 = vmatpush1.msra.mxu0 %v1150
  %3496 = vmatprep.subr.mxu0 0.0
  %3497 = vmatpush1.msra.mxu0 %v1149
  %3498 = vmatprep.subr.mxu0 0.0
  %3499 = vmatpush1.msra.mxu0 %v1148
  %3500 = vmatprep.subr.mxu0 0.0
  %3501 = vmatpush1.msra.mxu0 %v1147
  %3502 = vmatprep.subr.mxu0 0.0
  %3503 = vmatpush2.msra.mxu0 0.0
  %3504 = vmatprep.subr.mxu0 0.0
  %3505 = vmatpush2.msra.mxu0 0.0
  %3506 = vmatprep.subr.mxu0 0.0
  %3507 = vmatpush2.msra.mxu0 0.0
  %3508 = vmatprep.subr.mxu0 0.0
  %3509 = vmatpush2.msra.mxu0 0.0
  %3510 = vmatprep.subr.mxu0 0.0
  %3511 = vmatpush2.msra.mxu0 0.0
  %3512 = vmatprep.subr.mxu0 0.0
  %3513 = vmatpush2.msra.mxu0 0.0
  %3514 = vmatprep.subr.mxu0 0.0
  %3515 = vmatpush2.msra.mxu0 0.0
  %3516 = vmatprep.subr.mxu0 0.0
  %3517 = vmatpush2.msra.mxu0 0.0
  %3518 = vmatprep.subr.mxu0 0.0
  %3519 = vmatpush2.msra.mxu0 0.0
  %3520 = vmatprep.subr.mxu0 0.0
  %3521 = vmatpush2.msra.mxu0 0.0
  %3522 = vmatprep.subr.mxu0 0.0
  %3523 = vmatpush2.msra.mxu0 0.0
  %3524 = vmatprep.subr.mxu0 0.0
  %3525 = vmatpush2.msra.mxu0 0.0
  %3526 = vmatprep.subr.mxu0 0.0
  %3527 = vmatpush2.msra.mxu0 0.0
  %3528 = vmatprep.subr.mxu0 0.0
  %3529 = vmatpush2.msra.mxu0 0.0
  %3530 = vmatprep.subr.mxu0 0.0
  %3531 = vmatpush2.msra.mxu0 0.0
  %3532 = vmatprep.subr.mxu0 0.0
  %3533 = vmatpush2.msra.mxu0 0.0
  %3534 = vmatprep.mubr.f32.mxu0 0.0
  %3535 = vmatmul.mubr.f32.gmra.mxu0 %v3328
  %v3536 = vpop.f32.mrf.mxu0
  %v3537 = vadd.f32 %v1299, %v3536
  %v3538 = vpop.f32.mrf.mxu0
  %3539 = vdwg.mxu0
  %v3540 = vadd.f32 %v511, %v3397
  %v3541 = vxor.u32 %v3540, 2147483648
  %v3542 = vmul.f32 %v3541, 1.442695
  %v3543 = vpow.pop %v3542
  %v3544 = vadd.f32 %v3543, 1.0
  %v3545 = vrcp.pop %v3544
  %v3546 = vmul.f32 1.0, %v3545
  %v3547 = vadd.f32 %v667, %v3467
  %v3548 = vxor.u32 %v3547, 2147483648
  %v3549 = vmul.f32 %v3548, 1.442695
  %v3550 = vpow.pop %v3549
  %v3551 = vadd.f32 %v3550, 1.0
  %v3552 = vrcp.pop %v3551
  %v3553 = vmul.f32 1.0, %v3552
  %v3554 = vmul.f32 %v3546, %v3537
  %v3555 = vadd.f32 %v823, %v3554
  %v3556 = vtanh.pop %v3555
  %v3557 = vsub.f32 1.0, %v3553
  %v3558 = vmul.f32 %v3557, %v3556
  %v3559 = vmul.f32 %v3553, %v3326
  %v3560 = vadd.f32 %v3558, %v3559
  %vm3561 = vcmp.gt.s32.totalorder %v1138, 6
  %v3562 = vsel %vm3561, 1, 0
  %3563 = vset.pattern.permute.xlu0 0
  %3564 = vperm.xlu0 %3563, %v3562
  %v3565 = vpop.permute.xlu0 %3564
  %vm3566 = vcmp.eq.s32.totalorder %v3565, 1
  %v3567 = vsel %vm3566, %v3560, %v3326
  %v3569 = vsel %vm365, %v3567, 0
  %3571 = vmatprep.subr.mxu0 0.0
  %3572 = vmatpush1.msra.mxu0 0.0
  %3573 = vmatprep.subr.mxu0 0.0
  %3574 = vmatpush1.msra.mxu0 0.0
  %3575 = vmatprep.subr.mxu0 0.0
  %3576 = vmatpush1.msra.mxu0 0.0
  %3577 = vmatprep.subr.mxu0 0.0
  %3578 = vmatpush1.msra.mxu0 0.0
  %3579 = vmatprep.subr.mxu0 0.0
  %3580 = vmatpush1.msra.mxu0 0.0
  %3581 = vmatprep.subr.mxu0 0.0
  %3582 = vmatpush1.msra.mxu0 0.0
  %3583 = vmatprep.subr.mxu0 0.0
  %3584 = vmatpush1.msra.mxu0 0.0
  %3585 = vmatprep.subr.mxu0 0.0
  %3586 = vmatpush1.msra.mxu0 0.0
  %3587 = vmatprep.subr.mxu0 0.0
  %3588 = vmatpush1.msra.mxu0 0.0
  %3589 = vmatprep.subr.mxu0 0.0
  %3590 = vmatpush1.msra.mxu0 0.0
  %3591 = vmatprep.subr.mxu0 0.0
  %3592 = vmatpush1.msra.mxu0 0.0
  %3593 = vmatprep.subr.mxu0 0.0
  %3594 = vmatpush1.msra.mxu0 0.0
  %3595 = vmatprep.subr.mxu0 0.0
  %3596 = vmatpush1.msra.mxu0 %v1142
  %3597 = vmatprep.subr.mxu0 0.0
  %3598 = vmatpush1.msra.mxu0 %v1141
  %3599 = vmatprep.subr.mxu0 0.0
  %3600 = vmatpush1.msra.mxu0 %v1140
  %3601 = vmatprep.subr.mxu0 0.0
  %3602 = vmatpush1.msra.mxu0 %v1139
  %3603 = vmatprep.subr.mxu0 0.0
  %3604 = vmatpush2.msra.mxu0 0.0
  %3605 = vmatprep.subr.mxu0 0.0
  %3606 = vmatpush2.msra.mxu0 0.0
  %3607 = vmatprep.subr.mxu0 0.0
  %3608 = vmatpush2.msra.mxu0 0.0
  %3609 = vmatprep.subr.mxu0 0.0
  %3610 = vmatpush2.msra.mxu0 0.0
  %3611 = vmatprep.subr.mxu0 0.0
  %3612 = vmatpush2.msra.mxu0 0.0
  %3613 = vmatprep.subr.mxu0 0.0
  %3614 = vmatpush2.msra.mxu0 0.0
  %3615 = vmatprep.subr.mxu0 0.0
  %3616 = vmatpush2.msra.mxu0 0.0
  %3617 = vmatprep.subr.mxu0 0.0
  %3618 = vmatpush2.msra.mxu0 0.0
  %3619 = vmatprep.subr.mxu0 0.0
  %3620 = vmatpush2.msra.mxu0 0.0
  %3621 = vmatprep.subr.mxu0 0.0
  %3622 = vmatpush2.msra.mxu0 0.0
  %3623 = vmatprep.subr.mxu0 0.0
  %3624 = vmatpush2.msra.mxu0 0.0
  %3625 = vmatprep.subr.mxu0 0.0
  %3626 = vmatpush2.msra.mxu0 0.0
  %3627 = vmatprep.subr.mxu0 0.0
  %3628 = vmatpush2.msra.mxu0 0.0
  %3629 = vmatprep.subr.mxu0 0.0
  %3630 = vmatpush2.msra.mxu0 0.0
  %3631 = vmatprep.subr.mxu0 0.0
  %3632 = vmatpush2.msra.mxu0 0.0
  %3633 = vmatprep.subr.mxu0 0.0
  %3634 = vmatpush2.msra.mxu0 0.0
  %3635 = vmatprep.mubr.f32.mxu0 0.0
  %3636 = vmatmul.mubr.f32.gmra.mxu0 %v3569
  %v3637 = vpop.f32.mrf.mxu0
  %v3638 = vadd.f32 0.0, %v3637
  %v3639 = vpop.f32.mrf.mxu0
  %3640 = vdwg.mxu0
  %3641 = vmatprep.subr.mxu0 0.0
  %3642 = vmatpush1.msra.mxu0 0.0
  %3643 = vmatprep.subr.mxu0 0.0
  %3644 = vmatpush1.msra.mxu0 0.0
  %3645 = vmatprep.subr.mxu0 0.0
  %3646 = vmatpush1.msra.mxu0 0.0
  %3647 = vmatprep.subr.mxu0 0.0
  %3648 = vmatpush1.msra.mxu0 0.0
  %3649 = vmatprep.subr.mxu0 0.0
  %3650 = vmatpush1.msra.mxu0 0.0
  %3651 = vmatprep.subr.mxu0 0.0
  %3652 = vmatpush1.msra.mxu0 0.0
  %3653 = vmatprep.subr.mxu0 0.0
  %3654 = vmatpush1.msra.mxu0 0.0
  %3655 = vmatprep.subr.mxu0 0.0
  %3656 = vmatpush1.msra.mxu0 0.0
  %3657 = vmatprep.subr.mxu0 0.0
  %3658 = vmatpush1.msra.mxu0 0.0
  %3659 = vmatprep.subr.mxu0 0.0
  %3660 = vmatpush1.msra.mxu0 0.0
  %3661 = vmatprep.subr.mxu0 0.0
  %3662 = vmatpush1.msra.mxu0 0.0
  %3663 = vmatprep.subr.mxu0 0.0
  %3664 = vmatpush1.msra.mxu0 0.0
  %3665 = vmatprep.subr.mxu0 0.0
  %3666 = vmatpush1.msra.mxu0 %v1146
  %3667 = vmatprep.subr.mxu0 0.0
  %3668 = vmatpush1.msra.mxu0 %v1145
  %3669 = vmatprep.subr.mxu0 0.0
  %3670 = vmatpush1.msra.mxu0 %v1144
  %3671 = vmatprep.subr.mxu0 0.0
  %3672 = vmatpush1.msra.mxu0 %v1143
  %3673 = vmatprep.subr.mxu0 0.0
  %3674 = vmatpush2.msra.mxu0 0.0
  %3675 = vmatprep.subr.mxu0 0.0
  %3676 = vmatpush2.msra.mxu0 0.0
  %3677 = vmatprep.subr.mxu0 0.0
  %3678 = vmatpush2.msra.mxu0 0.0
  %3679 = vmatprep.subr.mxu0 0.0
  %3680 = vmatpush2.msra.mxu0 0.0
  %3681 = vmatprep.subr.mxu0 0.0
  %3682 = vmatpush2.msra.mxu0 0.0
  %3683 = vmatprep.subr.mxu0 0.0
  %3684 = vmatpush2.msra.mxu0 0.0
  %3685 = vmatprep.subr.mxu0 0.0
  %3686 = vmatpush2.msra.mxu0 0.0
  %3687 = vmatprep.subr.mxu0 0.0
  %3688 = vmatpush2.msra.mxu0 0.0
  %3689 = vmatprep.subr.mxu0 0.0
  %3690 = vmatpush2.msra.mxu0 0.0
  %3691 = vmatprep.subr.mxu0 0.0
  %3692 = vmatpush2.msra.mxu0 0.0
  %3693 = vmatprep.subr.mxu0 0.0
  %3694 = vmatpush2.msra.mxu0 0.0
  %3695 = vmatprep.subr.mxu0 0.0
  %3696 = vmatpush2.msra.mxu0 0.0
  %3697 = vmatprep.subr.mxu0 0.0
  %3698 = vmatpush2.msra.mxu0 0.0
  %3699 = vmatprep.subr.mxu0 0.0
  %3700 = vmatpush2.msra.mxu0 0.0
  %3701 = vmatprep.subr.mxu0 0.0
  %3702 = vmatpush2.msra.mxu0 0.0
  %3703 = vmatprep.subr.mxu0 0.0
  %3704 = vmatpush2.msra.mxu0 0.0
  %3705 = vmatprep.mubr.f32.mxu0 0.0
  %3706 = vmatmul.mubr.f32.gmra.mxu0 %v3569
  %v3707 = vpop.f32.mrf.mxu0
  %v3708 = vadd.f32 0.0, %v3707
  %v3709 = vpop.f32.mrf.mxu0
  %3710 = vdwg.mxu0
  %3711 = vmatprep.subr.mxu0 0.0
  %3712 = vmatpush1.msra.mxu0 0.0
  %3713 = vmatprep.subr.mxu0 0.0
  %3714 = vmatpush1.msra.mxu0 0.0
  %3715 = vmatprep.subr.mxu0 0.0
  %3716 = vmatpush1.msra.mxu0 0.0
  %3717 = vmatprep.subr.mxu0 0.0
  %3718 = vmatpush1.msra.mxu0 0.0
  %3719 = vmatprep.subr.mxu0 0.0
  %3720 = vmatpush1.msra.mxu0 0.0
  %3721 = vmatprep.subr.mxu0 0.0
  %3722 = vmatpush1.msra.mxu0 0.0
  %3723 = vmatprep.subr.mxu0 0.0
  %3724 = vmatpush1.msra.mxu0 0.0
  %3725 = vmatprep.subr.mxu0 0.0
  %3726 = vmatpush1.msra.mxu0 0.0
  %3727 = vmatprep.subr.mxu0 0.0
  %3728 = vmatpush1.msra.mxu0 0.0
  %3729 = vmatprep.subr.mxu0 0.0
  %3730 = vmatpush1.msra.mxu0 0.0
  %3731 = vmatprep.subr.mxu0 0.0
  %3732 = vmatpush1.msra.mxu0 0.0
  %3733 = vmatprep.subr.mxu0 0.0
  %3734 = vmatpush1.msra.mxu0 0.0
  %3735 = vmatprep.subr.mxu0 0.0
  %3736 = vmatpush1.msra.mxu0 %v1150
  %3737 = vmatprep.subr.mxu0 0.0
  %3738 = vmatpush1.msra.mxu0 %v1149
  %3739 = vmatprep.subr.mxu0 0.0
  %3740 = vmatpush1.msra.mxu0 %v1148
  %3741 = vmatprep.subr.mxu0 0.0
  %3742 = vmatpush1.msra.mxu0 %v1147
  %3743 = vmatprep.subr.mxu0 0.0
  %3744 = vmatpush2.msra.mxu0 0.0
  %3745 = vmatprep.subr.mxu0 0.0
  %3746 = vmatpush2.msra.mxu0 0.0
  %3747 = vmatprep.subr.mxu0 0.0
  %3748 = vmatpush2.msra.mxu0 0.0
  %3749 = vmatprep.subr.mxu0 0.0
  %3750 = vmatpush2.msra.mxu0 0.0
  %3751 = vmatprep.subr.mxu0 0.0
  %3752 = vmatpush2.msra.mxu0 0.0
  %3753 = vmatprep.subr.mxu0 0.0
  %3754 = vmatpush2.msra.mxu0 0.0
  %3755 = vmatprep.subr.mxu0 0.0
  %3756 = vmatpush2.msra.mxu0 0.0
  %3757 = vmatprep.subr.mxu0 0.0
  %3758 = vmatpush2.msra.mxu0 0.0
  %3759 = vmatprep.subr.mxu0 0.0
  %3760 = vmatpush2.msra.mxu0 0.0
  %3761 = vmatprep.subr.mxu0 0.0
  %3762 = vmatpush2.msra.mxu0 0.0
  %3763 = vmatprep.subr.mxu0 0.0
  %3764 = vmatpush2.msra.mxu0 0.0
  %3765 = vmatprep.subr.mxu0 0.0
  %3766 = vmatpush2.msra.mxu0 0.0
  %3767 = vmatprep.subr.mxu0 0.0
  %3768 = vmatpush2.msra.mxu0 0.0
  %3769 = vmatprep.subr.mxu0 0.0
  %3770 = vmatpush2.msra.mxu0 0.0
  %3771 = vmatprep.subr.mxu0 0.0
  %3772 = vmatpush2.msra.mxu0 0.0
  %3773 = vmatprep.subr.mxu0 0.0
  %3774 = vmatpush2.msra.mxu0 0.0
  %3775 = vmatprep.mubr.f32.mxu0 0.0
  %3776 = vmatmul.mubr.f32.gmra.mxu0 %v3569
  %v3777 = vpop.f32.mrf.mxu0
  %v3778 = vadd.f32 %v1299, %v3777
  %v3779 = vpop.f32.mrf.mxu0
  %3780 = vdwg.mxu0
  %v3781 = vadd.f32 %v506, %v3638
  %v3782 = vxor.u32 %v3781, 2147483648
  %v3783 = vmul.f32 %v3782, 1.442695
  %v3784 = vpow.pop %v3783
  %v3785 = vadd.f32 %v3784, 1.0
  %v3786 = vrcp.pop %v3785
  %v3787 = vmul.f32 1.0, %v3786
  %v3788 = vadd.f32 %v662, %v3708
  %v3789 = vxor.u32 %v3788, 2147483648
  %v3790 = vmul.f32 %v3789, 1.442695
  %v3791 = vpow.pop %v3790
  %v3792 = vadd.f32 %v3791, 1.0
  %v3793 = vrcp.pop %v3792
  %v3794 = vmul.f32 1.0, %v3793
  %v3795 = vmul.f32 %v3787, %v3778
  %v3796 = vadd.f32 %v818, %v3795
  %v3797 = vtanh.pop %v3796
  %v3798 = vsub.f32 1.0, %v3794
  %v3799 = vmul.f32 %v3798, %v3797
  %v3800 = vmul.f32 %v3794, %v3567
  %v3801 = vadd.f32 %v3799, %v3800
  %vm3802 = vcmp.gt.s32.totalorder %v1138, 5
  %v3803 = vsel %vm3802, 1, 0
  %3804 = vset.pattern.permute.xlu0 0
  %3805 = vperm.xlu0 %3804, %v3803
  %v3806 = vpop.permute.xlu0 %3805
  %vm3807 = vcmp.eq.s32.totalorder %v3806, 1
  %v3808 = vsel %vm3807, %v3801, %v3567
  %v3810 = vsel %vm365, %v3808, 0
  %3812 = vmatprep.subr.mxu0 0.0
  %3813 = vmatpush1.msra.mxu0 0.0
  %3814 = vmatprep.subr.mxu0 0.0
  %3815 = vmatpush1.msra.mxu0 0.0
  %3816 = vmatprep.subr.mxu0 0.0
  %3817 = vmatpush1.msra.mxu0 0.0
  %3818 = vmatprep.subr.mxu0 0.0
  %3819 = vmatpush1.msra.mxu0 0.0
  %3820 = vmatprep.subr.mxu0 0.0
  %3821 = vmatpush1.msra.mxu0 0.0
  %3822 = vmatprep.subr.mxu0 0.0
  %3823 = vmatpush1.msra.mxu0 0.0
  %3824 = vmatprep.subr.mxu0 0.0
  %3825 = vmatpush1.msra.mxu0 0.0
  %3826 = vmatprep.subr.mxu0 0.0
  %3827 = vmatpush1.msra.mxu0 0.0
  %3828 = vmatprep.subr.mxu0 0.0
  %3829 = vmatpush1.msra.mxu0 0.0
  %3830 = vmatprep.subr.mxu0 0.0
  %3831 = vmatpush1.msra.mxu0 0.0
  %3832 = vmatprep.subr.mxu0 0.0
  %3833 = vmatpush1.msra.mxu0 0.0
  %3834 = vmatprep.subr.mxu0 0.0
  %3835 = vmatpush1.msra.mxu0 0.0
  %3836 = vmatprep.subr.mxu0 0.0
  %3837 = vmatpush1.msra.mxu0 %v1142
  %3838 = vmatprep.subr.mxu0 0.0
  %3839 = vmatpush1.msra.mxu0 %v1141
  %3840 = vmatprep.subr.mxu0 0.0
  %3841 = vmatpush1.msra.mxu0 %v1140
  %3842 = vmatprep.subr.mxu0 0.0
  %3843 = vmatpush1.msra.mxu0 %v1139
  %3844 = vmatprep.subr.mxu0 0.0
  %3845 = vmatpush2.msra.mxu0 0.0
  %3846 = vmatprep.subr.mxu0 0.0
  %3847 = vmatpush2.msra.mxu0 0.0
  %3848 = vmatprep.subr.mxu0 0.0
  %3849 = vmatpush2.msra.mxu0 0.0
  %3850 = vmatprep.subr.mxu0 0.0
  %3851 = vmatpush2.msra.mxu0 0.0
  %3852 = vmatprep.subr.mxu0 0.0
  %3853 = vmatpush2.msra.mxu0 0.0
  %3854 = vmatprep.subr.mxu0 0.0
  %3855 = vmatpush2.msra.mxu0 0.0
  %3856 = vmatprep.subr.mxu0 0.0
  %3857 = vmatpush2.msra.mxu0 0.0
  %3858 = vmatprep.subr.mxu0 0.0
  %3859 = vmatpush2.msra.mxu0 0.0
  %3860 = vmatprep.subr.mxu0 0.0
  %3861 = vmatpush2.msra.mxu0 0.0
  %3862 = vmatprep.subr.mxu0 0.0
  %3863 = vmatpush2.msra.mxu0 0.0
  %3864 = vmatprep.subr.mxu0 0.0
  %3865 = vmatpush2.msra.mxu0 0.0
  %3866 = vmatprep.subr.mxu0 0.0
  %3867 = vmatpush2.msra.mxu0 0.0
  %3868 = vmatprep.subr.mxu0 0.0
  %3869 = vmatpush2.msra.mxu0 0.0
  %3870 = vmatprep.subr.mxu0 0.0
  %3871 = vmatpush2.msra.mxu0 0.0
  %3872 = vmatprep.subr.mxu0 0.0
  %3873 = vmatpush2.msra.mxu0 0.0
  %3874 = vmatprep.subr.mxu0 0.0
  %3875 = vmatpush2.msra.mxu0 0.0
  %3876 = vmatprep.mubr.f32.mxu0 0.0
  %3877 = vmatmul.mubr.f32.gmra.mxu0 %v3810
  %v3878 = vpop.f32.mrf.mxu0
  %v3879 = vadd.f32 0.0, %v3878
  %v3880 = vpop.f32.mrf.mxu0
  %3881 = vdwg.mxu0
  %3882 = vmatprep.subr.mxu0 0.0
  %3883 = vmatpush1.msra.mxu0 0.0
  %3884 = vmatprep.subr.mxu0 0.0
  %3885 = vmatpush1.msra.mxu0 0.0
  %3886 = vmatprep.subr.mxu0 0.0
  %3887 = vmatpush1.msra.mxu0 0.0
  %3888 = vmatprep.subr.mxu0 0.0
  %3889 = vmatpush1.msra.mxu0 0.0
  %3890 = vmatprep.subr.mxu0 0.0
  %3891 = vmatpush1.msra.mxu0 0.0
  %3892 = vmatprep.subr.mxu0 0.0
  %3893 = vmatpush1.msra.mxu0 0.0
  %3894 = vmatprep.subr.mxu0 0.0
  %3895 = vmatpush1.msra.mxu0 0.0
  %3896 = vmatprep.subr.mxu0 0.0
  %3897 = vmatpush1.msra.mxu0 0.0
  %3898 = vmatprep.subr.mxu0 0.0
  %3899 = vmatpush1.msra.mxu0 0.0
  %3900 = vmatprep.subr.mxu0 0.0
  %3901 = vmatpush1.msra.mxu0 0.0
  %3902 = vmatprep.subr.mxu0 0.0
  %3903 = vmatpush1.msra.mxu0 0.0
  %3904 = vmatprep.subr.mxu0 0.0
  %3905 = vmatpush1.msra.mxu0 0.0
  %3906 = vmatprep.subr.mxu0 0.0
  %3907 = vmatpush1.msra.mxu0 %v1146
  %3908 = vmatprep.subr.mxu0 0.0
  %3909 = vmatpush1.msra.mxu0 %v1145
  %3910 = vmatprep.subr.mxu0 0.0
  %3911 = vmatpush1.msra.mxu0 %v1144
  %3912 = vmatprep.subr.mxu0 0.0
  %3913 = vmatpush1.msra.mxu0 %v1143
  %3914 = vmatprep.subr.mxu0 0.0
  %3915 = vmatpush2.msra.mxu0 0.0
  %3916 = vmatprep.subr.mxu0 0.0
  %3917 = vmatpush2.msra.mxu0 0.0
  %3918 = vmatprep.subr.mxu0 0.0
  %3919 = vmatpush2.msra.mxu0 0.0
  %3920 = vmatprep.subr.mxu0 0.0
  %3921 = vmatpush2.msra.mxu0 0.0
  %3922 = vmatprep.subr.mxu0 0.0
  %3923 = vmatpush2.msra.mxu0 0.0
  %3924 = vmatprep.subr.mxu0 0.0
  %3925 = vmatpush2.msra.mxu0 0.0
  %3926 = vmatprep.subr.mxu0 0.0
  %3927 = vmatpush2.msra.mxu0 0.0
  %3928 = vmatprep.subr.mxu0 0.0
  %3929 = vmatpush2.msra.mxu0 0.0
  %3930 = vmatprep.subr.mxu0 0.0
  %3931 = vmatpush2.msra.mxu0 0.0
  %3932 = vmatprep.subr.mxu0 0.0
  %3933 = vmatpush2.msra.mxu0 0.0
  %3934 = vmatprep.subr.mxu0 0.0
  %3935 = vmatpush2.msra.mxu0 0.0
  %3936 = vmatprep.subr.mxu0 0.0
  %3937 = vmatpush2.msra.mxu0 0.0
  %3938 = vmatprep.subr.mxu0 0.0
  %3939 = vmatpush2.msra.mxu0 0.0
  %3940 = vmatprep.subr.mxu0 0.0
  %3941 = vmatpush2.msra.mxu0 0.0
  %3942 = vmatprep.subr.mxu0 0.0
  %3943 = vmatpush2.msra.mxu0 0.0
  %3944 = vmatprep.subr.mxu0 0.0
  %3945 = vmatpush2.msra.mxu0 0.0
  %3946 = vmatprep.mubr.f32.mxu0 0.0
  %3947 = vmatmul.mubr.f32.gmra.mxu0 %v3810
  %v3948 = vpop.f32.mrf.mxu0
  %v3949 = vadd.f32 0.0, %v3948
  %v3950 = vpop.f32.mrf.mxu0
  %3951 = vdwg.mxu0
  %3952 = vmatprep.subr.mxu0 0.0
  %3953 = vmatpush1.msra.mxu0 0.0
  %3954 = vmatprep.subr.mxu0 0.0
  %3955 = vmatpush1.msra.mxu0 0.0
  %3956 = vmatprep.subr.mxu0 0.0
  %3957 = vmatpush1.msra.mxu0 0.0
  %3958 = vmatprep.subr.mxu0 0.0
  %3959 = vmatpush1.msra.mxu0 0.0
  %3960 = vmatprep.subr.mxu0 0.0
  %3961 = vmatpush1.msra.mxu0 0.0
  %3962 = vmatprep.subr.mxu0 0.0
  %3963 = vmatpush1.msra.mxu0 0.0
  %3964 = vmatprep.subr.mxu0 0.0
  %3965 = vmatpush1.msra.mxu0 0.0
  %3966 = vmatprep.subr.mxu0 0.0
  %3967 = vmatpush1.msra.mxu0 0.0
  %3968 = vmatprep.subr.mxu0 0.0
  %3969 = vmatpush1.msra.mxu0 0.0
  %3970 = vmatprep.subr.mxu0 0.0
  %3971 = vmatpush1.msra.mxu0 0.0
  %3972 = vmatprep.subr.mxu0 0.0
  %3973 = vmatpush1.msra.mxu0 0.0
  %3974 = vmatprep.subr.mxu0 0.0
  %3975 = vmatpush1.msra.mxu0 0.0
  %3976 = vmatprep.subr.mxu0 0.0
  %3977 = vmatpush1.msra.mxu0 %v1150
  %3978 = vmatprep.subr.mxu0 0.0
  %3979 = vmatpush1.msra.mxu0 %v1149
  %3980 = vmatprep.subr.mxu0 0.0
  %3981 = vmatpush1.msra.mxu0 %v1148
  %3982 = vmatprep.subr.mxu0 0.0
  %3983 = vmatpush1.msra.mxu0 %v1147
  %3984 = vmatprep.subr.mxu0 0.0
  %3985 = vmatpush2.msra.mxu0 0.0
  %3986 = vmatprep.subr.mxu0 0.0
  %3987 = vmatpush2.msra.mxu0 0.0
  %3988 = vmatprep.subr.mxu0 0.0
  %3989 = vmatpush2.msra.mxu0 0.0
  %3990 = vmatprep.subr.mxu0 0.0
  %3991 = vmatpush2.msra.mxu0 0.0
  %3992 = vmatprep.subr.mxu0 0.0
  %3993 = vmatpush2.msra.mxu0 0.0
  %3994 = vmatprep.subr.mxu0 0.0
  %3995 = vmatpush2.msra.mxu0 0.0
  %3996 = vmatprep.subr.mxu0 0.0
  %3997 = vmatpush2.msra.mxu0 0.0
  %3998 = vmatprep.subr.mxu0 0.0
  %3999 = vmatpush2.msra.mxu0 0.0
  %4000 = vmatprep.subr.mxu0 0.0
  %4001 = vmatpush2.msra.mxu0 0.0
  %4002 = vmatprep.subr.mxu0 0.0
  %4003 = vmatpush2.msra.mxu0 0.0
  %4004 = vmatprep.subr.mxu0 0.0
  %4005 = vmatpush2.msra.mxu0 0.0
  %4006 = vmatprep.subr.mxu0 0.0
  %4007 = vmatpush2.msra.mxu0 0.0
  %4008 = vmatprep.subr.mxu0 0.0
  %4009 = vmatpush2.msra.mxu0 0.0
  %4010 = vmatprep.subr.mxu0 0.0
  %4011 = vmatpush2.msra.mxu0 0.0
  %4012 = vmatprep.subr.mxu0 0.0
  %4013 = vmatpush2.msra.mxu0 0.0
  %4014 = vmatprep.subr.mxu0 0.0
  %4015 = vmatpush2.msra.mxu0 0.0
  %4016 = vmatprep.mubr.f32.mxu0 0.0
  %4017 = vmatmul.mubr.f32.gmra.mxu0 %v3810
  %v4018 = vpop.f32.mrf.mxu0
  %v4019 = vadd.f32 %v1299, %v4018
  %v4020 = vpop.f32.mrf.mxu0
  %4021 = vdwg.mxu0
  %v4022 = vadd.f32 %v501, %v3879
  %v4023 = vxor.u32 %v4022, 2147483648
  %v4024 = vmul.f32 %v4023, 1.442695
  %v4025 = vpow.pop %v4024
  %v4026 = vadd.f32 %v4025, 1.0
  %v4027 = vrcp.pop %v4026
  %v4028 = vmul.f32 1.0, %v4027
  %v4029 = vadd.f32 %v657, %v3949
  %v4030 = vxor.u32 %v4029, 2147483648
  %v4031 = vmul.f32 %v4030, 1.442695
  %v4032 = vpow.pop %v4031
  %v4033 = vadd.f32 %v4032, 1.0
  %v4034 = vrcp.pop %v4033
  %v4035 = vmul.f32 1.0, %v4034
  %v4036 = vmul.f32 %v4028, %v4019
  %v4037 = vadd.f32 %v813, %v4036
  %v4038 = vtanh.pop %v4037
  %v4039 = vsub.f32 1.0, %v4035
  %v4040 = vmul.f32 %v4039, %v4038
  %v4041 = vmul.f32 %v4035, %v3808
  %v4042 = vadd.f32 %v4040, %v4041
  %vm4043 = vcmp.gt.s32.totalorder %v1138, 4
  %v4044 = vsel %vm4043, 1, 0
  %4045 = vset.pattern.permute.xlu0 0
  %4046 = vperm.xlu0 %4045, %v4044
  %v4047 = vpop.permute.xlu0 %4046
  %vm4048 = vcmp.eq.s32.totalorder %v4047, 1
  %v4049 = vsel %vm4048, %v4042, %v3808
  %v4051 = vsel %vm365, %v4049, 0
  %4053 = vmatprep.subr.mxu0 0.0
  %4054 = vmatpush1.msra.mxu0 0.0
  %4055 = vmatprep.subr.mxu0 0.0
  %4056 = vmatpush1.msra.mxu0 0.0
  %4057 = vmatprep.subr.mxu0 0.0
  %4058 = vmatpush1.msra.mxu0 0.0
  %4059 = vmatprep.subr.mxu0 0.0
  %4060 = vmatpush1.msra.mxu0 0.0
  %4061 = vmatprep.subr.mxu0 0.0
  %4062 = vmatpush1.msra.mxu0 0.0
  %4063 = vmatprep.subr.mxu0 0.0
  %4064 = vmatpush1.msra.mxu0 0.0
  %4065 = vmatprep.subr.mxu0 0.0
  %4066 = vmatpush1.msra.mxu0 0.0
  %4067 = vmatprep.subr.mxu0 0.0
  %4068 = vmatpush1.msra.mxu0 0.0
  %4069 = vmatprep.subr.mxu0 0.0
  %4070 = vmatpush1.msra.mxu0 0.0
  %4071 = vmatprep.subr.mxu0 0.0
  %4072 = vmatpush1.msra.mxu0 0.0
  %4073 = vmatprep.subr.mxu0 0.0
  %4074 = vmatpush1.msra.mxu0 0.0
  %4075 = vmatprep.subr.mxu0 0.0
  %4076 = vmatpush1.msra.mxu0 0.0
  %4077 = vmatprep.subr.mxu0 0.0
  %4078 = vmatpush1.msra.mxu0 %v1142
  %4079 = vmatprep.subr.mxu0 0.0
  %4080 = vmatpush1.msra.mxu0 %v1141
  %4081 = vmatprep.subr.mxu0 0.0
  %4082 = vmatpush1.msra.mxu0 %v1140
  %4083 = vmatprep.subr.mxu0 0.0
  %4084 = vmatpush1.msra.mxu0 %v1139
  %4085 = vmatprep.subr.mxu0 0.0
  %4086 = vmatpush2.msra.mxu0 0.0
  %4087 = vmatprep.subr.mxu0 0.0
  %4088 = vmatpush2.msra.mxu0 0.0
  %4089 = vmatprep.subr.mxu0 0.0
  %4090 = vmatpush2.msra.mxu0 0.0
  %4091 = vmatprep.subr.mxu0 0.0
  %4092 = vmatpush2.msra.mxu0 0.0
  %4093 = vmatprep.subr.mxu0 0.0
  %4094 = vmatpush2.msra.mxu0 0.0
  %4095 = vmatprep.subr.mxu0 0.0
  %4096 = vmatpush2.msra.mxu0 0.0
  %4097 = vmatprep.subr.mxu0 0.0
  %4098 = vmatpush2.msra.mxu0 0.0
  %4099 = vmatprep.subr.mxu0 0.0
  %4100 = vmatpush2.msra.mxu0 0.0
  %4101 = vmatprep.subr.mxu0 0.0
  %4102 = vmatpush2.msra.mxu0 0.0
  %4103 = vmatprep.subr.mxu0 0.0
  %4104 = vmatpush2.msra.mxu0 0.0
  %4105 = vmatprep.subr.mxu0 0.0
  %4106 = vmatpush2.msra.mxu0 0.0
  %4107 = vmatprep.subr.mxu0 0.0
  %4108 = vmatpush2.msra.mxu0 0.0
  %4109 = vmatprep.subr.mxu0 0.0
  %4110 = vmatpush2.msra.mxu0 0.0
  %4111 = vmatprep.subr.mxu0 0.0
  %4112 = vmatpush2.msra.mxu0 0.0
  %4113 = vmatprep.subr.mxu0 0.0
  %4114 = vmatpush2.msra.mxu0 0.0
  %4115 = vmatprep.subr.mxu0 0.0
  %4116 = vmatpush2.msra.mxu0 0.0
  %4117 = vmatprep.mubr.f32.mxu0 0.0
  %4118 = vmatmul.mubr.f32.gmra.mxu0 %v4051
  %v4119 = vpop.f32.mrf.mxu0
  %v4120 = vadd.f32 0.0, %v4119
  %v4121 = vpop.f32.mrf.mxu0
  %4122 = vdwg.mxu0
  %4123 = vmatprep.subr.mxu0 0.0
  %4124 = vmatpush1.msra.mxu0 0.0
  %4125 = vmatprep.subr.mxu0 0.0
  %4126 = vmatpush1.msra.mxu0 0.0
  %4127 = vmatprep.subr.mxu0 0.0
  %4128 = vmatpush1.msra.mxu0 0.0
  %4129 = vmatprep.subr.mxu0 0.0
  %4130 = vmatpush1.msra.mxu0 0.0
  %4131 = vmatprep.subr.mxu0 0.0
  %4132 = vmatpush1.msra.mxu0 0.0
  %4133 = vmatprep.subr.mxu0 0.0
  %4134 = vmatpush1.msra.mxu0 0.0
  %4135 = vmatprep.subr.mxu0 0.0
  %4136 = vmatpush1.msra.mxu0 0.0
  %4137 = vmatprep.subr.mxu0 0.0
  %4138 = vmatpush1.msra.mxu0 0.0
  %4139 = vmatprep.subr.mxu0 0.0
  %4140 = vmatpush1.msra.mxu0 0.0
  %4141 = vmatprep.subr.mxu0 0.0
  %4142 = vmatpush1.msra.mxu0 0.0
  %4143 = vmatprep.subr.mxu0 0.0
  %4144 = vmatpush1.msra.mxu0 0.0
  %4145 = vmatprep.subr.mxu0 0.0
  %4146 = vmatpush1.msra.mxu0 0.0
  %4147 = vmatprep.subr.mxu0 0.0
  %4148 = vmatpush1.msra.mxu0 %v1146
  %4149 = vmatprep.subr.mxu0 0.0
  %4150 = vmatpush1.msra.mxu0 %v1145
  %4151 = vmatprep.subr.mxu0 0.0
  %4152 = vmatpush1.msra.mxu0 %v1144
  %4153 = vmatprep.subr.mxu0 0.0
  %4154 = vmatpush1.msra.mxu0 %v1143
  %4155 = vmatprep.subr.mxu0 0.0
  %4156 = vmatpush2.msra.mxu0 0.0
  %4157 = vmatprep.subr.mxu0 0.0
  %4158 = vmatpush2.msra.mxu0 0.0
  %4159 = vmatprep.subr.mxu0 0.0
  %4160 = vmatpush2.msra.mxu0 0.0
  %4161 = vmatprep.subr.mxu0 0.0
  %4162 = vmatpush2.msra.mxu0 0.0
  %4163 = vmatprep.subr.mxu0 0.0
  %4164 = vmatpush2.msra.mxu0 0.0
  %4165 = vmatprep.subr.mxu0 0.0
  %4166 = vmatpush2.msra.mxu0 0.0
  %4167 = vmatprep.subr.mxu0 0.0
  %4168 = vmatpush2.msra.mxu0 0.0
  %4169 = vmatprep.subr.mxu0 0.0
  %4170 = vmatpush2.msra.mxu0 0.0
  %4171 = vmatprep.subr.mxu0 0.0
  %4172 = vmatpush2.msra.mxu0 0.0
  %4173 = vmatprep.subr.mxu0 0.0
  %4174 = vmatpush2.msra.mxu0 0.0
  %4175 = vmatprep.subr.mxu0 0.0
  %4176 = vmatpush2.msra.mxu0 0.0
  %4177 = vmatprep.subr.mxu0 0.0
  %4178 = vmatpush2.msra.mxu0 0.0
  %4179 = vmatprep.subr.mxu0 0.0
  %4180 = vmatpush2.msra.mxu0 0.0
  %4181 = vmatprep.subr.mxu0 0.0
  %4182 = vmatpush2.msra.mxu0 0.0
  %4183 = vmatprep.subr.mxu0 0.0
  %4184 = vmatpush2.msra.mxu0 0.0
  %4185 = vmatprep.subr.mxu0 0.0
  %4186 = vmatpush2.msra.mxu0 0.0
  %4187 = vmatprep.mubr.f32.mxu0 0.0
  %4188 = vmatmul.mubr.f32.gmra.mxu0 %v4051
  %v4189 = vpop.f32.mrf.mxu0
  %v4190 = vadd.f32 0.0, %v4189
  %v4191 = vpop.f32.mrf.mxu0
  %4192 = vdwg.mxu0
  %4193 = vmatprep.subr.mxu0 0.0
  %4194 = vmatpush1.msra.mxu0 0.0
  %4195 = vmatprep.subr.mxu0 0.0
  %4196 = vmatpush1.msra.mxu0 0.0
  %4197 = vmatprep.subr.mxu0 0.0
  %4198 = vmatpush1.msra.mxu0 0.0
  %4199 = vmatprep.subr.mxu0 0.0
  %4200 = vmatpush1.msra.mxu0 0.0
  %4201 = vmatprep.subr.mxu0 0.0
  %4202 = vmatpush1.msra.mxu0 0.0
  %4203 = vmatprep.subr.mxu0 0.0
  %4204 = vmatpush1.msra.mxu0 0.0
  %4205 = vmatprep.subr.mxu0 0.0
  %4206 = vmatpush1.msra.mxu0 0.0
  %4207 = vmatprep.subr.mxu0 0.0
  %4208 = vmatpush1.msra.mxu0 0.0
  %4209 = vmatprep.subr.mxu0 0.0
  %4210 = vmatpush1.msra.mxu0 0.0
  %4211 = vmatprep.subr.mxu0 0.0
  %4212 = vmatpush1.msra.mxu0 0.0
  %4213 = vmatprep.subr.mxu0 0.0
  %4214 = vmatpush1.msra.mxu0 0.0
  %4215 = vmatprep.subr.mxu0 0.0
  %4216 = vmatpush1.msra.mxu0 0.0
  %4217 = vmatprep.subr.mxu0 0.0
  %4218 = vmatpush1.msra.mxu0 %v1150
  %4219 = vmatprep.subr.mxu0 0.0
  %4220 = vmatpush1.msra.mxu0 %v1149
  %4221 = vmatprep.subr.mxu0 0.0
  %4222 = vmatpush1.msra.mxu0 %v1148
  %4223 = vmatprep.subr.mxu0 0.0
  %4224 = vmatpush1.msra.mxu0 %v1147
  %4225 = vmatprep.subr.mxu0 0.0
  %4226 = vmatpush2.msra.mxu0 0.0
  %4227 = vmatprep.subr.mxu0 0.0
  %4228 = vmatpush2.msra.mxu0 0.0
  %4229 = vmatprep.subr.mxu0 0.0
  %4230 = vmatpush2.msra.mxu0 0.0
  %4231 = vmatprep.subr.mxu0 0.0
  %4232 = vmatpush2.msra.mxu0 0.0
  %4233 = vmatprep.subr.mxu0 0.0
  %4234 = vmatpush2.msra.mxu0 0.0
  %4235 = vmatprep.subr.mxu0 0.0
  %4236 = vmatpush2.msra.mxu0 0.0
  %4237 = vmatprep.subr.mxu0 0.0
  %4238 = vmatpush2.msra.mxu0 0.0
  %4239 = vmatprep.subr.mxu0 0.0
  %4240 = vmatpush2.msra.mxu0 0.0
  %4241 = vmatprep.subr.mxu0 0.0
  %4242 = vmatpush2.msra.mxu0 0.0
  %4243 = vmatprep.subr.mxu0 0.0
  %4244 = vmatpush2.msra.mxu0 0.0
  %4245 = vmatprep.subr.mxu0 0.0
  %4246 = vmatpush2.msra.mxu0 0.0
  %4247 = vmatprep.subr.mxu0 0.0
  %4248 = vmatpush2.msra.mxu0 0.0
  %4249 = vmatprep.subr.mxu0 0.0
  %4250 = vmatpush2.msra.mxu0 0.0
  %4251 = vmatprep.subr.mxu0 0.0
  %4252 = vmatpush2.msra.mxu0 0.0
  %4253 = vmatprep.subr.mxu0 0.0
  %4254 = vmatpush2.msra.mxu0 0.0
  %4255 = vmatprep.subr.mxu0 0.0
  %4256 = vmatpush2.msra.mxu0 0.0
  %4257 = vmatprep.mubr.f32.mxu0 0.0
  %4258 = vmatmul.mubr.f32.gmra.mxu0 %v4051
  %v4259 = vpop.f32.mrf.mxu0
  %v4260 = vadd.f32 %v1299, %v4259
  %v4261 = vpop.f32.mrf.mxu0
  %4262 = vdwg.mxu0
  %v4263 = vadd.f32 %v496, %v4120
  %v4264 = vxor.u32 %v4263, 2147483648
  %v4265 = vmul.f32 %v4264, 1.442695
  %v4266 = vpow.pop %v4265
  %v4267 = vadd.f32 %v4266, 1.0
  %v4268 = vrcp.pop %v4267
  %v4269 = vmul.f32 1.0, %v4268
  %v4270 = vadd.f32 %v652, %v4190
  %v4271 = vxor.u32 %v4270, 2147483648
  %v4272 = vmul.f32 %v4271, 1.442695
  %v4273 = vpow.pop %v4272
  %v4274 = vadd.f32 %v4273, 1.0
  %v4275 = vrcp.pop %v4274
  %v4276 = vmul.f32 1.0, %v4275
  %v4277 = vmul.f32 %v4269, %v4260
  %v4278 = vadd.f32 %v808, %v4277
  %v4279 = vtanh.pop %v4278
  %v4280 = vsub.f32 1.0, %v4276
  %v4281 = vmul.f32 %v4280, %v4279
  %v4282 = vmul.f32 %v4276, %v4049
  %v4283 = vadd.f32 %v4281, %v4282
  %vm4284 = vcmp.gt.s32.totalorder %v1138, 3
  %v4285 = vsel %vm4284, 1, 0
  %4286 = vset.pattern.permute.xlu0 0
  %4287 = vperm.xlu0 %4286, %v4285
  %v4288 = vpop.permute.xlu0 %4287
  %vm4289 = vcmp.eq.s32.totalorder %v4288, 1
  %v4290 = vsel %vm4289, %v4283, %v4049
  %v4292 = vsel %vm365, %v4290, 0
  %4294 = vmatprep.subr.mxu0 0.0
  %4295 = vmatpush1.msra.mxu0 0.0
  %4296 = vmatprep.subr.mxu0 0.0
  %4297 = vmatpush1.msra.mxu0 0.0
  %4298 = vmatprep.subr.mxu0 0.0
  %4299 = vmatpush1.msra.mxu0 0.0
  %4300 = vmatprep.subr.mxu0 0.0
  %4301 = vmatpush1.msra.mxu0 0.0
  %4302 = vmatprep.subr.mxu0 0.0
  %4303 = vmatpush1.msra.mxu0 0.0
  %4304 = vmatprep.subr.mxu0 0.0
  %4305 = vmatpush1.msra.mxu0 0.0
  %4306 = vmatprep.subr.mxu0 0.0
  %4307 = vmatpush1.msra.mxu0 0.0
  %4308 = vmatprep.subr.mxu0 0.0
  %4309 = vmatpush1.msra.mxu0 0.0
  %4310 = vmatprep.subr.mxu0 0.0
  %4311 = vmatpush1.msra.mxu0 0.0
  %4312 = vmatprep.subr.mxu0 0.0
  %4313 = vmatpush1.msra.mxu0 0.0
  %4314 = vmatprep.subr.mxu0 0.0
  %4315 = vmatpush1.msra.mxu0 0.0
  %4316 = vmatprep.subr.mxu0 0.0
  %4317 = vmatpush1.msra.mxu0 0.0
  %4318 = vmatprep.subr.mxu0 0.0
  %4319 = vmatpush1.msra.mxu0 %v1142
  %4320 = vmatprep.subr.mxu0 0.0
  %4321 = vmatpush1.msra.mxu0 %v1141
  %4322 = vmatprep.subr.mxu0 0.0
  %4323 = vmatpush1.msra.mxu0 %v1140
  %4324 = vmatprep.subr.mxu0 0.0
  %4325 = vmatpush1.msra.mxu0 %v1139
  %4326 = vmatprep.subr.mxu0 0.0
  %4327 = vmatpush2.msra.mxu0 0.0
  %4328 = vmatprep.subr.mxu0 0.0
  %4329 = vmatpush2.msra.mxu0 0.0
  %4330 = vmatprep.subr.mxu0 0.0
  %4331 = vmatpush2.msra.mxu0 0.0
  %4332 = vmatprep.subr.mxu0 0.0
  %4333 = vmatpush2.msra.mxu0 0.0
  %4334 = vmatprep.subr.mxu0 0.0
  %4335 = vmatpush2.msra.mxu0 0.0
  %4336 = vmatprep.subr.mxu0 0.0
  %4337 = vmatpush2.msra.mxu0 0.0
  %4338 = vmatprep.subr.mxu0 0.0
  %4339 = vmatpush2.msra.mxu0 0.0
  %4340 = vmatprep.subr.mxu0 0.0
  %4341 = vmatpush2.msra.mxu0 0.0
  %4342 = vmatprep.subr.mxu0 0.0
  %4343 = vmatpush2.msra.mxu0 0.0
  %4344 = vmatprep.subr.mxu0 0.0
  %4345 = vmatpush2.msra.mxu0 0.0
  %4346 = vmatprep.subr.mxu0 0.0
  %4347 = vmatpush2.msra.mxu0 0.0
  %4348 = vmatprep.subr.mxu0 0.0
  %4349 = vmatpush2.msra.mxu0 0.0
  %4350 = vmatprep.subr.mxu0 0.0
  %4351 = vmatpush2.msra.mxu0 0.0
  %4352 = vmatprep.subr.mxu0 0.0
  %4353 = vmatpush2.msra.mxu0 0.0
  %4354 = vmatprep.subr.mxu0 0.0
  %4355 = vmatpush2.msra.mxu0 0.0
  %4356 = vmatprep.subr.mxu0 0.0
  %4357 = vmatpush2.msra.mxu0 0.0
  %4358 = vmatprep.mubr.f32.mxu0 0.0
  %4359 = vmatmul.mubr.f32.gmra.mxu0 %v4292
  %v4360 = vpop.f32.mrf.mxu0
  %v4361 = vadd.f32 0.0, %v4360
  %v4362 = vpop.f32.mrf.mxu0
  %4363 = vdwg.mxu0
  %4364 = vmatprep.subr.mxu0 0.0
  %4365 = vmatpush1.msra.mxu0 0.0
  %4366 = vmatprep.subr.mxu0 0.0
  %4367 = vmatpush1.msra.mxu0 0.0
  %4368 = vmatprep.subr.mxu0 0.0
  %4369 = vmatpush1.msra.mxu0 0.0
  %4370 = vmatprep.subr.mxu0 0.0
  %4371 = vmatpush1.msra.mxu0 0.0
  %4372 = vmatprep.subr.mxu0 0.0
  %4373 = vmatpush1.msra.mxu0 0.0
  %4374 = vmatprep.subr.mxu0 0.0
  %4375 = vmatpush1.msra.mxu0 0.0
  %4376 = vmatprep.subr.mxu0 0.0
  %4377 = vmatpush1.msra.mxu0 0.0
  %4378 = vmatprep.subr.mxu0 0.0
  %4379 = vmatpush1.msra.mxu0 0.0
  %4380 = vmatprep.subr.mxu0 0.0
  %4381 = vmatpush1.msra.mxu0 0.0
  %4382 = vmatprep.subr.mxu0 0.0
  %4383 = vmatpush1.msra.mxu0 0.0
  %4384 = vmatprep.subr.mxu0 0.0
  %4385 = vmatpush1.msra.mxu0 0.0
  %4386 = vmatprep.subr.mxu0 0.0
  %4387 = vmatpush1.msra.mxu0 0.0
  %4388 = vmatprep.subr.mxu0 0.0
  %4389 = vmatpush1.msra.mxu0 %v1146
  %4390 = vmatprep.subr.mxu0 0.0
  %4391 = vmatpush1.msra.mxu0 %v1145
  %4392 = vmatprep.subr.mxu0 0.0
  %4393 = vmatpush1.msra.mxu0 %v1144
  %4394 = vmatprep.subr.mxu0 0.0
  %4395 = vmatpush1.msra.mxu0 %v1143
  %4396 = vmatprep.subr.mxu0 0.0
  %4397 = vmatpush2.msra.mxu0 0.0
  %4398 = vmatprep.subr.mxu0 0.0
  %4399 = vmatpush2.msra.mxu0 0.0
  %4400 = vmatprep.subr.mxu0 0.0
  %4401 = vmatpush2.msra.mxu0 0.0
  %4402 = vmatprep.subr.mxu0 0.0
  %4403 = vmatpush2.msra.mxu0 0.0
  %4404 = vmatprep.subr.mxu0 0.0
  %4405 = vmatpush2.msra.mxu0 0.0
  %4406 = vmatprep.subr.mxu0 0.0
  %4407 = vmatpush2.msra.mxu0 0.0
  %4408 = vmatprep.subr.mxu0 0.0
  %4409 = vmatpush2.msra.mxu0 0.0
  %4410 = vmatprep.subr.mxu0 0.0
  %4411 = vmatpush2.msra.mxu0 0.0
  %4412 = vmatprep.subr.mxu0 0.0
  %4413 = vmatpush2.msra.mxu0 0.0
  %4414 = vmatprep.subr.mxu0 0.0
  %4415 = vmatpush2.msra.mxu0 0.0
  %4416 = vmatprep.subr.mxu0 0.0
  %4417 = vmatpush2.msra.mxu0 0.0
  %4418 = vmatprep.subr.mxu0 0.0
  %4419 = vmatpush2.msra.mxu0 0.0
  %4420 = vmatprep.subr.mxu0 0.0
  %4421 = vmatpush2.msra.mxu0 0.0
  %4422 = vmatprep.subr.mxu0 0.0
  %4423 = vmatpush2.msra.mxu0 0.0
  %4424 = vmatprep.subr.mxu0 0.0
  %4425 = vmatpush2.msra.mxu0 0.0
  %4426 = vmatprep.subr.mxu0 0.0
  %4427 = vmatpush2.msra.mxu0 0.0
  %4428 = vmatprep.mubr.f32.mxu0 0.0
  %4429 = vmatmul.mubr.f32.gmra.mxu0 %v4292
  %v4430 = vpop.f32.mrf.mxu0
  %v4431 = vadd.f32 0.0, %v4430
  %v4432 = vpop.f32.mrf.mxu0
  %4433 = vdwg.mxu0
  %4434 = vmatprep.subr.mxu0 0.0
  %4435 = vmatpush1.msra.mxu0 0.0
  %4436 = vmatprep.subr.mxu0 0.0
  %4437 = vmatpush1.msra.mxu0 0.0
  %4438 = vmatprep.subr.mxu0 0.0
  %4439 = vmatpush1.msra.mxu0 0.0
  %4440 = vmatprep.subr.mxu0 0.0
  %4441 = vmatpush1.msra.mxu0 0.0
  %4442 = vmatprep.subr.mxu0 0.0
  %4443 = vmatpush1.msra.mxu0 0.0
  %4444 = vmatprep.subr.mxu0 0.0
  %4445 = vmatpush1.msra.mxu0 0.0
  %4446 = vmatprep.subr.mxu0 0.0
  %4447 = vmatpush1.msra.mxu0 0.0
  %4448 = vmatprep.subr.mxu0 0.0
  %4449 = vmatpush1.msra.mxu0 0.0
  %4450 = vmatprep.subr.mxu0 0.0
  %4451 = vmatpush1.msra.mxu0 0.0
  %4452 = vmatprep.subr.mxu0 0.0
  %4453 = vmatpush1.msra.mxu0 0.0
  %4454 = vmatprep.subr.mxu0 0.0
  %4455 = vmatpush1.msra.mxu0 0.0
  %4456 = vmatprep.subr.mxu0 0.0
  %4457 = vmatpush1.msra.mxu0 0.0
  %4458 = vmatprep.subr.mxu0 0.0
  %4459 = vmatpush1.msra.mxu0 %v1150
  %4460 = vmatprep.subr.mxu0 0.0
  %4461 = vmatpush1.msra.mxu0 %v1149
  %4462 = vmatprep.subr.mxu0 0.0
  %4463 = vmatpush1.msra.mxu0 %v1148
  %4464 = vmatprep.subr.mxu0 0.0
  %4465 = vmatpush1.msra.mxu0 %v1147
  %4466 = vmatprep.subr.mxu0 0.0
  %4467 = vmatpush2.msra.mxu0 0.0
  %4468 = vmatprep.subr.mxu0 0.0
  %4469 = vmatpush2.msra.mxu0 0.0
  %4470 = vmatprep.subr.mxu0 0.0
  %4471 = vmatpush2.msra.mxu0 0.0
  %4472 = vmatprep.subr.mxu0 0.0
  %4473 = vmatpush2.msra.mxu0 0.0
  %4474 = vmatprep.subr.mxu0 0.0
  %4475 = vmatpush2.msra.mxu0 0.0
  %4476 = vmatprep.subr.mxu0 0.0
  %4477 = vmatpush2.msra.mxu0 0.0
  %4478 = vmatprep.subr.mxu0 0.0
  %4479 = vmatpush2.msra.mxu0 0.0
  %4480 = vmatprep.subr.mxu0 0.0
  %4481 = vmatpush2.msra.mxu0 0.0
  %4482 = vmatprep.subr.mxu0 0.0
  %4483 = vmatpush2.msra.mxu0 0.0
  %4484 = vmatprep.subr.mxu0 0.0
  %4485 = vmatpush2.msra.mxu0 0.0
  %4486 = vmatprep.subr.mxu0 0.0
  %4487 = vmatpush2.msra.mxu0 0.0
  %4488 = vmatprep.subr.mxu0 0.0
  %4489 = vmatpush2.msra.mxu0 0.0
  %4490 = vmatprep.subr.mxu0 0.0
  %4491 = vmatpush2.msra.mxu0 0.0
  %4492 = vmatprep.subr.mxu0 0.0
  %4493 = vmatpush2.msra.mxu0 0.0
  %4494 = vmatprep.subr.mxu0 0.0
  %4495 = vmatpush2.msra.mxu0 0.0
  %4496 = vmatprep.subr.mxu0 0.0
  %4497 = vmatpush2.msra.mxu0 0.0
  %4498 = vmatprep.mubr.f32.mxu0 0.0
  %4499 = vmatmul.mubr.f32.gmra.mxu0 %v4292
  %v4500 = vpop.f32.mrf.mxu0
  %v4501 = vadd.f32 %v1299, %v4500
  %v4502 = vpop.f32.mrf.mxu0
  %4503 = vdwg.mxu0
  %v4504 = vadd.f32 %v491, %v4361
  %v4505 = vxor.u32 %v4504, 2147483648
  %v4506 = vmul.f32 %v4505, 1.442695
  %v4507 = vpow.pop %v4506
  %v4508 = vadd.f32 %v4507, 1.0
  %v4509 = vrcp.pop %v4508
  %v4510 = vmul.f32 1.0, %v4509
  %v4511 = vadd.f32 %v647, %v4431
  %v4512 = vxor.u32 %v4511, 2147483648
  %v4513 = vmul.f32 %v4512, 1.442695
  %v4514 = vpow.pop %v4513
  %v4515 = vadd.f32 %v4514, 1.0
  %v4516 = vrcp.pop %v4515
  %v4517 = vmul.f32 1.0, %v4516
  %v4518 = vmul.f32 %v4510, %v4501
  %v4519 = vadd.f32 %v803, %v4518
  %v4520 = vtanh.pop %v4519
  %v4521 = vsub.f32 1.0, %v4517
  %v4522 = vmul.f32 %v4521, %v4520
  %v4523 = vmul.f32 %v4517, %v4290
  %v4524 = vadd.f32 %v4522, %v4523
  %vm4525 = vcmp.gt.s32.totalorder %v1138, 2
  %v4526 = vsel %vm4525, 1, 0
  %4527 = vset.pattern.permute.xlu0 0
  %4528 = vperm.xlu0 %4527, %v4526
  %v4529 = vpop.permute.xlu0 %4528
  %vm4530 = vcmp.eq.s32.totalorder %v4529, 1
  %v4531 = vsel %vm4530, %v4524, %v4290
  %v4533 = vsel %vm365, %v4531, 0
  %4535 = vmatprep.subr.mxu0 0.0
  %4536 = vmatpush1.msra.mxu0 0.0
  %4537 = vmatprep.subr.mxu0 0.0
  %4538 = vmatpush1.msra.mxu0 0.0
  %4539 = vmatprep.subr.mxu0 0.0
  %4540 = vmatpush1.msra.mxu0 0.0
  %4541 = vmatprep.subr.mxu0 0.0
  %4542 = vmatpush1.msra.mxu0 0.0
  %4543 = vmatprep.subr.mxu0 0.0
  %4544 = vmatpush1.msra.mxu0 0.0
  %4545 = vmatprep.subr.mxu0 0.0
  %4546 = vmatpush1.msra.mxu0 0.0
  %4547 = vmatprep.subr.mxu0 0.0
  %4548 = vmatpush1.msra.mxu0 0.0
  %4549 = vmatprep.subr.mxu0 0.0
  %4550 = vmatpush1.msra.mxu0 0.0
  %4551 = vmatprep.subr.mxu0 0.0
  %4552 = vmatpush1.msra.mxu0 0.0
  %4553 = vmatprep.subr.mxu0 0.0
  %4554 = vmatpush1.msra.mxu0 0.0
  %4555 = vmatprep.subr.mxu0 0.0
  %4556 = vmatpush1.msra.mxu0 0.0
  %4557 = vmatprep.subr.mxu0 0.0
  %4558 = vmatpush1.msra.mxu0 0.0
  %4559 = vmatprep.subr.mxu0 0.0
  %4560 = vmatpush1.msra.mxu0 %v1142
  %4561 = vmatprep.subr.mxu0 0.0
  %4562 = vmatpush1.msra.mxu0 %v1141
  %4563 = vmatprep.subr.mxu0 0.0
  %4564 = vmatpush1.msra.mxu0 %v1140
  %4565 = vmatprep.subr.mxu0 0.0
  %4566 = vmatpush1.msra.mxu0 %v1139
  %4567 = vmatprep.subr.mxu0 0.0
  %4568 = vmatpush2.msra.mxu0 0.0
  %4569 = vmatprep.subr.mxu0 0.0
  %4570 = vmatpush2.msra.mxu0 0.0
  %4571 = vmatprep.subr.mxu0 0.0
  %4572 = vmatpush2.msra.mxu0 0.0
  %4573 = vmatprep.subr.mxu0 0.0
  %4574 = vmatpush2.msra.mxu0 0.0
  %4575 = vmatprep.subr.mxu0 0.0
  %4576 = vmatpush2.msra.mxu0 0.0
  %4577 = vmatprep.subr.mxu0 0.0
  %4578 = vmatpush2.msra.mxu0 0.0
  %4579 = vmatprep.subr.mxu0 0.0
  %4580 = vmatpush2.msra.mxu0 0.0
  %4581 = vmatprep.subr.mxu0 0.0
  %4582 = vmatpush2.msra.mxu0 0.0
  %4583 = vmatprep.subr.mxu0 0.0
  %4584 = vmatpush2.msra.mxu0 0.0
  %4585 = vmatprep.subr.mxu0 0.0
  %4586 = vmatpush2.msra.mxu0 0.0
  %4587 = vmatprep.subr.mxu0 0.0
  %4588 = vmatpush2.msra.mxu0 0.0
  %4589 = vmatprep.subr.mxu0 0.0
  %4590 = vmatpush2.msra.mxu0 0.0
  %4591 = vmatprep.subr.mxu0 0.0
  %4592 = vmatpush2.msra.mxu0 0.0
  %4593 = vmatprep.subr.mxu0 0.0
  %4594 = vmatpush2.msra.mxu0 0.0
  %4595 = vmatprep.subr.mxu0 0.0
  %4596 = vmatpush2.msra.mxu0 0.0
  %4597 = vmatprep.subr.mxu0 0.0
  %4598 = vmatpush2.msra.mxu0 0.0
  %4599 = vmatprep.mubr.f32.mxu0 0.0
  %4600 = vmatmul.mubr.f32.gmra.mxu0 %v4533
  %v4601 = vpop.f32.mrf.mxu0
  %v4602 = vadd.f32 0.0, %v4601
  %v4603 = vpop.f32.mrf.mxu0
  %4604 = vdwg.mxu0
  %4605 = vmatprep.subr.mxu0 0.0
  %4606 = vmatpush1.msra.mxu0 0.0
  %4607 = vmatprep.subr.mxu0 0.0
  %4608 = vmatpush1.msra.mxu0 0.0
  %4609 = vmatprep.subr.mxu0 0.0
  %4610 = vmatpush1.msra.mxu0 0.0
  %4611 = vmatprep.subr.mxu0 0.0
  %4612 = vmatpush1.msra.mxu0 0.0
  %4613 = vmatprep.subr.mxu0 0.0
  %4614 = vmatpush1.msra.mxu0 0.0
  %4615 = vmatprep.subr.mxu0 0.0
  %4616 = vmatpush1.msra.mxu0 0.0
  %4617 = vmatprep.subr.mxu0 0.0
  %4618 = vmatpush1.msra.mxu0 0.0
  %4619 = vmatprep.subr.mxu0 0.0
  %4620 = vmatpush1.msra.mxu0 0.0
  %4621 = vmatprep.subr.mxu0 0.0
  %4622 = vmatpush1.msra.mxu0 0.0
  %4623 = vmatprep.subr.mxu0 0.0
  %4624 = vmatpush1.msra.mxu0 0.0
  %4625 = vmatprep.subr.mxu0 0.0
  %4626 = vmatpush1.msra.mxu0 0.0
  %4627 = vmatprep.subr.mxu0 0.0
  %4628 = vmatpush1.msra.mxu0 0.0
  %4629 = vmatprep.subr.mxu0 0.0
  %4630 = vmatpush1.msra.mxu0 %v1146
  %4631 = vmatprep.subr.mxu0 0.0
  %4632 = vmatpush1.msra.mxu0 %v1145
  %4633 = vmatprep.subr.mxu0 0.0
  %4634 = vmatpush1.msra.mxu0 %v1144
  %4635 = vmatprep.subr.mxu0 0.0
  %4636 = vmatpush1.msra.mxu0 %v1143
  %4637 = vmatprep.subr.mxu0 0.0
  %4638 = vmatpush2.msra.mxu0 0.0
  %4639 = vmatprep.subr.mxu0 0.0
  %4640 = vmatpush2.msra.mxu0 0.0
  %4641 = vmatprep.subr.mxu0 0.0
  %4642 = vmatpush2.msra.mxu0 0.0
  %4643 = vmatprep.subr.mxu0 0.0
  %4644 = vmatpush2.msra.mxu0 0.0
  %4645 = vmatprep.subr.mxu0 0.0
  %4646 = vmatpush2.msra.mxu0 0.0
  %4647 = vmatprep.subr.mxu0 0.0
  %4648 = vmatpush2.msra.mxu0 0.0
  %4649 = vmatprep.subr.mxu0 0.0
  %4650 = vmatpush2.msra.mxu0 0.0
  %4651 = vmatprep.subr.mxu0 0.0
  %4652 = vmatpush2.msra.mxu0 0.0
  %4653 = vmatprep.subr.mxu0 0.0
  %4654 = vmatpush2.msra.mxu0 0.0
  %4655 = vmatprep.subr.mxu0 0.0
  %4656 = vmatpush2.msra.mxu0 0.0
  %4657 = vmatprep.subr.mxu0 0.0
  %4658 = vmatpush2.msra.mxu0 0.0
  %4659 = vmatprep.subr.mxu0 0.0
  %4660 = vmatpush2.msra.mxu0 0.0
  %4661 = vmatprep.subr.mxu0 0.0
  %4662 = vmatpush2.msra.mxu0 0.0
  %4663 = vmatprep.subr.mxu0 0.0
  %4664 = vmatpush2.msra.mxu0 0.0
  %4665 = vmatprep.subr.mxu0 0.0
  %4666 = vmatpush2.msra.mxu0 0.0
  %4667 = vmatprep.subr.mxu0 0.0
  %4668 = vmatpush2.msra.mxu0 0.0
  %4669 = vmatprep.mubr.f32.mxu0 0.0
  %4670 = vmatmul.mubr.f32.gmra.mxu0 %v4533
  %v4671 = vpop.f32.mrf.mxu0
  %v4672 = vadd.f32 0.0, %v4671
  %v4673 = vpop.f32.mrf.mxu0
  %4674 = vdwg.mxu0
  %4675 = vmatprep.subr.mxu0 0.0
  %4676 = vmatpush1.msra.mxu0 0.0
  %4677 = vmatprep.subr.mxu0 0.0
  %4678 = vmatpush1.msra.mxu0 0.0
  %4679 = vmatprep.subr.mxu0 0.0
  %4680 = vmatpush1.msra.mxu0 0.0
  %4681 = vmatprep.subr.mxu0 0.0
  %4682 = vmatpush1.msra.mxu0 0.0
  %4683 = vmatprep.subr.mxu0 0.0
  %4684 = vmatpush1.msra.mxu0 0.0
  %4685 = vmatprep.subr.mxu0 0.0
  %4686 = vmatpush1.msra.mxu0 0.0
  %4687 = vmatprep.subr.mxu0 0.0
  %4688 = vmatpush1.msra.mxu0 0.0
  %4689 = vmatprep.subr.mxu0 0.0
  %4690 = vmatpush1.msra.mxu0 0.0
  %4691 = vmatprep.subr.mxu0 0.0
  %4692 = vmatpush1.msra.mxu0 0.0
  %4693 = vmatprep.subr.mxu0 0.0
  %4694 = vmatpush1.msra.mxu0 0.0
  %4695 = vmatprep.subr.mxu0 0.0
  %4696 = vmatpush1.msra.mxu0 0.0
  %4697 = vmatprep.subr.mxu0 0.0
  %4698 = vmatpush1.msra.mxu0 0.0
  %4699 = vmatprep.subr.mxu0 0.0
  %4700 = vmatpush1.msra.mxu0 %v1150
  %4701 = vmatprep.subr.mxu0 0.0
  %4702 = vmatpush1.msra.mxu0 %v1149
  %4703 = vmatprep.subr.mxu0 0.0
  %4704 = vmatpush1.msra.mxu0 %v1148
  %4705 = vmatprep.subr.mxu0 0.0
  %4706 = vmatpush1.msra.mxu0 %v1147
  %4707 = vmatprep.subr.mxu0 0.0
  %4708 = vmatpush2.msra.mxu0 0.0
  %4709 = vmatprep.subr.mxu0 0.0
  %4710 = vmatpush2.msra.mxu0 0.0
  %4711 = vmatprep.subr.mxu0 0.0
  %4712 = vmatpush2.msra.mxu0 0.0
  %4713 = vmatprep.subr.mxu0 0.0
  %4714 = vmatpush2.msra.mxu0 0.0
  %4715 = vmatprep.subr.mxu0 0.0
  %4716 = vmatpush2.msra.mxu0 0.0
  %4717 = vmatprep.subr.mxu0 0.0
  %4718 = vmatpush2.msra.mxu0 0.0
  %4719 = vmatprep.subr.mxu0 0.0
  %4720 = vmatpush2.msra.mxu0 0.0
  %4721 = vmatprep.subr.mxu0 0.0
  %4722 = vmatpush2.msra.mxu0 0.0
  %4723 = vmatprep.subr.mxu0 0.0
  %4724 = vmatpush2.msra.mxu0 0.0
  %4725 = vmatprep.subr.mxu0 0.0
  %4726 = vmatpush2.msra.mxu0 0.0
  %4727 = vmatprep.subr.mxu0 0.0
  %4728 = vmatpush2.msra.mxu0 0.0
  %4729 = vmatprep.subr.mxu0 0.0
  %4730 = vmatpush2.msra.mxu0 0.0
  %4731 = vmatprep.subr.mxu0 0.0
  %4732 = vmatpush2.msra.mxu0 0.0
  %4733 = vmatprep.subr.mxu0 0.0
  %4734 = vmatpush2.msra.mxu0 0.0
  %4735 = vmatprep.subr.mxu0 0.0
  %4736 = vmatpush2.msra.mxu0 0.0
  %4737 = vmatprep.subr.mxu0 0.0
  %4738 = vmatpush2.msra.mxu0 0.0
  %4739 = vmatprep.mubr.f32.mxu0 0.0
  %4740 = vmatmul.mubr.f32.gmra.mxu0 %v4533
  %v4741 = vpop.f32.mrf.mxu0
  %v4742 = vadd.f32 %v1299, %v4741
  %v4743 = vpop.f32.mrf.mxu0
  %4744 = vdwg.mxu0
  %v4745 = vadd.f32 %v486, %v4602
  %v4746 = vxor.u32 %v4745, 2147483648
  %v4747 = vmul.f32 %v4746, 1.442695
  %v4748 = vpow.pop %v4747
  %v4749 = vadd.f32 %v4748, 1.0
  %v4750 = vrcp.pop %v4749
  %v4751 = vmul.f32 1.0, %v4750
  %v4752 = vadd.f32 %v642, %v4672
  %v4753 = vxor.u32 %v4752, 2147483648
  %v4754 = vmul.f32 %v4753, 1.442695
  %v4755 = vpow.pop %v4754
  %v4756 = vadd.f32 %v4755, 1.0
  %v4757 = vrcp.pop %v4756
  %v4758 = vmul.f32 1.0, %v4757
  %v4759 = vmul.f32 %v4751, %v4742
  %v4760 = vadd.f32 %v798, %v4759
  %v4761 = vtanh.pop %v4760
  %v4762 = vsub.f32 1.0, %v4758
  %v4763 = vmul.f32 %v4762, %v4761
  %v4764 = vmul.f32 %v4758, %v4531
  %v4765 = vadd.f32 %v4763, %v4764
  %vm4766 = vcmp.gt.s32.totalorder %v1138, 1
  %v4767 = vsel %vm4766, 1, 0
  %4768 = vset.pattern.permute.xlu0 0
  %4769 = vperm.xlu0 %4768, %v4767
  %v4770 = vpop.permute.xlu0 %4769
  %vm4771 = vcmp.eq.s32.totalorder %v4770, 1
  %v4772 = vsel %vm4771, %v4765, %v4531
  %v4774 = vsel %vm365, %v4772, 0
  %4776 = vmatprep.subr.mxu0 0.0
  %4777 = vmatpush1.msra.mxu0 0.0
  %4778 = vmatprep.subr.mxu0 0.0
  %4779 = vmatpush1.msra.mxu0 0.0
  %4780 = vmatprep.subr.mxu0 0.0
  %4781 = vmatpush1.msra.mxu0 0.0
  %4782 = vmatprep.subr.mxu0 0.0
  %4783 = vmatpush1.msra.mxu0 0.0
  %4784 = vmatprep.subr.mxu0 0.0
  %4785 = vmatpush1.msra.mxu0 0.0
  %4786 = vmatprep.subr.mxu0 0.0
  %4787 = vmatpush1.msra.mxu0 0.0
  %4788 = vmatprep.subr.mxu0 0.0
  %4789 = vmatpush1.msra.mxu0 0.0
  %4790 = vmatprep.subr.mxu0 0.0
  %4791 = vmatpush1.msra.mxu0 0.0
  %4792 = vmatprep.subr.mxu0 0.0
  %4793 = vmatpush1.msra.mxu0 0.0
  %4794 = vmatprep.subr.mxu0 0.0
  %4795 = vmatpush1.msra.mxu0 0.0
  %4796 = vmatprep.subr.mxu0 0.0
  %4797 = vmatpush1.msra.mxu0 0.0
  %4798 = vmatprep.subr.mxu0 0.0
  %4799 = vmatpush1.msra.mxu0 0.0
  %4800 = vmatprep.subr.mxu0 0.0
  %4801 = vmatpush1.msra.mxu0 %v1142
  %4802 = vmatprep.subr.mxu0 0.0
  %4803 = vmatpush1.msra.mxu0 %v1141
  %4804 = vmatprep.subr.mxu0 0.0
  %4805 = vmatpush1.msra.mxu0 %v1140
  %4806 = vmatprep.subr.mxu0 0.0
  %4807 = vmatpush1.msra.mxu0 %v1139
  %4808 = vmatprep.subr.mxu0 0.0
  %4809 = vmatpush2.msra.mxu0 0.0
  %4810 = vmatprep.subr.mxu0 0.0
  %4811 = vmatpush2.msra.mxu0 0.0
  %4812 = vmatprep.subr.mxu0 0.0
  %4813 = vmatpush2.msra.mxu0 0.0
  %4814 = vmatprep.subr.mxu0 0.0
  %4815 = vmatpush2.msra.mxu0 0.0
  %4816 = vmatprep.subr.mxu0 0.0
  %4817 = vmatpush2.msra.mxu0 0.0
  %4818 = vmatprep.subr.mxu0 0.0
  %4819 = vmatpush2.msra.mxu0 0.0
  %4820 = vmatprep.subr.mxu0 0.0
  %4821 = vmatpush2.msra.mxu0 0.0
  %4822 = vmatprep.subr.mxu0 0.0
  %4823 = vmatpush2.msra.mxu0 0.0
  %4824 = vmatprep.subr.mxu0 0.0
  %4825 = vmatpush2.msra.mxu0 0.0
  %4826 = vmatprep.subr.mxu0 0.0
  %4827 = vmatpush2.msra.mxu0 0.0
  %4828 = vmatprep.subr.mxu0 0.0
  %4829 = vmatpush2.msra.mxu0 0.0
  %4830 = vmatprep.subr.mxu0 0.0
  %4831 = vmatpush2.msra.mxu0 0.0
  %4832 = vmatprep.subr.mxu0 0.0
  %4833 = vmatpush2.msra.mxu0 0.0
  %4834 = vmatprep.subr.mxu0 0.0
  %4835 = vmatpush2.msra.mxu0 0.0
  %4836 = vmatprep.subr.mxu0 0.0
  %4837 = vmatpush2.msra.mxu0 0.0
  %4838 = vmatprep.subr.mxu0 0.0
  %4839 = vmatpush2.msra.mxu0 0.0
  %4840 = vmatprep.mubr.f32.mxu0 0.0
  %4841 = vmatmul.mubr.f32.gmra.mxu0 %v4774
  %v4842 = vpop.f32.mrf.mxu0
  %v4843 = vadd.f32 0.0, %v4842
  %v4844 = vpop.f32.mrf.mxu0
  %4845 = vdwg.mxu0
  %4846 = vmatprep.subr.mxu0 0.0
  %4847 = vmatpush1.msra.mxu0 0.0
  %4848 = vmatprep.subr.mxu0 0.0
  %4849 = vmatpush1.msra.mxu0 0.0
  %4850 = vmatprep.subr.mxu0 0.0
  %4851 = vmatpush1.msra.mxu0 0.0
  %4852 = vmatprep.subr.mxu0 0.0
  %4853 = vmatpush1.msra.mxu0 0.0
  %4854 = vmatprep.subr.mxu0 0.0
  %4855 = vmatpush1.msra.mxu0 0.0
  %4856 = vmatprep.subr.mxu0 0.0
  %4857 = vmatpush1.msra.mxu0 0.0
  %4858 = vmatprep.subr.mxu0 0.0
  %4859 = vmatpush1.msra.mxu0 0.0
  %4860 = vmatprep.subr.mxu0 0.0
  %4861 = vmatpush1.msra.mxu0 0.0
  %4862 = vmatprep.subr.mxu0 0.0
  %4863 = vmatpush1.msra.mxu0 0.0
  %4864 = vmatprep.subr.mxu0 0.0
  %4865 = vmatpush1.msra.mxu0 0.0
  %4866 = vmatprep.subr.mxu0 0.0
  %4867 = vmatpush1.msra.mxu0 0.0
  %4868 = vmatprep.subr.mxu0 0.0
  %4869 = vmatpush1.msra.mxu0 0.0
  %4870 = vmatprep.subr.mxu0 0.0
  %4871 = vmatpush1.msra.mxu0 %v1146
  %4872 = vmatprep.subr.mxu0 0.0
  %4873 = vmatpush1.msra.mxu0 %v1145
  %4874 = vmatprep.subr.mxu0 0.0
  %4875 = vmatpush1.msra.mxu0 %v1144
  %4876 = vmatprep.subr.mxu0 0.0
  %4877 = vmatpush1.msra.mxu0 %v1143
  %4878 = vmatprep.subr.mxu0 0.0
  %4879 = vmatpush2.msra.mxu0 0.0
  %4880 = vmatprep.subr.mxu0 0.0
  %4881 = vmatpush2.msra.mxu0 0.0
  %4882 = vmatprep.subr.mxu0 0.0
  %4883 = vmatpush2.msra.mxu0 0.0
  %4884 = vmatprep.subr.mxu0 0.0
  %4885 = vmatpush2.msra.mxu0 0.0
  %4886 = vmatprep.subr.mxu0 0.0
  %4887 = vmatpush2.msra.mxu0 0.0
  %4888 = vmatprep.subr.mxu0 0.0
  %4889 = vmatpush2.msra.mxu0 0.0
  %4890 = vmatprep.subr.mxu0 0.0
  %4891 = vmatpush2.msra.mxu0 0.0
  %4892 = vmatprep.subr.mxu0 0.0
  %4893 = vmatpush2.msra.mxu0 0.0
  %4894 = vmatprep.subr.mxu0 0.0
  %4895 = vmatpush2.msra.mxu0 0.0
  %4896 = vmatprep.subr.mxu0 0.0
  %4897 = vmatpush2.msra.mxu0 0.0
  %4898 = vmatprep.subr.mxu0 0.0
  %4899 = vmatpush2.msra.mxu0 0.0
  %4900 = vmatprep.subr.mxu0 0.0
  %4901 = vmatpush2.msra.mxu0 0.0
  %4902 = vmatprep.subr.mxu0 0.0
  %4903 = vmatpush2.msra.mxu0 0.0
  %4904 = vmatprep.subr.mxu0 0.0
  %4905 = vmatpush2.msra.mxu0 0.0
  %4906 = vmatprep.subr.mxu0 0.0
  %4907 = vmatpush2.msra.mxu0 0.0
  %4908 = vmatprep.subr.mxu0 0.0
  %4909 = vmatpush2.msra.mxu0 0.0
  %4910 = vmatprep.mubr.f32.mxu0 0.0
  %4911 = vmatmul.mubr.f32.gmra.mxu0 %v4774
  %v4912 = vpop.f32.mrf.mxu0
  %v4913 = vadd.f32 0.0, %v4912
  %v4914 = vpop.f32.mrf.mxu0
  %4915 = vdwg.mxu0
  %4916 = vmatprep.subr.mxu0 0.0
  %4917 = vmatpush1.msra.mxu0 0.0
  %4918 = vmatprep.subr.mxu0 0.0
  %4919 = vmatpush1.msra.mxu0 0.0
  %4920 = vmatprep.subr.mxu0 0.0
  %4921 = vmatpush1.msra.mxu0 0.0
  %4922 = vmatprep.subr.mxu0 0.0
  %4923 = vmatpush1.msra.mxu0 0.0
  %4924 = vmatprep.subr.mxu0 0.0
  %4925 = vmatpush1.msra.mxu0 0.0
  %4926 = vmatprep.subr.mxu0 0.0
  %4927 = vmatpush1.msra.mxu0 0.0
  %4928 = vmatprep.subr.mxu0 0.0
  %4929 = vmatpush1.msra.mxu0 0.0
  %4930 = vmatprep.subr.mxu0 0.0
  %4931 = vmatpush1.msra.mxu0 0.0
  %4932 = vmatprep.subr.mxu0 0.0
  %4933 = vmatpush1.msra.mxu0 0.0
  %4934 = vmatprep.subr.mxu0 0.0
  %4935 = vmatpush1.msra.mxu0 0.0
  %4936 = vmatprep.subr.mxu0 0.0
  %4937 = vmatpush1.msra.mxu0 0.0
  %4938 = vmatprep.subr.mxu0 0.0
  %4939 = vmatpush1.msra.mxu0 0.0
  %4940 = vmatprep.subr.mxu0 0.0
  %4941 = vmatpush1.msra.mxu0 %v1150
  %4942 = vmatprep.subr.mxu0 0.0
  %4943 = vmatpush1.msra.mxu0 %v1149
  %4944 = vmatprep.subr.mxu0 0.0
  %4945 = vmatpush1.msra.mxu0 %v1148
  %4946 = vmatprep.subr.mxu0 0.0
  %4947 = vmatpush1.msra.mxu0 %v1147
  %4948 = vmatprep.subr.mxu0 0.0
  %4949 = vmatpush2.msra.mxu0 0.0
  %4950 = vmatprep.subr.mxu0 0.0
  %4951 = vmatpush2.msra.mxu0 0.0
  %4952 = vmatprep.subr.mxu0 0.0
  %4953 = vmatpush2.msra.mxu0 0.0
  %4954 = vmatprep.subr.mxu0 0.0
  %4955 = vmatpush2.msra.mxu0 0.0
  %4956 = vmatprep.subr.mxu0 0.0
  %4957 = vmatpush2.msra.mxu0 0.0
  %4958 = vmatprep.subr.mxu0 0.0
  %4959 = vmatpush2.msra.mxu0 0.0
  %4960 = vmatprep.subr.mxu0 0.0
  %4961 = vmatpush2.msra.mxu0 0.0
  %4962 = vmatprep.subr.mxu0 0.0
  %4963 = vmatpush2.msra.mxu0 0.0
  %4964 = vmatprep.subr.mxu0 0.0
  %4965 = vmatpush2.msra.mxu0 0.0
  %4966 = vmatprep.subr.mxu0 0.0
  %4967 = vmatpush2.msra.mxu0 0.0
  %4968 = vmatprep.subr.mxu0 0.0
  %4969 = vmatpush2.msra.mxu0 0.0
  %4970 = vmatprep.subr.mxu0 0.0
  %4971 = vmatpush2.msra.mxu0 0.0
  %4972 = vmatprep.subr.mxu0 0.0
  %4973 = vmatpush2.msra.mxu0 0.0
  %4974 = vmatprep.subr.mxu0 0.0
  %4975 = vmatpush2.msra.mxu0 0.0
  %4976 = vmatprep.subr.mxu0 0.0
  %4977 = vmatpush2.msra.mxu0 0.0
  %4978 = vmatprep.subr.mxu0 0.0
  %4979 = vmatpush2.msra.mxu0 0.0
  %4980 = vmatprep.mubr.f32.mxu0 0.0
  %4981 = vmatmul.mubr.f32.gmra.mxu0 %v4774
  %v4982 = vpop.f32.mrf.mxu0
  %v4983 = vadd.f32 %v1299, %v4982
  %v4984 = vpop.f32.mrf.mxu0
  %4985 = vdwg.mxu0
  %v4986 = vadd.f32 %v481, %v4843
  %v4987 = vxor.u32 %v4986, 2147483648
  %v4988 = vmul.f32 %v4987, 1.442695
  %v4989 = vpow.pop %v4988
  %v4990 = vadd.f32 %v4989, 1.0
  %v4991 = vrcp.pop %v4990
  %v4992 = vmul.f32 1.0, %v4991
  %v4993 = vadd.f32 %v637, %v4913
  %v4994 = vxor.u32 %v4993, 2147483648
  %v4995 = vmul.f32 %v4994, 1.442695
  %v4996 = vpow.pop %v4995
  %v4997 = vadd.f32 %v4996, 1.0
  %v4998 = vrcp.pop %v4997
  %v4999 = vmul.f32 1.0, %v4998
  %v5000 = vmul.f32 %v4992, %v4983
  %v5001 = vadd.f32 %v793, %v5000
  %v5002 = vtanh.pop %v5001
  %v5003 = vsub.f32 1.0, %v4999
  %v5004 = vmul.f32 %v5003, %v5002
  %v5005 = vmul.f32 %v4999, %v4772
  %v5006 = vadd.f32 %v5004, %v5005
  %vm5007 = vcmp.gt.s32.totalorder %v1138, 0
  %v5008 = vsel %vm5007, 1, 0
  %5009 = vset.pattern.permute.xlu0 0
  %5010 = vperm.xlu0 %5009, %v5008
  %v5011 = vpop.permute.xlu0 %5010
  %vm5012 = vcmp.eq.s32.totalorder %v5011, 1
  %v5013 = vsel %vm5012, %v5006, %v4772
  %5015 = vrot.lane.b32.xlu0 %v5013, 32
  %v5016 = vpop.permute.xlu0 %5015
  %v5018 = vsel %vm365, %v1137, %v5016
  %v5019 = vmul.f32 %v5018, %v5018
  %vm5020 = vcmask 523264
  %v5021 = vsel %vm5020, %v5019, 0.0
  %5022 = vadd.xlane.f32.xlu0 %v5021
  %v5023 = vpop.xlane.xlu0 %5022
  %v5024 = vrsqrt.pop %v5023
  %v5025 = vmul.f32 %v5018, %v5024
  %v5026 = vld [vmem:[%s20] sm:$0xff]
  %v5027 = vld [vmem:[%s20 + $0x8] sm:$0xff]
  %v5028 = vld [vmem:[%s20 + $0x10] sm:$0xff]
  %v5029 = vld [vmem:[%s20 + $0x18] sm:$0xff]
  %v5030 = vld [vmem:[%s20 + $0x20] sm:$0xff]
  %v5031 = vld [vmem:[%s20 + $0x28] sm:$0xff]
  %v5032 = vld [vmem:[%s20 + $0x30] sm:$0xff]
  %v5033 = vld [vmem:[%s20 + $0x38] sm:$0xff]
  %v5034 = vld [vmem:[%s21] sm:$0x1]
  %v5036 = vlaneseq
  %v5037 = vshrl.u32 %v5036, 7
  %v5038 = vsub.s32 0, %v5037
  %v5039 = vrot.slane %v5034, %v5038
  %v5042 = vsel %vm5020, %v5025, 0
  %5044 = vmatprep.subr.mxu0 0.0
  %5045 = vmatpush1.msra.mxu0 0.0
  %5046 = vmatprep.subr.mxu0 0.0
  %5047 = vmatpush1.msra.mxu0 0.0
  %5048 = vmatprep.subr.mxu0 0.0
  %5049 = vmatpush1.msra.mxu0 0.0
  %5050 = vmatprep.subr.mxu0 0.0
  %5051 = vmatpush1.msra.mxu0 0.0
  %5052 = vmatprep.subr.mxu0 0.0
  %5053 = vmatpush1.msra.mxu0 0.0
  %5054 = vmatprep.subr.mxu0 0.0
  %5055 = vmatpush1.msra.mxu0 0.0
  %5056 = vmatprep.subr.mxu0 0.0
  %5057 = vmatpush1.msra.mxu0 0.0
  %5058 = vmatprep.subr.mxu0 0.0
  %5059 = vmatpush1.msra.mxu0 0.0
  %5060 = vmatprep.subr.mxu0 0.0
  %5061 = vmatpush1.msra.mxu0 %v5033
  %5062 = vmatprep.subr.mxu0 0.0
  %5063 = vmatpush1.msra.mxu0 %v5032
  %5064 = vmatprep.subr.mxu0 0.0
  %5065 = vmatpush1.msra.mxu0 %v5031
  %5066 = vmatprep.subr.mxu0 0.0
  %5067 = vmatpush1.msra.mxu0 %v5030
  %5068 = vmatprep.subr.mxu0 0.0
  %5069 = vmatpush1.msra.mxu0 %v5029
  %5070 = vmatprep.subr.mxu0 0.0
  %5071 = vmatpush1.msra.mxu0 %v5028
  %5072 = vmatprep.subr.mxu0 0.0
  %5073 = vmatpush1.msra.mxu0 %v5027
  %5074 = vmatprep.subr.mxu0 0.0
  %5075 = vmatpush1.msra.mxu0 %v5026
  %5076 = vmatprep.subr.mxu0 0.0
  %5077 = vmatpush2.msra.mxu0 0.0
  %5078 = vmatprep.subr.mxu0 0.0
  %5079 = vmatpush2.msra.mxu0 0.0
  %5080 = vmatprep.subr.mxu0 0.0
  %5081 = vmatpush2.msra.mxu0 0.0
  %5082 = vmatprep.subr.mxu0 0.0
  %5083 = vmatpush2.msra.mxu0 0.0
  %5084 = vmatprep.subr.mxu0 0.0
  %5085 = vmatpush2.msra.mxu0 0.0
  %5086 = vmatprep.subr.mxu0 0.0
  %5087 = vmatpush2.msra.mxu0 0.0
  %5088 = vmatprep.subr.mxu0 0.0
  %5089 = vmatpush2.msra.mxu0 0.0
  %5090 = vmatprep.subr.mxu0 0.0
  %5091 = vmatpush2.msra.mxu0 0.0
  %5092 = vmatprep.subr.mxu0 0.0
  %5093 = vmatpush2.msra.mxu0 0.0
  %5094 = vmatprep.subr.mxu0 0.0
  %5095 = vmatpush2.msra.mxu0 0.0
  %5096 = vmatprep.subr.mxu0 0.0
  %5097 = vmatpush2.msra.mxu0 0.0
  %5098 = vmatprep.subr.mxu0 0.0
  %5099 = vmatpush2.msra.mxu0 0.0
  %5100 = vmatprep.subr.mxu0 0.0
  %5101 = vmatpush2.msra.mxu0 0.0
  %5102 = vmatprep.subr.mxu0 0.0
  %5103 = vmatpush2.msra.mxu0 0.0
  %5104 = vmatprep.subr.mxu0 0.0
  %5105 = vmatpush2.msra.mxu0 0.0
  %5106 = vmatprep.subr.mxu0 0.0
  %5107 = vmatpush2.msra.mxu0 0.0
  %5108 = vmatprep.mubr.f32.mxu0 0.0
  %5109 = vmatmul.mubr.f32.gmra.mxu0 %v5042
  %v5110 = vpop.f32.mrf.mxu0
  %v5111 = vadd.f32 %v5039, %v5110
  %v5112 = vpop.f32.mrf.mxu0
  %5113 = vdwg.mxu0
  %v5114 = vmax.f32 %v5111, 0.0
  %v5115 = vld [vmem:[%s22] sm:$0xff]
  %v5116 = vld [vmem:[%s22 + $0x8] sm:$0xff]
  %v5117 = vld [vmem:[%s22 + $0x10] sm:$0xff]
  %v5118 = vld [vmem:[%s22 + $0x18] sm:$0xff]
  %v5119 = vld [vmem:[#allocation2] sm:$0x1]
  %v5121 = vlaneseq
  %v5122 = vshrl.u32 %v5121, 7
  %v5123 = vsub.s32 0, %v5122
  %v5124 = vrot.slane %v5119, %v5123
  %v5127 = vsel %vm365, %v5114, 0
  %5129 = vmatprep.subr.mxu0 0.0
  %5130 = vmatpush1.msra.mxu0 0.0
  %5131 = vmatprep.subr.mxu0 0.0
  %5132 = vmatpush1.msra.mxu0 0.0
  %5133 = vmatprep.subr.mxu0 0.0
  %5134 = vmatpush1.msra.mxu0 0.0
  %5135 = vmatprep.subr.mxu0 0.0
  %5136 = vmatpush1.msra.mxu0 0.0
  %5137 = vmatprep.subr.mxu0 0.0
  %5138 = vmatpush1.msra.mxu0 0.0
  %5139 = vmatprep.subr.mxu0 0.0
  %5140 = vmatpush1.msra.mxu0 0.0
  %5141 = vmatprep.subr.mxu0 0.0
  %5142 = vmatpush1.msra.mxu0 0.0
  %5143 = vmatprep.subr.mxu0 0.0
  %5144 = vmatpush1.msra.mxu0 0.0
  %5145 = vmatprep.subr.mxu0 0.0
  %5146 = vmatpush1.msra.mxu0 0.0
  %5147 = vmatprep.subr.mxu0 0.0
  %5148 = vmatpush1.msra.mxu0 0.0
  %5149 = vmatprep.subr.mxu0 0.0
  %5150 = vmatpush1.msra.mxu0 0.0
  %5151 = vmatprep.subr.mxu0 0.0
  %5152 = vmatpush1.msra.mxu0 0.0
  %5153 = vmatprep.subr.mxu0 0.0
  %5154 = vmatpush1.msra.mxu0 %v5118
  %5155 = vmatprep.subr.mxu0 0.0
  %5156 = vmatpush1.msra.mxu0 %v5117
  %5157 = vmatprep.subr.mxu0 0.0
  %5158 = vmatpush1.msra.mxu0 %v5116
  %5159 = vmatprep.subr.mxu0 0.0
  %5160 = vmatpush1.msra.mxu0 %v5115
  %5161 = vmatprep.subr.mxu0 0.0
  %5162 = vmatpush2.msra.mxu0 0.0
  %5163 = vmatprep.subr.mxu0 0.0
  %5164 = vmatpush2.msra.mxu0 0.0
  %5165 = vmatprep.subr.mxu0 0.0
  %5166 = vmatpush2.msra.mxu0 0.0
  %5167 = vmatprep.subr.mxu0 0.0
  %5168 = vmatpush2.msra.mxu0 0.0
  %5169 = vmatprep.subr.mxu0 0.0
  %5170 = vmatpush2.msra.mxu0 0.0
  %5171 = vmatprep.subr.mxu0 0.0
  %5172 = vmatpush2.msra.mxu0 0.0
  %5173 = vmatprep.subr.mxu0 0.0
  %5174 = vmatpush2.msra.mxu0 0.0
  %5175 = vmatprep.subr.mxu0 0.0
  %5176 = vmatpush2.msra.mxu0 0.0
  %5177 = vmatprep.subr.mxu0 0.0
  %5178 = vmatpush2.msra.mxu0 0.0
  %5179 = vmatprep.subr.mxu0 0.0
  %5180 = vmatpush2.msra.mxu0 0.0
  %5181 = vmatprep.subr.mxu0 0.0
  %5182 = vmatpush2.msra.mxu0 0.0
  %5183 = vmatprep.subr.mxu0 0.0
  %5184 = vmatpush2.msra.mxu0 0.0
  %5185 = vmatprep.subr.mxu0 0.0
  %5186 = vmatpush2.msra.mxu0 0.0
  %5187 = vmatprep.subr.mxu0 0.0
  %5188 = vmatpush2.msra.mxu0 0.0
  %5189 = vmatprep.subr.mxu0 0.0
  %5190 = vmatpush2.msra.mxu0 0.0
  %5191 = vmatprep.subr.mxu0 0.0
  %5192 = vmatpush2.msra.mxu0 0.0
  %5193 = vmatprep.mubr.f32.mxu0 0.0
  %5194 = vmatmul.mubr.f32.gmra.mxu0 %v5127
  %v5195 = vpop.f32.mrf.mxu0
  %v5196 = vadd.f32 %v5124, %v5195
  %v5197 = vpop.f32.mrf.mxu0
  %5198 = vdwg.mxu0
  %vm5199 = vcmask 7168
  %5200 = vst.msk [vmem:[%s24] sm:$0xff] %vm5199, %v5196
  // Predicated region
  $region98: #{gru_utility_forward.1} parent=0 // pred_check
    _
  $region99: #{gru_utility_forward.1} parent=0 // pred_check_branch
    %5202 = sbr.rel (0) target = $region101
  $region100: #{gru_utility_forward.1} parent=0 // pred_region
    _
  $region101: #{gru_utility_forward.1} parent=0 // pred_fallthru
    _
  // Predicated region
  $region102: #{gru_utility_forward.1} parent=0 // pred_check
    _
  $region103: #{gru_utility_forward.1} parent=0 // pred_check_branch
    %5204 = sbr.rel (0) target = $region105
  $region104: #{gru_utility_forward.1} parent=0 // pred_region
    _
  $region105: #{gru_utility_forward.1} parent=0 // pred_fallthru
    _

</llo_original>
